<compile_context>
chip_gen: v5e
topology: v5e:2x2
jax: 0.10.0
libtpu: 0.0.40
codegen_flags: <defaults>
</compile_context>

<pallas_src>
import jax
import jax.numpy as jnp
from jax.experimental import pallas as pl
from jax.experimental.pallas import tpu as pltpu

EPS = 1e-5


def _vmem_limit_bytes():
    cap = 128 * 1024 * 1024
    try:
        cap = int(pltpu.get_tpu_info().vmem_capacity_bytes)
    except Exception:
        pass
    # ~half of physical VMEM: 64 MiB on v5e/v6e (128 MiB), 32 MiB on v7x (64 MiB).
    return max(32 * 1024 * 1024, min(96 * 1024 * 1024, cap // 2))


VMEM_LIMIT = _vmem_limit_bytes()


# --------------------------------------------------------------------------- helpers
def _rep_spec(shape):
    """Full-array block, replicated to every step of a 1-D grid."""
    ndim = len(shape)
    return pl.BlockSpec(shape, lambda i, _n=ndim: (0,) * _n)


def _cast(v, use_bf16):
    return v.astype(jnp.bfloat16) if use_bf16 else v


def _bn_affine(psum, psumsq, gamma, beta, count):
    """Fold training-mode BN (biased variance) into per-channel (scale, shift).

    Tiny O(C) JAX ops between pallas_calls; variance clamped at 0 to guard the
    single-pass E[x^2]-mu^2 cancellation.
    """
    f32 = jnp.float32
    s = jnp.sum(psum.astype(f32), axis=(0, 1))
    ss = jnp.sum(psumsq.astype(f32), axis=(0, 1))
    mu = s / count
    var = jnp.maximum(ss / count - mu * mu, 0.0)
    scale = gamma.astype(f32) * jax.lax.rsqrt(var + EPS)
    shift = beta.astype(f32) - mu * scale
    return scale.reshape(1, -1), shift.reshape(1, -1)


def _pick_row_block(M, target, align=16):
    """Largest divisor of M <= target, preferring 16- (then 8-) sublane alignment."""
    target = int(min(max(target, align), M))
    for a in (align, 8):
        for c in range(target - target % a, 0, -a):
            if M % c == 0:
                return c
    # TODO(synk): masked tail handling for M with no 8-aligned divisor.
    return M


def _pick_img_block(N, HW, target_rows):
    """Images per phase-C/D grid step: fill the MXU M dim, keep rows sublane-aligned."""
    limit = max(target_rows, HW)
    for a in (16, 8):
        best = None
        for c in range(1, N + 1):
            if N % c == 0 and c * HW <= limit and (c * HW) % a == 0:
                best = c
        if best is not None:
            return best
    return N


# --------------------------------------------------------------------------- kernels
def _stats_kernel(x_ref, s_ref, ss_ref):
    """Phase A: per-block partial sum and sum-of-squares of x (no accumulation)."""
    x = x_ref[...]
    s_ref[...] = jnp.sum(x, axis=0, keepdims=True).reshape(1, 1, -1)
    ss_ref[...] = jnp.sum(x * x, axis=0, keepdims=True).reshape(1, 1, -1)


def _make_pass1_kernel(use_bf16):
    """Phase B: h1 = conv1(relu(bn1(x))) per row block, plus partial stats(h1)."""
    def kernel(x_ref, sc1_ref, sh1_ref, w1_ref, h1_ref, ps_ref, pss_ref):
        h0 = jnp.maximum(x_ref[...] * sc1_ref[...] + sh1_ref[...], 0.0)
        h1 = jnp.dot(_cast(h0, use_bf16), w1_ref[...],
                     preferred_element_type=jnp.float32)
        h1_ref[...] = h1.astype(h1_ref.dtype)            # bf16 intermediate store
        ps_ref[...] = jnp.sum(h1, axis=0, keepdims=True).reshape(1, 1, -1)
        pss_ref[...] = jnp.sum(h1 * h1, axis=0, keepdims=True).reshape(1, 1, -1)
    return kernel


def _make_conv_kernel(B_img, H, W, P):
    """Phase C: 3x3 conv (pad=1, stride=1) for B_img images per step.

    No im2col scratch: the 9 taps are contracted with 9 accumulated MXU dots read
    straight from a (bf16) padded scratch.  The 1-px border is re-zeroed every step
    (interior is fully overwritten), so the grid axis can be "parallel" (megacore).
    """
    HW = H * W
    rows = B_img * HW

    def kernel(h1_ref, sc2_ref, sh2_ref, w2_ref, h2_ref, ps_ref, pss_ref, pad_ref):
        pdt = pad_ref.dtype
        pad_ref[:, 0:1, :, :] = jnp.zeros((B_img, 1, W + 2, P), pdt)
        pad_ref[:, H + 1:H + 2, :, :] = jnp.zeros((B_img, 1, W + 2, P), pdt)
        pad_ref[:, 1:H + 1, 0:1, :] = jnp.zeros((B_img, H, 1, P), pdt)
        pad_ref[:, 1:H + 1, W + 1:W + 2, :] = jnp.zeros((B_img, H, 1, P), pdt)

        h1n = jnp.maximum(
            h1_ref[...].astype(jnp.float32) * sc2_ref[...] + sh2_ref[...], 0.0)
        pad_ref[:, 1:H + 1, 1:W + 1, :] = h1n.reshape(B_img, H, W, P).astype(pdt)

        h2 = jnp.zeros((rows, P), jnp.float32)
        for t in range(9):
            di, dj = t // 3, t % 3
            tap = pad_ref[:, di:di + H, dj:dj + W, :].reshape(rows, P)
            h2 = h2 + jnp.dot(tap, w2_ref[t],
                              preferred_element_type=jnp.float32)

        h2_ref[...] = h2.astype(h2_ref.dtype)            # bf16 intermediate store
        ps_ref[...] = jnp.sum(h2, axis=0, keepdims=True).reshape(1, 1, -1)
        pss_ref[...] = jnp.sum(h2 * h2, axis=0, keepdims=True).reshape(1, 1, -1)
    return kernel


def _make_out_kernel(B_img, HW, has_shortcut, use_bf16):
    """Phase D: conv3 + per-image SE gate + (recomputed) shortcut + residual."""
    rows = B_img * HW

    def kernel(*refs):
        if has_shortcut:
            (x_ref, h2_ref, sc3_ref, sh3_ref, w3_ref,
             sc1_ref, sh1_ref, wsc_ref,
             wf1_ref, bf1_ref, wf2_ref, bf2_ref, o_ref) = refs
        else:
            (x_ref, h2_ref, sc3_ref, sh3_ref, w3_ref,
             wf1_ref, bf1_ref, wf2_ref, bf2_ref, o_ref) = refs

        f32 = jnp.float32
        h2n = jnp.maximum(h2_ref[...].astype(f32) * sc3_ref[...] + sh3_ref[...], 0.0)
        h3 = jnp.dot(_cast(h2n, use_bf16), w3_ref[...],
                     preferred_element_type=f32)                        # (rows, Cexp)
        Cexp = h3.shape[-1]

        # Squeeze-and-Excitation: per-image global average pool + 2 tiny FCs (f32).
        h3b = h3.reshape(B_img, HW, Cexp)
        pool = jnp.mean(h3b, axis=1)                                    # (B_img, Cexp)
        s1 = jnp.maximum(
            jnp.dot(pool, wf1_ref[...], preferred_element_type=f32) + bf1_ref[...],
            0.0)
        gate = jax.nn.sigmoid(
            jnp.dot(s1, wf2_ref[...], preferred_element_type=f32) + bf2_ref[...])
        gated = (h3b * gate[:, None, :]).reshape(rows, Cexp)

        # Shortcut, recomputed here instead of kept live across the pipeline.
        if has_shortcut:
            h0 = jnp.maximum(x_ref[...] * sc1_ref[...] + sh1_ref[...], 0.0)
            sc = jnp.dot(_cast(h0, use_bf16), wsc_ref[...],
                         preferred_element_type=f32)
        else:
            sc = x_ref[...]                                             # Cin == Cexp

        o_ref[...] = (gated + sc).astype(o_ref.dtype)
    return kernel


# --------------------------------------------------------------------------- wrapper
def se_preact_bottleneck(x, params, planes, stride=1, *, use_bf16=True,
                         block_rows=512, image_rows=512):
    """x: (N, H, W, Cin) float32 NHWC. Returns (N, H, W, 4*planes) float32."""
    N, H, W, Cin = x.shape
    P = planes
    Cexp = 4 * planes
    Cse = Cexp // 16
    HW = H * W
    M = N * HW
    has_shortcut = (stride != 1) or (Cin != Cexp)
    # TODO(synk): stride > 1 path not implemented.
    assert stride == 1, "only stride=1 is implemented in this Pallas pipeline"

    f32 = jnp.float32
    mdt = jnp.bfloat16 if use_bf16 else f32      # matmul-operand / intermediate dtype
    isz = 2 if use_bf16 else 4
    row = lambda v: v.reshape(1, -1).astype(f32)

    x2d = x.reshape(M, Cin).astype(f32)
    w1 = params["w1"].astype(mdt)                            # (Cin, P)
    w2 = params["w2"].reshape(9, P, P).astype(mdt)           # (9, P, P) taps (HWIO)
    w3 = params["w3"].astype(mdt)                            # (P, Cexp)
    wf1 = params["wfc1"].astype(f32)
    wf2 = params["wfc2"].astype(f32)

    bm = _pick_row_block(M, block_rows)
    Gr = M // bm
    Bimg = _pick_img_block(N, HW, image_rows)
    Gc = N // Bimg
    rows_c = Bimg * HW

    cparams = pltpu.CompilerParams(dimension_semantics=("parallel",),
                                   vmem_limit_bytes=VMEM_LIMIT)

    # ---- phase A: per-block partial stats of x ------------------------------
    ps1, pss1 = pl.pallas_call(
        _stats_kernel,
        out_shape=(jax.ShapeDtypeStruct((Gr, 1, Cin), f32),
                   jax.ShapeDtypeStruct((Gr, 1, Cin), f32)),
        grid=(Gr,),
        in_specs=[pl.BlockSpec((bm, Cin), lambda i: (i, 0))],
        out_specs=(pl.BlockSpec((1, 1, Cin), lambda i: (i, 0, 0)),
                   pl.BlockSpec((1, 1, Cin), lambda i: (i, 0, 0))),
        compiler_params=cparams,
        cost_estimate=pl.CostEstimate(flops=3 * M * Cin, transcendentals=0,
                                      bytes_accessed=4 * M * Cin),
    )(x2d)
    sc1, sh1 = _bn_affine(ps1, pss1, params["g1"], params["b1"], M)

    # ---- phase B: h1 = conv1(relu(bn1(x))) + partial stats(h1) --------------
    h1, ps2, pss2 = pl.pallas_call(
        _make_pass1_kernel(use_bf16),
        out_shape=(jax.ShapeDtypeStruct((M, P), mdt),
                   jax.ShapeDtypeStruct((Gr, 1, P), f32),
                   jax.ShapeDtypeStruct((Gr, 1, P), f32)),
        grid=(Gr,),
        in_specs=[pl.BlockSpec((bm, Cin), lambda i: (i, 0)),
                  _rep_spec((1, Cin)), _rep_spec((1, Cin)),
                  _rep_spec((Cin, P))],
        out_specs=(pl.BlockSpec((bm, P), lambda i: (i, 0)),
                   pl.BlockSpec((1, 1, P), lambda i: (i, 0, 0)),
                   pl.BlockSpec((1, 1, P), lambda i: (i, 0, 0))),
        compiler_params=cparams,
        cost_estimate=pl.CostEstimate(flops=2 * M * Cin * P, transcendentals=0,
                                      bytes_accessed=4 * M * Cin + isz * M * P),
    )(x2d, sc1, sh1, w1)
    sc2, sh2 = _bn_affine(ps2, pss2, params["g2"], params["b2"], M)

    # ---- phase C: h2 = conv2_3x3(relu(bn2(h1))) + partial stats(h2) ---------
    h2, ps3, pss3 = pl.pallas_call(
        _make_conv_kernel(Bimg, H, W, P),
        out_shape=(jax.ShapeDtypeStruct((M, P), mdt),
                   jax.ShapeDtypeStruct((Gc, 1, P), f32),
                   jax.ShapeDtypeStruct((Gc, 1, P), f32)),
        grid=(Gc,),
        in_specs=[pl.BlockSpec((rows_c, P), lambda n: (n, 0)),
                  _rep_spec((1, P)), _rep_spec((1, P)),
                  _rep_spec((9, P, P))],
        out_specs=(pl.BlockSpec((rows_c, P), lambda n: (n, 0)),
                   pl.BlockSpec((1, 1, P), lambda n: (n, 0, 0)),
                   pl.BlockSpec((1, 1, P), lambda n: (n, 0, 0))),
        scratch_shapes=[pltpu.VMEM((Bimg, H + 2, W + 2, P), mdt)],   # padded images
        compiler_params=cparams,
        cost_estimate=pl.CostEstimate(flops=2 * M * 9 * P * P, transcendentals=0,
                                      bytes_accessed=2 * isz * M * P),
    )(h1, sc2, sh2, w2)
    sc3, sh3 = _bn_affine(ps3, pss3, params["g3"], params["b3"], M)

    # ---- phase D: conv3 + SE gate + shortcut + residual ---------------------
    args = [x2d, h2, sc3, sh3, w3]
    in_specs = [pl.BlockSpec((rows_c, Cin), lambda n: (n, 0)),
                pl.BlockSpec((rows_c, P), lambda n: (n, 0)),
                _rep_spec((1, P)), _rep_spec((1, P)),
                _rep_spec((P, Cexp))]
    if has_shortcut:
        args += [sc1, sh1, params["wsc"].astype(mdt)]
        in_specs += [_rep_spec((1, Cin)), _rep_spec((1, Cin)),
                     _rep_spec((Cin, Cexp))]
    args += [wf1, row(params["bfc1"]), wf2, row(params["bfc2"])]
    in_specs += [_rep_spec((Cexp, Cse)), _rep_spec((1, Cse)),
                 _rep_spec((Cse, Cexp)), _rep_spec((1, Cexp))]

    sc_flops = 2 * M * Cin * Cexp if has_shortcut else 0
    out2d = pl.pallas_call(
        _make_out_kernel(Bimg, HW, has_shortcut, use_bf16),
        out_shape=jax.ShapeDtypeStruct((M, Cexp), f32),
        grid=(Gc,),
        in_specs=in_specs,
        out_specs=pl.BlockSpec((rows_c, Cexp), lambda n: (n, 0)),
        compiler_params=cparams,
        cost_estimate=pl.CostEstimate(flops=2 * M * P * Cexp + sc_flops,
                                      transcendentals=N * Cexp,
                                      bytes_accessed=4 * M * (Cin + Cexp) + isz * M * P),
    )(*args)

    return out2d.reshape(N, H, W, Cexp)


# --------------------------------------------------------------------------- params / reference
def init_params(key, in_planes, planes):
    Cexp = 4 * planes
    Cse = Cexp // 16
    ks = jax.random.split(key, 16)
    n = lambda k, shape, s: (s * jax.random.normal(k, shape)).astype(jnp.float32)
    return {
        "g1": 1.0 + n(ks[0], (in_planes,), 0.1), "b1": n(ks[1], (in_planes,), 0.1),
        "g2": 1.0 + n(ks[2], (planes,), 0.1),    "b2": n(ks[3], (planes,), 0.1),
        "g3": 1.0 + n(ks[4], (planes,), 0.1),    "b3": n(ks[5], (planes,), 0.1),
        # 1x1 conv weights stored as (Cin, Cout); 3x3 conv stored HWIO.
        "w1":  n(ks[6], (in_planes, planes), 0.2),
        "w2":  n(ks[7], (3, 3, planes, planes), 0.1),
        "w3":  n(ks[8], (planes, Cexp), 0.1),
        "wsc": n(ks[9], (in_planes, Cexp), 0.1),
        "wfc1": n(ks[10], (Cexp, Cse), 0.2), "bfc1": n(ks[11], (Cse,), 0.1),
        "wfc2": n(ks[12], (Cse, Cexp), 0.2), "bfc2": n(ks[13], (Cexp,), 0.1),
    }


def reference(x, p, planes, stride=1):
    """Pure-JAX reference mirroring the PyTorch forward (training-mode BN)."""
    Cin = x.shape[-1]
    Cexp = 4 * planes
    HI = jax.lax.Precision.HIGHEST

    def bn(h, g, b):
        mu = h.mean(axis=(0, 1, 2), keepdims=True)
        var = ((h - mu) ** 2).mean(axis=(0, 1, 2), keepdims=True)
        return (h - mu) / jnp.sqrt(var + EPS) * g.reshape(1, 1, 1, -1) \
            + b.reshape(1, 1, 1, -1)

    relu = lambda t: jnp.maximum(t, 0.0)
    h0 = relu(bn(x, p["g1"], p["b1"]))
    if stride != 1 or Cin != Cexp:
        sc = jnp.einsum("nhwc,cd->nhwd", h0[:, ::stride, ::stride, :], p["wsc"],
                        precision=HI)
    else:
        sc = x
    h1 = jnp.einsum("nhwc,cd->nhwd", h0, p["w1"], precision=HI)
    h1 = relu(bn(h1, p["g2"], p["b2"]))
    h2 = jax.lax.conv_general_dilated(
        h1, p["w2"], (stride, stride), ((1, 1), (1, 1)),
        dimension_numbers=("NHWC", "HWIO", "NHWC"), precision=HI)
    h2 = relu(bn(h2, p["g3"], p["b3"]))
    h3 = jnp.einsum("nhwc,cd->nhwd", h2, p["w3"], precision=HI)
    w_pool = h3.mean(axis=(1, 2))
    s1 = relu(jnp.dot(w_pool, p["wfc1"], precision=HI) + p["bfc1"])
    s2 = jax.nn.sigmoid(jnp.dot(s1, p["wfc2"], precision=HI) + p["bfc2"])
    return h3 * s2[:, None, None, :] + sc


def _check(out, ref, tol_abs=None, tol_rel=None, tag=""):
    err = float(jnp.max(jnp.abs(out - ref)))
    scale = float(jnp.max(jnp.abs(ref)))
    if tol_abs is not None and not err < tol_abs:
        raise AssertionError(f"{tag}: max abs err {err} >= {tol_abs}")
    if tol_rel is not None and not err < tol_rel * scale:
        raise AssertionError(f"{tag}: max abs err {err} >= {tol_rel}*{scale}")


if __name__ == "__main__":
    key = jax.random.PRNGKey(0)
    N, H, W = 2, 8, 8
    fwd = jax.jit(se_preact_bottleneck,
                  static_argnames=("planes", "stride", "use_bf16",
                                   "block_rows", "image_rows"))
    configs = [(16, 16),   # in_planes != 4*planes -> 1x1 projection shortcut path
               (64, 16)]   # in_planes == 4*planes -> identity shortcut path
    for in_planes, planes in configs:
        kx, kp, key = jax.random.split(key, 3)
        x = jax.random.normal(kx, (N, H, W, in_planes), dtype=jnp.float32)
        params = init_params(kp, in_planes, planes)
        ref = reference(x, params, planes)

        # exact-semantics path (f32 matmul operands)
        out32 = jax.block_until_ready(fwd(x, params, planes=planes, use_bf16=False))
        assert out32.shape == (N, H, W, 4 * planes), out32.shape
        _check(out32, ref, tol_abs=3e-3, tag=f"f32 in_planes={in_planes}")

        # performance path (bf16 operands + bf16 intermediates, f32 accumulation)
        outbf = jax.block_until_ready(fwd(x, params, planes=planes, use_bf16=True))
        _check(outbf, ref, tol_rel=5e-2, tag=f"bf16 in_planes={in_planes}")

    print("KERNEL_OK")
</pallas_src>

<mosaic_0001>
module attributes {stable_mosaic.version = 11 : i64} {
  func.func @_stats_kernel(%arg0: i32, %arg1: memref<128x16xf32, #tpu.memory_space<vmem>>, %arg2: memref<1x1x16xf32, #tpu.memory_space<vmem>>, %arg3: memref<1x1x16xf32, #tpu.memory_space<vmem>>) attributes {dimension_semantics = [#tpu.dimension_semantics<parallel>], iteration_bounds = array<i64: 1>, scalar_prefetch = 0 : i64, scratch_operands = 0 : i64, tpu.core_type = #tpu.core_type<tc>, window_params = [{transform_indices = @transform_0, window_bounds = array<i64: 128, 16>}, {transform_indices = @transform_1, window_bounds = array<i64: 1, 1, 16>}, {transform_indices = @transform_2, window_bounds = array<i64: 1, 1, 16>}]} {
    %c0 = arith.constant 0 : index
    %c0_0 = arith.constant 0 : index
    %0 = vector.load %arg1[%c0, %c0_0] : memref<128x16xf32, #tpu.memory_space<vmem>>, vector<128x16xf32>
    %cst = arith.constant dense<0.000000e+00> : vector<16xf32>
    %1 = vector.multi_reduction <add>, %0, %cst [0] : vector<128x16xf32> to vector<16xf32>
    %2 = vector.shape_cast %1 : vector<16xf32> to vector<1x16xf32>
    %3 = vector.shape_cast %2 : vector<1x16xf32> to vector<1x1x16xf32>
    %c0_1 = arith.constant 0 : index
    %c0_2 = arith.constant 0 : index
    %c0_3 = arith.constant 0 : index
    %4 = vector.load %arg2[%c0_1, %c0_2, %c0_3] : memref<1x1x16xf32, #tpu.memory_space<vmem>>, vector<1x1x16xf32>
    tpu.vector_store %arg2[%c0_1, %c0_2, %c0_3], %3 {strides = array<i32>} : memref<1x1x16xf32, #tpu.memory_space<vmem>>, vector<1x1x16xf32>,
    %5 = arith.mulf %0, %0 : vector<128x16xf32>
    %cst_4 = arith.constant dense<0.000000e+00> : vector<16xf32>
    %6 = vector.multi_reduction <add>, %5, %cst_4 [0] : vector<128x16xf32> to vector<16xf32>
    %7 = vector.shape_cast %6 : vector<16xf32> to vector<1x16xf32>
    %8 = vector.shape_cast %7 : vector<1x16xf32> to vector<1x1x16xf32>
    %c0_5 = arith.constant 0 : index
    %c0_6 = arith.constant 0 : index
    %c0_7 = arith.constant 0 : index
    %9 = vector.load %arg3[%c0_5, %c0_6, %c0_7] : memref<1x1x16xf32, #tpu.memory_space<vmem>>, vector<1x1x16xf32>
    tpu.vector_store %arg3[%c0_5, %c0_6, %c0_7], %8 {strides = array<i32>} : memref<1x1x16xf32, #tpu.memory_space<vmem>>, vector<1x1x16xf32>,
    return
  }
  func.func @transform_0(%arg0: i32) -> (i32, i32) {
    %c0_i32 = arith.constant 0 : i32
    %c0_i32_0 = arith.constant 0 : i32
    return %arg0, %c0_i32 : i32, i32
  }
  func.func @transform_1(%arg0: i32) -> (i32, i32, i32) {
    %c0_i32 = arith.constant 0 : i32
    %c0_i32_0 = arith.constant 0 : i32
    %c0_i32_1 = arith.constant 0 : i32
    return %arg0, %c0_i32, %c0_i32_0 : i32, i32, i32
  }
  func.func @transform_2(%arg0: i32) -> (i32, i32, i32) {
    %c0_i32 = arith.constant 0 : i32
    %c0_i32_0 = arith.constant 0 : i32
    %c0_i32_1 = arith.constant 0 : i32
    return %arg0, %c0_i32, %c0_i32_0 : i32, i32, i32
  }
}

module attributes {stable_mosaic.version = 11 : i64} {
  func.func @kernel(%arg0: i32, %arg1: memref<128x16xf32, #tpu.memory_space<vmem>>, %arg2: memref<1x16xf32, #tpu.memory_space<vmem>>, %arg3: memref<1x16xf32, #tpu.memory_space<vmem>>, %arg4: memref<16x16xf32, #tpu.memory_space<vmem>>, %arg5: memref<128x16xf32, #tpu.memory_space<vmem>>, %arg6: memref<1x1x16xf32, #tpu.memory_space<vmem>>, %arg7: memref<1x1x16xf32, #tpu.memory_space<vmem>>) attributes {dimension_semantics = [#tpu.dimension_semantics<parallel>], iteration_bounds = array<i64: 1>, scalar_prefetch = 0 : i64, scratch_operands = 0 : i64, tpu.core_type = #tpu.core_type<tc>, window_params = [{transform_indices = @transform_0, window_bounds = array<i64: 128, 16>}, {pipeline_mode = #tpu.pipeline_mode<synchronous>, transform_indices = @transform_1, window_bounds = array<i64: 1, 16>}, {pipeline_mode = #tpu.pipeline_mode<synchronous>, transform_indices = @transform_2, window_bounds = array<i64: 1, 16>}, {pipeline_mode = #tpu.pipeline_mode<synchronous>, transform_indices = @transform_3, window_bounds = array<i64: 16, 16>}, {transform_indices = @transform_4, window_bounds = array<i64: 128, 16>}, {transform_indices = @transform_5, window_bounds = array<i64: 1, 1, 16>}, {transform_indices = @transform_6, window_bounds = array<i64: 1, 1, 16>}]} {
    %c0 = arith.constant 0 : index
    %c0_0 = arith.constant 0 : index
    %0 = vector.load %arg1[%c0, %c0_0] : memref<128x16xf32, #tpu.memory_space<vmem>>, vector<128x16xf32>
    %c0_1 = arith.constant 0 : index
    %c0_2 = arith.constant 0 : index
    %1 = vector.load %arg2[%c0_1, %c0_2] : memref<1x16xf32, #tpu.memory_space<vmem>>, vector<1x16xf32>
    %2 = vector.broadcast %1 : vector<1x16xf32> to vector<128x16xf32>
    %3 = arith.mulf %0, %2 : vector<128x16xf32>
    %c0_3 = arith.constant 0 : index
    %c0_4 = arith.constant 0 : index
    %4 = vector.load %arg3[%c0_3, %c0_4] : memref<1x16xf32, #tpu.memory_space<vmem>>, vector<1x16xf32>
    %5 = vector.broadcast %4 : vector<1x16xf32> to vector<128x16xf32>
    %6 = arith.addf %3, %5 : vector<128x16xf32>
    %cst = arith.constant 0.000000e+00 : f32
    %7 = vector.broadcast %cst : f32 to vector<128x16xf32>
    %8 = arith.maximumf %6, %7 : vector<128x16xf32>
    %c0_5 = arith.constant 0 : index
    %c0_6 = arith.constant 0 : index
    %9 = vector.load %arg4[%c0_5, %c0_6] : memref<16x16xf32, #tpu.memory_space<vmem>>, vector<16x16xf32>
    %cst_7 = arith.constant dense<0.000000e+00> : vector<128x16xf32>
    %10 = tpu.matmul %8, %9, %cst_7 {dimension_numbers = #tpu.dot_dimension_numbers<[1], [0], [0], [1], [0, 0, 1, 1], [], []>} : vector<128x16xf32>, vector<16x16xf32>, vector<128x16xf32> -> vector<128x16xf32>
    %c0_8 = arith.constant 0 : index
    %c0_9 = arith.constant 0 : index
    %11 = vector.load %arg5[%c0_8, %c0_9] : memref<128x16xf32, #tpu.memory_space<vmem>>, vector<128x16xf32>
    tpu.vector_store %arg5[%c0_8, %c0_9], %10 {strides = array<i32>} : memref<128x16xf32, #tpu.memory_space<vmem>>, vector<128x16xf32>,
    %cst_10 = arith.constant dense<0.000000e+00> : vector<16xf32>
    %12 = vector.multi_reduction <add>, %10, %cst_10 [0] : vector<128x16xf32> to vector<16xf32>
    %13 = vector.shape_cast %12 : vector<16xf32> to vector<1x16xf32>
    %14 = vector.shape_cast %13 : vector<1x16xf32> to vector<1x1x16xf32>
    %c0_11 = arith.constant 0 : index
    %c0_12 = arith.constant 0 : index
    %c0_13 = arith.constant 0 : index
    %15 = vector.load %arg6[%c0_11, %c0_12, %c0_13] : memref<1x1x16xf32, #tpu.memory_space<vmem>>, vector<1x1x16xf32>
    tpu.vector_store %arg6[%c0_11, %c0_12, %c0_13], %14 {strides = array<i32>} : memref<1x1x16xf32, #tpu.memory_space<vmem>>, vector<1x1x16xf32>,
    %16 = arith.mulf %10, %10 : vector<128x16xf32>
    %cst_14 = arith.constant dense<0.000000e+00> : vector<16xf32>
    %17 = vector.multi_reduction <add>, %16, %cst_14 [0] : vector<128x16xf32> to vector<16xf32>
    %18 = vector.shape_cast %17 : vector<16xf32> to vector<1x16xf32>
    %19 = vector.shape_cast %18 : vector<1x16xf32> to vector<1x1x16xf32>
    %c0_15 = arith.constant 0 : index
    %c0_16 = arith.constant 0 : index
    %c0_17 = arith.constant 0 : index
    %20 = vector.load %arg7[%c0_15, %c0_16, %c0_17] : memref<1x1x16xf32, #tpu.memory_space<vmem>>, vector<1x1x16xf32>
    tpu.vector_store %arg7[%c0_15, %c0_16, %c0_17], %19 {strides = array<i32>} : memref<1x1x16xf32, #tpu.memory_space<vmem>>, vector<1x1x16xf32>,
    return
  }
  func.func @transform_0(%arg0: i32) -> (i32, i32) {
    %c0_i32 = arith.constant 0 : i32
    %c0_i32_0 = arith.constant 0 : i32
    return %arg0, %c0_i32 : i32, i32
  }
  func.func @transform_1(%arg0: i32) -> (i32, i32) {
    %c0_i32 = arith.constant 0 : i32
    %c0_i32_0 = arith.constant 0 : i32
    %c0_i32_1 = arith.constant 0 : i32
    return %c0_i32, %c0_i32_0 : i32, i32
  }
  func.func @transform_2(%arg0: i32) -> (i32, i32) {
    %c0_i32 = arith.constant 0 : i32
    %c0_i32_0 = arith.constant 0 : i32
    %c0_i32_1 = arith.constant 0 : i32
    return %c0_i32, %c0_i32_0 : i32, i32
  }
  func.func @transform_3(%arg0: i32) -> (i32, i32) {
    %c0_i32 = arith.constant 0 : i32
    %c0_i32_0 = arith.constant 0 : i32
    %c0_i32_1 = arith.constant 0 : i32
    return %c0_i32, %c0_i32_0 : i32, i32
  }
  func.func @transform_4(%arg0: i32) -> (i32, i32) {
    %c0_i32 = arith.constant 0 : i32
    %c0_i32_0 = arith.constant 0 : i32
    return %arg0, %c0_i32 : i32, i32
  }
  func.func @transform_5(%arg0: i32) -> (i32, i32, i32) {
    %c0_i32 = arith.constant 0 : i32
    %c0_i32_0 = arith.constant 0 : i32
    %c0_i32_1 = arith.constant 0 : i32
    return %arg0, %c0_i32, %c0_i32_0 : i32, i32, i32
  }
  func.func @transform_6(%arg0: i32) -> (i32, i32, i32) {
    %c0_i32 = arith.constant 0 : i32
    %c0_i32_0 = arith.constant 0 : i32
    %c0_i32_1 = arith.constant 0 : i32
    return %arg0, %c0_i32, %c0_i32_0 : i32, i32, i32
  }
}

module attributes {stable_mosaic.version = 11 : i64} {
  func.func @kernel(%arg0: i32, %arg1: memref<128x16xf32, #tpu.memory_space<vmem>>, %arg2: memref<1x16xf32, #tpu.memory_space<vmem>>, %arg3: memref<1x16xf32, #tpu.memory_space<vmem>>, %arg4: memref<9x16x16xf32, #tpu.memory_space<vmem>>, %arg5: memref<128x16xf32, #tpu.memory_space<vmem>>, %arg6: memref<1x1x16xf32, #tpu.memory_space<vmem>>, %arg7: memref<1x1x16xf32, #tpu.memory_space<vmem>>, %arg8: memref<2x10x10x16xf32, #tpu.memory_space<vmem>>) attributes {dimension_semantics = [#tpu.dimension_semantics<parallel>], iteration_bounds = array<i64: 1>, scalar_prefetch = 0 : i64, scratch_operands = 1 : i64, tpu.core_type = #tpu.core_type<tc>, window_params = [{transform_indices = @transform_0, window_bounds = array<i64: 128, 16>}, {pipeline_mode = #tpu.pipeline_mode<synchronous>, transform_indices = @transform_1, window_bounds = array<i64: 1, 16>}, {pipeline_mode = #tpu.pipeline_mode<synchronous>, transform_indices = @transform_2, window_bounds = array<i64: 1, 16>}, {pipeline_mode = #tpu.pipeline_mode<synchronous>, transform_indices = @transform_3, window_bounds = array<i64: 9, 16, 16>}, {transform_indices = @transform_4, window_bounds = array<i64: 128, 16>}, {transform_indices = @transform_5, window_bounds = array<i64: 1, 1, 16>}, {transform_indices = @transform_6, window_bounds = array<i64: 1, 1, 16>}]} {
    %cst = arith.constant 0.000000e+00 : f32
    %0 = vector.broadcast %cst : f32 to vector<2x1x10x16xf32>
    %c0 = arith.constant 0 : index
    %c0_0 = arith.constant 0 : index
    %c0_1 = arith.constant 0 : index
    %c0_2 = arith.constant 0 : index
    %1 = vector.load %arg8[%c0, %c0_0, %c0_1, %c0_2] : memref<2x10x10x16xf32, #tpu.memory_space<vmem>>, vector<2x1x10x16xf32>
    tpu.vector_store %arg8[%c0, %c0_0, %c0_1, %c0_2], %0 {strides = array<i32>} : memref<2x10x10x16xf32, #tpu.memory_space<vmem>>, vector<2x1x10x16xf32>,
    %cst_3 = arith.constant 0.000000e+00 : f32
    %2 = vector.broadcast %cst_3 : f32 to vector<2x1x10x16xf32>
    %c0_4 = arith.constant 0 : index
    %c9 = arith.constant 9 : index
    %c0_5 = arith.constant 0 : index
    %c0_6 = arith.constant 0 : index
    %3 = vector.load %arg8[%c0_4, %c9, %c0_5, %c0_6] : memref<2x10x10x16xf32, #tpu.memory_space<vmem>>, vector<2x1x10x16xf32>
    tpu.vector_store %arg8[%c0_4, %c9, %c0_5, %c0_6], %2 {strides = array<i32>} : memref<2x10x10x16xf32, #tpu.memory_space<vmem>>, vector<2x1x10x16xf32>,
    %cst_7 = arith.constant 0.000000e+00 : f32
    %4 = vector.broadcast %cst_7 : f32 to vector<2x8x1x16xf32>
    %c0_8 = arith.constant 0 : index
    %c1 = arith.constant 1 : index
    %c0_9 = arith.constant 0 : index
    %c0_10 = arith.constant 0 : index
    %5 = vector.load %arg8[%c0_8, %c1, %c0_9, %c0_10] : memref<2x10x10x16xf32, #tpu.memory_space<vmem>>, vector<2x8x1x16xf32>
    tpu.vector_store %arg8[%c0_8, %c1, %c0_9, %c0_10], %4 {strides = array<i32>} : memref<2x10x10x16xf32, #tpu.memory_space<vmem>>, vector<2x8x1x16xf32>,
    %cst_11 = arith.constant 0.000000e+00 : f32
    %6 = vector.broadcast %cst_11 : f32 to vector<2x8x1x16xf32>
    %c0_12 = arith.constant 0 : index
    %c1_13 = arith.constant 1 : index
    %c9_14 = arith.constant 9 : index
    %c0_15 = arith.constant 0 : index
    %7 = vector.load %arg8[%c0_12, %c1_13, %c9_14, %c0_15] : memref<2x10x10x16xf32, #tpu.memory_space<vmem>>, vector<2x8x1x16xf32>
    tpu.vector_store %arg8[%c0_12, %c1_13, %c9_14, %c0_15], %6 {strides = array<i32>} : memref<2x10x10x16xf32, #tpu.memory_space<vmem>>, vector<2x8x1x16xf32>,
    %c0_16 = arith.constant 0 : index
    %c0_17 = arith.constant 0 : index
    %8 = vector.load %arg1[%c0_16, %c0_17] : memref<128x16xf32, #tpu.memory_space<vmem>>, vector<128x16xf32>
    %c0_18 = arith.constant 0 : index
    %c0_19 = arith.constant 0 : index
    %9 = vector.load %arg2[%c0_18, %c0_19] : memref<1x16xf32, #tpu.memory_space<vmem>>, vector<1x16xf32>
    %10 = vector.broadcast %9 : vector<1x16xf32> to vector<128x16xf32>
    %11 = arith.mulf %8, %10 : vector<128x16xf32>
    %c0_20 = arith.constant 0 : index
    %c0_21 = arith.constant 0 : index
    %12 = vector.load %arg3[%c0_20, %c0_21] : memref<1x16xf32, #tpu.memory_space<vmem>>, vector<1x16xf32>
    %13 = vector.broadcast %12 : vector<1x16xf32> to vector<128x16xf32>
    %14 = arith.addf %11, %13 : vector<128x16xf32>
    %cst_22 = arith.constant 0.000000e+00 : f32
    %15 = vector.broadcast %cst_22 : f32 to vector<128x16xf32>
    %16 = arith.maximumf %14, %15 : vector<128x16xf32>
    %17 = vector.shape_cast %16 : vector<128x16xf32> to vector<2x8x8x16xf32>
    %c0_23 = arith.constant 0 : index
    %c1_24 = arith.constant 1 : index
    %c1_25 = arith.constant 1 : index
    %c0_26 = arith.constant 0 : index
    %18 = vector.load %arg8[%c0_23, %c1_24, %c1_25, %c0_26] : memref<2x10x10x16xf32, #tpu.memory_space<vmem>>, vector<2x8x8x16xf32>
    tpu.vector_store %arg8[%c0_23, %c1_24, %c1_25, %c0_26], %17 {strides = array<i32>} : memref<2x10x10x16xf32, #tpu.memory_space<vmem>>, vector<2x8x8x16xf32>,
    %cst_27 = arith.constant 0.000000e+00 : f32
    %19 = vector.broadcast %cst_27 : f32 to vector<128x16xf32>
    %c0_28 = arith.constant 0 : index
    %c0_29 = arith.constant 0 : index
    %c0_30 = arith.constant 0 : index
    %c0_31 = arith.constant 0 : index
    %20 = vector.load %arg8[%c0_28, %c0_29, %c0_30, %c0_31] : memref<2x10x10x16xf32, #tpu.memory_space<vmem>>, vector<2x8x8x16xf32>
    %21 = vector.shape_cast %20 : vector<2x8x8x16xf32> to vector<128x16xf32>
    %c0_32 = arith.constant 0 : index
    %c0_33 = arith.constant 0 : index
    %c0_34 = arith.constant 0 : index
    %22 = vector.load %arg4[%c0_32, %c0_33, %c0_34] : memref<9x16x16xf32, #tpu.memory_space<vmem>>, vector<1x16x16xf32>
    %23 = vector.shape_cast %22 : vector<1x16x16xf32> to vector<16x16xf32>
    %cst_35 = arith.constant dense<0.000000e+00> : vector<128x16xf32>
    %24 = tpu.matmul %21, %23, %cst_35 {dimension_numbers = #tpu.dot_dimension_numbers<[1], [0], [0], [1], [0, 0, 1, 1], [], []>} : vector<128x16xf32>, vector<16x16xf32>, vector<128x16xf32> -> vector<128x16xf32>
    %25 = arith.addf %19, %24 : vector<128x16xf32>
    %c0_36 = arith.constant 0 : index
    %c0_37 = arith.constant 0 : index
    %c1_38 = arith.constant 1 : index
    %c0_39 = arith.constant 0 : index
    %26 = vector.load %arg8[%c0_36, %c0_37, %c1_38, %c0_39] : memref<2x10x10x16xf32, #tpu.memory_space<vmem>>, vector<2x8x8x16xf32>
    %27 = vector.shape_cast %26 : vector<2x8x8x16xf32> to vector<128x16xf32>
    %c1_40 = arith.constant 1 : index
    %c0_41 = arith.constant 0 : index
    %c0_42 = arith.constant 0 : index
    %28 = vector.load %arg4[%c1_40, %c0_41, %c0_42] : memref<9x16x16xf32, #tpu.memory_space<vmem>>, vector<1x16x16xf32>
    %29 = vector.shape_cast %28 : vector<1x16x16xf32> to vector<16x16xf32>
    %cst_43 = arith.constant dense<0.000000e+00> : vector<128x16xf32>
    %30 = tpu.matmul %27, %29, %cst_43 {dimension_numbers = #tpu.dot_dimension_numbers<[1], [0], [0], [1], [0, 0, 1, 1], [], []>} : vector<128x16xf32>, vector<16x16xf32>, vector<128x16xf32> -> vector<128x16xf32>
    %31 = arith.addf %25, %30 : vector<128x16xf32>
    %c0_44 = arith.constant 0 : index
    %c0_45 = arith.constant 0 : index
    %c2 = arith.constant 2 : index
    %c0_46 = arith.constant 0 : index
    %32 = vector.load %arg8[%c0_44, %c0_45, %c2, %c0_46] : memref<2x10x10x16xf32, #tpu.memory_space<vmem>>, vector<2x8x8x16xf32>
    %33 = vector.shape_cast %32 : vector<2x8x8x16xf32> to vector<128x16xf32>
    %c2_47 = arith.constant 2 : index
    %c0_48 = arith.constant 0 : index
    %c0_49 = arith.constant 0 : index
    %34 = vector.load %arg4[%c2_47, %c0_48, %c0_49] : memref<9x16x16xf32, #tpu.memory_space<vmem>>, vector<1x16x16xf32>
    %35 = vector.shape_cast %34 : vector<1x16x16xf32> to vector<16x16xf32>
    %cst_50 = arith.constant dense<0.000000e+00> : vector<128x16xf32>
    %36 = tpu.matmul %33, %35, %cst_50 {dimension_numbers = #tpu.dot_dimension_numbers<[1], [0], [0], [1], [0, 0, 1, 1], [], []>} : vector<128x16xf32>, vector<16x16xf32>, vector<128x16xf32> -> vector<128x16xf32>
    %37 = arith.addf %31, %36 : vector<128x16xf32>
    %c0_51 = arith.constant 0 : index
    %c1_52 = arith.constant 1 : index
    %c0_53 = arith.constant 0 : index
    %c0_54 = arith.constant 0 : index
    %38 = vector.load %arg8[%c0_51, %c1_52, %c0_53, %c0_54] : memref<2x10x10x16xf32, #tpu.memory_space<vmem>>, vector<2x8x8x16xf32>
    %39 = vector.shape_cast %38 : vector<2x8x8x16xf32> to vector<128x16xf32>
    %c3 = arith.constant 3 : index
    %c0_55 = arith.constant 0 : index
    %c0_56 = arith.constant 0 : index
    %40 = vector.load %arg4[%c3, %c0_55, %c0_56] : memref<9x16x16xf32, #tpu.memory_space<vmem>>, vector<1x16x16xf32>
    %41 = vector.shape_cast %40 : vector<1x16x16xf32> to vector<16x16xf32>
    %cst_57 = arith.constant dense<0.000000e+00> : vector<128x16xf32>
    %42 = tpu.matmul %39, %41, %cst_57 {dimension_numbers = #tpu.dot_dimension_numbers<[1], [0], [0], [1], [0, 0, 1, 1], [], []>} : vector<128x16xf32>, vector<16x16xf32>, vector<128x16xf32> -> vector<128x16xf32>
    %43 = arith.addf %37, %42 : vector<128x16xf32>
    %c0_58 = arith.constant 0 : index
    %c1_59 = arith.constant 1 : index
    %c1_60 = arith.constant 1 : index
    %c0_61 = arith.constant 0 : index
    %44 = vector.load %arg8[%c0_58, %c1_59, %c1_60, %c0_61] : memref<2x10x10x16xf32, #tpu.memory_space<vmem>>, vector<2x8x8x16xf32>
    %45 = vector.shape_cast %44 : vector<2x8x8x16xf32> to vector<128x16xf32>
    %c4 = arith.constant 4 : index
    %c0_62 = arith.constant 0 : index
    %c0_63 = arith.constant 0 : index
    %46 = vector.load %arg4[%c4, %c0_62, %c0_63] : memref<9x16x16xf32, #tpu.memory_space<vmem>>, vector<1x16x16xf32>
    %47 = vector.shape_cast %46 : vector<1x16x16xf32> to vector<16x16xf32>
    %cst_64 = arith.constant dense<0.000000e+00> : vector<128x16xf32>
    %48 = tpu.matmul %45, %47, %cst_64 {dimension_numbers = #tpu.dot_dimension_numbers<[1], [0], [0], [1], [0, 0, 1, 1], [], []>} : vector<128x16xf32>, vector<16x16xf32>, vector<128x16xf32> -> vector<128x16xf32>
    %49 = arith.addf %43, %48 : vector<128x16xf32>
    %c0_65 = arith.constant 0 : index
    %c1_66 = arith.constant 1 : index
    %c2_67 = arith.constant 2 : index
    %c0_68 = arith.constant 0 : index
    %50 = vector.load %arg8[%c0_65, %c1_66, %c2_67, %c0_68] : memref<2x10x10x16xf32, #tpu.memory_space<vmem>>, vector<2x8x8x16xf32>
    %51 = vector.shape_cast %50 : vector<2x8x8x16xf32> to vector<128x16xf32>
    %c5 = arith.constant 5 : index
    %c0_69 = arith.constant 0 : index
    %c0_70 = arith.constant 0 : index
    %52 = vector.load %arg4[%c5, %c0_69, %c0_70] : memref<9x16x16xf32, #tpu.memory_space<vmem>>, vector<1x16x16xf32>
    %53 = vector.shape_cast %52 : vector<1x16x16xf32> to vector<16x16xf32>
    %cst_71 = arith.constant dense<0.000000e+00> : vector<128x16xf32>
    %54 = tpu.matmul %51, %53, %cst_71 {dimension_numbers = #tpu.dot_dimension_numbers<[1], [0], [0], [1], [0, 0, 1, 1], [], []>} : vector<128x16xf32>, vector<16x16xf32>, vector<128x16xf32> -> vector<128x16xf32>
    %55 = arith.addf %49, %54 : vector<128x16xf32>
    %c0_72 = arith.constant 0 : index
    %c2_73 = arith.constant 2 : index
    %c0_74 = arith.constant 0 : index
    %c0_75 = arith.constant 0 : index
    %56 = vector.load %arg8[%c0_72, %c2_73, %c0_74, %c0_75] : memref<2x10x10x16xf32, #tpu.memory_space<vmem>>, vector<2x8x8x16xf32>
    %57 = vector.shape_cast %56 : vector<2x8x8x16xf32> to vector<128x16xf32>
    %c6 = arith.constant 6 : index
    %c0_76 = arith.constant 0 : index
    %c0_77 = arith.constant 0 : index
    %58 = vector.load %arg4[%c6, %c0_76, %c0_77] : memref<9x16x16xf32, #tpu.memory_space<vmem>>, vector<1x16x16xf32>
    %59 = vector.shape_cast %58 : vector<1x16x16xf32> to vector<16x16xf32>
    %cst_78 = arith.constant dense<0.000000e+00> : vector<128x16xf32>
    %60 = tpu.matmul %57, %59, %cst_78 {dimension_numbers = #tpu.dot_dimension_numbers<[1], [0], [0], [1], [0, 0, 1, 1], [], []>} : vector<128x16xf32>, vector<16x16xf32>, vector<128x16xf32> -> vector<128x16xf32>
    %61 = arith.addf %55, %60 : vector<128x16xf32>
    %c0_79 = arith.constant 0 : index
    %c2_80 = arith.constant 2 : index
    %c1_81 = arith.constant 1 : index
    %c0_82 = arith.constant 0 : index
    %62 = vector.load %arg8[%c0_79, %c2_80, %c1_81, %c0_82] : memref<2x10x10x16xf32, #tpu.memory_space<vmem>>, vector<2x8x8x16xf32>
    %63 = vector.shape_cast %62 : vector<2x8x8x16xf32> to vector<128x16xf32>
    %c7 = arith.constant 7 : index
    %c0_83 = arith.constant 0 : index
    %c0_84 = arith.constant 0 : index
    %64 = vector.load %arg4[%c7, %c0_83, %c0_84] : memref<9x16x16xf32, #tpu.memory_space<vmem>>, vector<1x16x16xf32>
    %65 = vector.shape_cast %64 : vector<1x16x16xf32> to vector<16x16xf32>
    %cst_85 = arith.constant dense<0.000000e+00> : vector<128x16xf32>
    %66 = tpu.matmul %63, %65, %cst_85 {dimension_numbers = #tpu.dot_dimension_numbers<[1], [0], [0], [1], [0, 0, 1, 1], [], []>} : vector<128x16xf32>, vector<16x16xf32>, vector<128x16xf32> -> vector<128x16xf32>
    %67 = arith.addf %61, %66 : vector<128x16xf32>
    %c0_86 = arith.constant 0 : index
    %c2_87 = arith.constant 2 : index
    %c2_88 = arith.constant 2 : index
    %c0_89 = arith.constant 0 : index
    %68 = vector.load %arg8[%c0_86, %c2_87, %c2_88, %c0_89] : memref<2x10x10x16xf32, #tpu.memory_space<vmem>>, vector<2x8x8x16xf32>
    %69 = vector.shape_cast %68 : vector<2x8x8x16xf32> to vector<128x16xf32>
    %c8 = arith.constant 8 : index
    %c0_90 = arith.constant 0 : index
    %c0_91 = arith.constant 0 : index
    %70 = vector.load %arg4[%c8, %c0_90, %c0_91] : memref<9x16x16xf32, #tpu.memory_space<vmem>>, vector<1x16x16xf32>
    %71 = vector.shape_cast %70 : vector<1x16x16xf32> to vector<16x16xf32>
    %cst_92 = arith.constant dense<0.000000e+00> : vector<128x16xf32>
    %72 = tpu.matmul %69, %71, %cst_92 {dimension_numbers = #tpu.dot_dimension_numbers<[1], [0], [0], [1], [0, 0, 1, 1], [], []>} : vector<128x16xf32>, vector<16x16xf32>, vector<128x16xf32> -> vector<128x16xf32>
    %73 = arith.addf %67, %72 : vector<128x16xf32>
    %c0_93 = arith.constant 0 : index
    %c0_94 = arith.constant 0 : index
    %74 = vector.load %arg5[%c0_93, %c0_94] : memref<128x16xf32, #tpu.memory_space<vmem>>, vector<128x16xf32>
    tpu.vector_store %arg5[%c0_93, %c0_94], %73 {strides = array<i32>} : memref<128x16xf32, #tpu.memory_space<vmem>>, vector<128x16xf32>,
    %cst_95 = arith.constant dense<0.000000e+00> : vector<16xf32>
    %75 = vector.multi_reduction <add>, %73, %cst_95 [0] : vector<128x16xf32> to vector<16xf32>
    %76 = vector.shape_cast %75 : vector<16xf32> to vector<1x16xf32>
    %77 = vector.shape_cast %76 : vector<1x16xf32> to vector<1x1x16xf32>
    %c0_96 = arith.constant 0 : index
    %c0_97 = arith.constant 0 : index
    %c0_98 = arith.constant 0 : index
    %78 = vector.load %arg6[%c0_96, %c0_97, %c0_98] : memref<1x1x16xf32, #tpu.memory_space<vmem>>, vector<1x1x16xf32>
    tpu.vector_store %arg6[%c0_96, %c0_97, %c0_98], %77 {strides = array<i32>} : memref<1x1x16xf32, #tpu.memory_space<vmem>>, vector<1x1x16xf32>,
    %79 = arith.mulf %73, %73 : vector<128x16xf32>
    %cst_99 = arith.constant dense<0.000000e+00> : vector<16xf32>
    %80 = vector.multi_reduction <add>, %79, %cst_99 [0] : vector<128x16xf32> to vector<16xf32>
    %81 = vector.shape_cast %80 : vector<16xf32> to vector<1x16xf32>
    %82 = vector.shape_cast %81 : vector<1x16xf32> to vector<1x1x16xf32>
    %c0_100 = arith.constant 0 : index
    %c0_101 = arith.constant 0 : index
    %c0_102 = arith.constant 0 : index
    %83 = vector.load %arg7[%c0_100, %c0_101, %c0_102] : memref<1x1x16xf32, #tpu.memory_space<vmem>>, vector<1x1x16xf32>
    tpu.vector_store %arg7[%c0_100, %c0_101, %c0_102], %82 {strides = array<i32>} : memref<1x1x16xf32, #tpu.memory_space<vmem>>, vector<1x1x16xf32>,
    return
  }
  func.func @transform_0(%arg0: i32) -> (i32, i32) {
    %c0_i32 = arith.constant 0 : i32
    %c0_i32_0 = arith.constant 0 : i32
    return %arg0, %c0_i32 : i32, i32
  }
  func.func @transform_1(%arg0: i32) -> (i32, i32) {
    %c0_i32 = arith.constant 0 : i32
    %c0_i32_0 = arith.constant 0 : i32
    %c0_i32_1 = arith.constant 0 : i32
    return %c0_i32, %c0_i32_0 : i32, i32
  }
  func.func @transform_2(%arg0: i32) -> (i32, i32) {
    %c0_i32 = arith.constant 0 : i32
    %c0_i32_0 = arith.constant 0 : i32
    %c0_i32_1 = arith.constant 0 : i32
    return %c0_i32, %c0_i32_0 : i32, i32
  }
  func.func @transform_3(%arg0: i32) -> (i32, i32, i32) {
    %c0_i32 = arith.constant 0 : i32
    %c0_i32_0 = arith.constant 0 : i32
    %c0_i32_1 = arith.constant 0 : i32
    %c0_i32_2 = arith.constant 0 : i32
    return %c0_i32, %c0_i32_0, %c0_i32_1 : i32, i32, i32
  }
  func.func @transform_4(%arg0: i32) -> (i32, i32) {
    %c0_i32 = arith.constant 0 : i32
    %c0_i32_0 = arith.constant 0 : i32
    return %arg0, %c0_i32 : i32, i32
  }
  func.func @transform_5(%arg0: i32) -> (i32, i32, i32) {
    %c0_i32 = arith.constant 0 : i32
    %c0_i32_0 = arith.constant 0 : i32
    %c0_i32_1 = arith.constant 0 : i32
    return %arg0, %c0_i32, %c0_i32_0 : i32, i32, i32
  }
  func.func @transform_6(%arg0: i32) -> (i32, i32, i32) {
    %c0_i32 = arith.constant 0 : i32
    %c0_i32_0 = arith.constant 0 : i32
    %c0_i32_1 = arith.constant 0 : i32
    return %arg0, %c0_i32, %c0_i32_0 : i32, i32, i32
  }
}

module attributes {stable_mosaic.version = 11 : i64} {
  func.func @kernel(%arg0: i32, %arg1: memref<128x16xf32, #tpu.memory_space<vmem>>, %arg2: memref<128x16xf32, #tpu.memory_space<vmem>>, %arg3: memref<1x16xf32, #tpu.memory_space<vmem>>, %arg4: memref<1x16xf32, #tpu.memory_space<vmem>>, %arg5: memref<16x64xf32, #tpu.memory_space<vmem>>, %arg6: memref<1x16xf32, #tpu.memory_space<vmem>>, %arg7: memref<1x16xf32, #tpu.memory_space<vmem>>, %arg8: memref<16x64xf32, #tpu.memory_space<vmem>>, %arg9: memref<64x4xf32, #tpu.memory_space<vmem>>, %arg10: memref<1x4xf32, #tpu.memory_space<vmem>>, %arg11: memref<4x64xf32, #tpu.memory_space<vmem>>, %arg12: memref<1x64xf32, #tpu.memory_space<vmem>>, %arg13: memref<128x64xf32, #tpu.memory_space<vmem>>) attributes {dimension_semantics = [#tpu.dimension_semantics<parallel>], iteration_bounds = array<i64: 1>, scalar_prefetch = 0 : i64, scratch_operands = 0 : i64, tpu.core_type = #tpu.core_type<tc>, window_params = [{transform_indices = @transform_0, window_bounds = array<i64: 128, 16>}, {transform_indices = @transform_1, window_bounds = array<i64: 128, 16>}, {pipeline_mode = #tpu.pipeline_mode<synchronous>, transform_indices = @transform_2, window_bounds = array<i64: 1, 16>}, {pipeline_mode = #tpu.pipeline_mode<synchronous>, transform_indices = @transform_3, window_bounds = array<i64: 1, 16>}, {pipeline_mode = #tpu.pipeline_mode<synchronous>, transform_indices = @transform_4, window_bounds = array<i64: 16, 64>}, {pipeline_mode = #tpu.pipeline_mode<synchronous>, transform_indices = @transform_5, window_bounds = array<i64: 1, 16>}, {pipeline_mode = #tpu.pipeline_mode<synchronous>, transform_indices = @transform_6, window_bounds = array<i64: 1, 16>}, {pipeline_mode = #tpu.pipeline_mode<synchronous>, transform_indices = @transform_7, window_bounds = array<i64: 16, 64>}, {pipeline_mode = #tpu.pipeline_mode<synchronous>, transform_indices = @transform_8, window_bounds = array<i64: 64, 4>}, {pipeline_mode = #tpu.pipeline_mode<synchronous>, transform_indices = @transform_9, window_bounds = array<i64: 1, 4>}, {pipeline_mode = #tpu.pipeline_mode<synchronous>, transform_indices = @transform_10, window_bounds = array<i64: 4, 64>}, {pipeline_mode = #tpu.pipeline_mode<synchronous>, transform_indices = @transform_11, window_bounds = array<i64: 1, 64>}, {transform_indices = @transform_12, window_bounds = array<i64: 128, 64>}]} {
    %c0 = arith.constant 0 : index
    %c0_0 = arith.constant 0 : index
    %0 = vector.load %arg2[%c0, %c0_0] : memref<128x16xf32, #tpu.memory_space<vmem>>, vector<128x16xf32>
    %c0_1 = arith.constant 0 : index
    %c0_2 = arith.constant 0 : index
    %1 = vector.load %arg3[%c0_1, %c0_2] : memref<1x16xf32, #tpu.memory_space<vmem>>, vector<1x16xf32>
    %2 = vector.broadcast %1 : vector<1x16xf32> to vector<128x16xf32>
    %3 = arith.mulf %0, %2 : vector<128x16xf32>
    %c0_3 = arith.constant 0 : index
    %c0_4 = arith.constant 0 : index
    %4 = vector.load %arg4[%c0_3, %c0_4] : memref<1x16xf32, #tpu.memory_space<vmem>>, vector<1x16xf32>
    %5 = vector.broadcast %4 : vector<1x16xf32> to vector<128x16xf32>
    %6 = arith.addf %3, %5 : vector<128x16xf32>
    %cst = arith.constant 0.000000e+00 : f32
    %7 = vector.broadcast %cst : f32 to vector<128x16xf32>
    %8 = arith.maximumf %6, %7 : vector<128x16xf32>
    %c0_5 = arith.constant 0 : index
    %c0_6 = arith.constant 0 : index
    %9 = vector.load %arg5[%c0_5, %c0_6] : memref<16x64xf32, #tpu.memory_space<vmem>>, vector<16x64xf32>
    %cst_7 = arith.constant dense<0.000000e+00> : vector<128x64xf32>
    %10 = tpu.matmul %8, %9, %cst_7 {dimension_numbers = #tpu.dot_dimension_numbers<[1], [0], [0], [1], [0, 0, 1, 1], [], []>} : vector<128x16xf32>, vector<16x64xf32>, vector<128x64xf32> -> vector<128x64xf32>
    %11 = vector.shape_cast %10 : vector<128x64xf32> to vector<2x64x64xf32>
    %cst_8 = arith.constant dense<0.000000e+00> : vector<2x64xf32>
    %12 = vector.multi_reduction <add>, %11, %cst_8 [1] : vector<2x64x64xf32> to vector<2x64xf32>
    %cst_9 = arith.constant 6.400000e+01 : f32
    %13 = vector.broadcast %cst_9 : f32 to vector<2x64xf32>
    %14 = arith.divf %12, %13 : vector<2x64xf32>
    %c0_10 = arith.constant 0 : index
    %c0_11 = arith.constant 0 : index
    %15 = vector.load %arg9[%c0_10, %c0_11] : memref<64x4xf32, #tpu.memory_space<vmem>>, vector<64x4xf32>
    %cst_12 = arith.constant dense<0.000000e+00> : vector<2x4xf32>
    %16 = tpu.matmul %14, %15, %cst_12 {dimension_numbers = #tpu.dot_dimension_numbers<[1], [0], [0], [1], [0, 0, 1, 1], [], []>} : vector<2x64xf32>, vector<64x4xf32>, vector<2x4xf32> -> vector<2x4xf32>
    %c0_13 = arith.constant 0 : index
    %c0_14 = arith.constant 0 : index
    %17 = vector.load %arg10[%c0_13, %c0_14] : memref<1x4xf32, #tpu.memory_space<vmem>>, vector<1x4xf32>
    %18 = vector.broadcast %17 : vector<1x4xf32> to vector<2x4xf32>
    %19 = arith.addf %16, %18 : vector<2x4xf32>
    %cst_15 = arith.constant 0.000000e+00 : f32
    %20 = vector.broadcast %cst_15 : f32 to vector<2x4xf32>
    %21 = arith.maximumf %19, %20 : vector<2x4xf32>
    %c0_16 = arith.constant 0 : index
    %c0_17 = arith.constant 0 : index
    %22 = vector.load %arg11[%c0_16, %c0_17] : memref<4x64xf32, #tpu.memory_space<vmem>>, vector<4x64xf32>
    %cst_18 = arith.constant dense<0.000000e+00> : vector<2x64xf32>
    %23 = tpu.matmul %21, %22, %cst_18 {dimension_numbers = #tpu.dot_dimension_numbers<[1], [0], [0], [1], [0, 0, 1, 1], [], []>} : vector<2x4xf32>, vector<4x64xf32>, vector<2x64xf32> -> vector<2x64xf32>
    %c0_19 = arith.constant 0 : index
    %c0_20 = arith.constant 0 : index
    %24 = vector.load %arg12[%c0_19, %c0_20] : memref<1x64xf32, #tpu.memory_space<vmem>>, vector<1x64xf32>
    %25 = vector.broadcast %24 : vector<1x64xf32> to vector<2x64xf32>
    %26 = arith.addf %23, %25 : vector<2x64xf32>
    %27 = arith.negf %26 : vector<2x64xf32>
    %28 = math.exp %27 : vector<2x64xf32>
    %cst_21 = arith.constant 1.000000e+00 : f32
    %29 = vector.broadcast %cst_21 : f32 to vector<2x64xf32>
    %30 = arith.addf %29, %28 : vector<2x64xf32>
    %31 = arith.divf %29, %30 : vector<2x64xf32>
    %32 = vector.shape_cast %31 : vector<2x64xf32> to vector<2x1x64xf32>
    %33 = vector.broadcast %32 : vector<2x1x64xf32> to vector<2x64x64xf32>
    %34 = arith.mulf %11, %33 : vector<2x64x64xf32>
    %35 = vector.shape_cast %34 : vector<2x64x64xf32> to vector<128x64xf32>
    %c0_22 = arith.constant 0 : index
    %c0_23 = arith.constant 0 : index
    %36 = vector.load %arg1[%c0_22, %c0_23] : memref<128x16xf32, #tpu.memory_space<vmem>>, vector<128x16xf32>
    %c0_24 = arith.constant 0 : index
    %c0_25 = arith.constant 0 : index
    %37 = vector.load %arg6[%c0_24, %c0_25] : memref<1x16xf32, #tpu.memory_space<vmem>>, vector<1x16xf32>
    %38 = vector.broadcast %37 : vector<1x16xf32> to vector<128x16xf32>
    %39 = arith.mulf %36, %38 : vector<128x16xf32>
    %c0_26 = arith.constant 0 : index
    %c0_27 = arith.constant 0 : index
    %40 = vector.load %arg7[%c0_26, %c0_27] : memref<1x16xf32, #tpu.memory_space<vmem>>, vector<1x16xf32>
    %41 = vector.broadcast %40 : vector<1x16xf32> to vector<128x16xf32>
    %42 = arith.addf %39, %41 : vector<128x16xf32>
    %cst_28 = arith.constant 0.000000e+00 : f32
    %43 = vector.broadcast %cst_28 : f32 to vector<128x16xf32>
    %44 = arith.maximumf %42, %43 : vector<128x16xf32>
    %c0_29 = arith.constant 0 : index
    %c0_30 = arith.constant 0 : index
    %45 = vector.load %arg8[%c0_29, %c0_30] : memref<16x64xf32, #tpu.memory_space<vmem>>, vector<16x64xf32>
    %cst_31 = arith.constant dense<0.000000e+00> : vector<128x64xf32>
    %46 = tpu.matmul %44, %45, %cst_31 {dimension_numbers = #tpu.dot_dimension_numbers<[1], [0], [0], [1], [0, 0, 1, 1], [], []>} : vector<128x16xf32>, vector<16x64xf32>, vector<128x64xf32> -> vector<128x64xf32>
    %47 = arith.addf %35, %46 : vector<128x64xf32>
    %c0_32 = arith.constant 0 : index
    %c0_33 = arith.constant 0 : index
    %48 = vector.load %arg13[%c0_32, %c0_33] : memref<128x64xf32, #tpu.memory_space<vmem>>, vector<128x64xf32>
    tpu.vector_store %arg13[%c0_32, %c0_33], %47 {strides = array<i32>} : memref<128x64xf32, #tpu.memory_space<vmem>>, vector<128x64xf32>,
    return
  }
  func.func @transform_0(%arg0: i32) -> (i32, i32) {
    %c0_i32 = arith.constant 0 : i32
    %c0_i32_0 = arith.constant 0 : i32
    return %arg0, %c0_i32 : i32, i32
  }
  func.func @transform_1(%arg0: i32) -> (i32, i32) {
    %c0_i32 = arith.constant 0 : i32
    %c0_i32_0 = arith.constant 0 : i32
    return %arg0, %c0_i32 : i32, i32
  }
  func.func @transform_2(%arg0: i32) -> (i32, i32) {
    %c0_i32 = arith.constant 0 : i32
    %c0_i32_0 = arith.constant 0 : i32
    %c0_i32_1 = arith.constant 0 : i32
    return %c0_i32, %c0_i32_0 : i32, i32
  }
  func.func @transform_3(%arg0: i32) -> (i32, i32) {
    %c0_i32 = arith.constant 0 : i32
    %c0_i32_0 = arith.constant 0 : i32
    %c0_i32_1 = arith.constant 0 : i32
    return %c0_i32, %c0_i32_0 : i32, i32
  }
  func.func @transform_4(%arg0: i32) -> (i32, i32) {
    %c0_i32 = arith.constant 0 : i32
    %c0_i32_0 = arith.constant 0 : i32
    %c0_i32_1 = arith.constant 0 : i32
    return %c0_i32, %c0_i32_0 : i32, i32
  }
  func.func @transform_5(%arg0: i32) -> (i32, i32) {
    %c0_i32 = arith.constant 0 : i32
    %c0_i32_0 = arith.constant 0 : i32
    %c0_i32_1 = arith.constant 0 : i32
    return %c0_i32, %c0_i32_0 : i32, i32
  }
  func.func @transform_6(%arg0: i32) -> (i32, i32) {
    %c0_i32 = arith.constant 0 : i32
    %c0_i32_0 = arith.constant 0 : i32
    %c0_i32_1 = arith.constant 0 : i32
    return %c0_i32, %c0_i32_0 : i32, i32
  }
  func.func @transform_7(%arg0: i32) -> (i32, i32) {
    %c0_i32 = arith.constant 0 : i32
    %c0_i32_0 = arith.constant 0 : i32
    %c0_i32_1 = arith.constant 0 : i32
    return %c0_i32, %c0_i32_0 : i32, i32
  }
  func.func @transform_8(%arg0: i32) -> (i32, i32) {
    %c0_i32 = arith.constant 0 : i32
    %c0_i32_0 = arith.constant 0 : i32
    %c0_i32_1 = arith.constant 0 : i32
    return %c0_i32, %c0_i32_0 : i32, i32
  }
  func.func @transform_9(%arg0: i32) -> (i32, i32) {
    %c0_i32 = arith.constant 0 : i32
    %c0_i32_0 = arith.constant 0 : i32
    %c0_i32_1 = arith.constant 0 : i32
    return %c0_i32, %c0_i32_0 : i32, i32
  }
  func.func @transform_10(%arg0: i32) -> (i32, i32) {
    %c0_i32 = arith.constant 0 : i32
    %c0_i32_0 = arith.constant 0 : i32
    %c0_i32_1 = arith.constant 0 : i32
    return %c0_i32, %c0_i32_0 : i32, i32
  }
  func.func @transform_11(%arg0: i32) -> (i32, i32) {
    %c0_i32 = arith.constant 0 : i32
    %c0_i32_0 = arith.constant 0 : i32
    %c0_i32_1 = arith.constant 0 : i32
    return %c0_i32, %c0_i32_0 : i32, i32
  }
  func.func @transform_12(%arg0: i32) -> (i32, i32) {
    %c0_i32 = arith.constant 0 : i32
    %c0_i32_0 = arith.constant 0 : i32
    return %arg0, %c0_i32 : i32, i32
  }
}

</mosaic_0001>

<llo_original>
// kernel: se_preact_bottleneck.4
$region0: #{se_preact_bottleneck.4}
  #allocation0 [shape = 'u32[]', space=smem, size = 0x4, offset = 0x4, fixed_abs, tag = 'smem constant byte address 0x4 - core index']
  #allocation1 [shape = 'u32[72,128]{1,0:T(1,128)}', space=vmem, size = 0x9000, scoped, tag = 'internal scratch']
  %s0 = inlined_call_operand.hbm [shape: f32[128,16], index: 0, kind: input, shape index: {}]
  %s1 = inlined_call_operand.vmem [shape: f32[1,1,16], index: 1, kind: output, shape index: {0}]
  %s2 = inlined_call_operand.vmem [shape: f32[1,1,16], index: 2, kind: output, shape index: {1}]
  %3 = xla_tuple %s1, %s2
  %s4 = sld [smem:[#allocation0]]
  $region26: #{se_preact_bottleneck.4} parent=0
    _
  %s6 = ssub.s32 1, %s4
  %s7 = scalar_select 0, %s6, %s4
  $region1: #{se_preact_bottleneck.4} parent=0
    #allocation2 [shape = 'u8[65536]{0}', space=vmem, size = 0x10000, scoped, tag = 'input window, operand 0, single buffered']
    #allocation3 [shape = 's32[1]{0}', space=sflag, size = 0x4, scoped, tag = 'scoped memory for se_preact_bottleneck.4']
    %8 = vsyncpa [#allocation3], 0
    // Predicated region
    $region2: #{se_preact_bottleneck.4} parent=1 // pred_check
      _
    $region3: #{se_preact_bottleneck.4} parent=1 // pred_check_branch
      %10 = sbr.rel (0) target = $region5
    $region4: #{se_preact_bottleneck.4} parent=1 // pred_region
      %12 = vsyncadd [#allocation3], 0
      %s13 = sshll.u32 %s0, 4
      %s14 = int_to_ptr.hbm [resolvable:$true] %s13
      %s15 = sshll.u32 [#allocation2], 4
      %s16 = int_to_ptr.vmem [resolvable:$true] %s15
      %21 = dma.hbm_to_vmem [thread:$0]  %s14, 2048, %s16, [#allocation3], 128, 128, 8
    $region5: #{se_preact_bottleneck.4} parent=1 // pred_fallthru
      _
    // Predicated region
    $region6: #{se_preact_bottleneck.4} parent=1 // pred_check
      _
    $region7: #{se_preact_bottleneck.4} parent=1 // pred_check_branch
      %23 = sbr.rel (0) target = $region9
    $region8: #{se_preact_bottleneck.4} parent=1 // pred_region
      %25 = dma.done [#allocation3], 2048
    $region9: #{se_preact_bottleneck.4} parent=1 // pred_fallthru
      _
    %v26 = vld [vmem:[#allocation2] sm:$0xff]
    %v27 = vld [vmem:[#allocation2 + $0x8] sm:$0xff]
    %v28 = vld [vmem:[#allocation2 + $0x10] sm:$0xff]
    %v29 = vld [vmem:[#allocation2 + $0x18] sm:$0xff]
    %v30 = vld [vmem:[#allocation2 + $0x20] sm:$0xff]
    %v31 = vld [vmem:[#allocation2 + $0x28] sm:$0xff]
    %v32 = vld [vmem:[#allocation2 + $0x30] sm:$0xff]
    %v33 = vld [vmem:[#allocation2 + $0x38] sm:$0xff]
    %v34 = vld [vmem:[#allocation2 + $0x40] sm:$0xff]
    %v35 = vld [vmem:[#allocation2 + $0x48] sm:$0xff]
    %v36 = vld [vmem:[#allocation2 + $0x50] sm:$0xff]
    %v37 = vld [vmem:[#allocation2 + $0x58] sm:$0xff]
    %v38 = vld [vmem:[#allocation2 + $0x60] sm:$0xff]
    %v39 = vld [vmem:[#allocation2 + $0x68] sm:$0xff]
    %v40 = vld [vmem:[#allocation2 + $0x70] sm:$0xff]
    %v41 = vld [vmem:[#allocation2 + $0x78] sm:$0xff]
    %vm42 = vcmask 130048
    %v43 = vsel %vm42, %v26, 0.0
    %v44 = vsel %vm42, %v27, 0.0
    %v45 = vadd.f32 %v43, %v44
    %v46 = vsel %vm42, %v28, 0.0
    %v47 = vadd.f32 %v45, %v46
    %v48 = vsel %vm42, %v29, 0.0
    %v49 = vadd.f32 %v47, %v48
    %v50 = vsel %vm42, %v30, 0.0
    %v51 = vadd.f32 %v49, %v50
    %v52 = vsel %vm42, %v31, 0.0
    %v53 = vadd.f32 %v51, %v52
    %v54 = vsel %vm42, %v32, 0.0
    %v55 = vadd.f32 %v53, %v54
    %v56 = vsel %vm42, %v33, 0.0
    %v57 = vadd.f32 %v55, %v56
    %v58 = vsel %vm42, %v34, 0.0
    %v59 = vadd.f32 %v57, %v58
    %v60 = vsel %vm42, %v35, 0.0
    %v61 = vadd.f32 %v59, %v60
    %v62 = vsel %vm42, %v36, 0.0
    %v63 = vadd.f32 %v61, %v62
    %v64 = vsel %vm42, %v37, 0.0
    %v65 = vadd.f32 %v63, %v64
    %v66 = vsel %vm42, %v38, 0.0
    %v67 = vadd.f32 %v65, %v66
    %v68 = vsel %vm42, %v39, 0.0
    %v69 = vadd.f32 %v67, %v68
    %v70 = vsel %vm42, %v40, 0.0
    %v71 = vadd.f32 %v69, %v70
    %v72 = vsel %vm42, %v41, 0.0
    %v73 = vadd.f32 %v71, %v72
    %v74 = vrot.slane %v73, 4
    %v75 = vadd.f32 %v73, %v74
    %v76 = vrot.slane %v75, 2
    %v77 = vadd.f32 %v75, %v76
    %v78 = vrot.slane %v77, 1
    %v79 = vadd.f32 %v77, %v78
    %vm80 = vcmask 122880
    %81 = vst.msk [vmem:[%s1] sm:$0x1] %vm80, %v79
    %v82 = vmul.f32 %v26, %v26
    %v83 = vmul.f32 %v27, %v27
    %v84 = vmul.f32 %v28, %v28
    %v85 = vmul.f32 %v29, %v29
    %v86 = vmul.f32 %v30, %v30
    %v87 = vmul.f32 %v31, %v31
    %v88 = vmul.f32 %v32, %v32
    %v89 = vmul.f32 %v33, %v33
    %v90 = vmul.f32 %v34, %v34
    %v91 = vmul.f32 %v35, %v35
    %v92 = vmul.f32 %v36, %v36
    %v93 = vmul.f32 %v37, %v37
    %v94 = vmul.f32 %v38, %v38
    %v95 = vmul.f32 %v39, %v39
    %v96 = vmul.f32 %v40, %v40
    %v97 = vmul.f32 %v41, %v41
    %v98 = vsel %vm42, %v82, 0.0
    %v99 = vsel %vm42, %v83, 0.0
    %v100 = vadd.f32 %v98, %v99
    %v101 = vsel %vm42, %v84, 0.0
    %v102 = vadd.f32 %v100, %v101
    %v103 = vsel %vm42, %v85, 0.0
    %v104 = vadd.f32 %v102, %v103
    %v105 = vsel %vm42, %v86, 0.0
    %v106 = vadd.f32 %v104, %v105
    %v107 = vsel %vm42, %v87, 0.0
    %v108 = vadd.f32 %v106, %v107
    %v109 = vsel %vm42, %v88, 0.0
    %v110 = vadd.f32 %v108, %v109
    %v111 = vsel %vm42, %v89, 0.0
    %v112 = vadd.f32 %v110, %v111
    %v113 = vsel %vm42, %v90, 0.0
    %v114 = vadd.f32 %v112, %v113
    %v115 = vsel %vm42, %v91, 0.0
    %v116 = vadd.f32 %v114, %v115
    %v117 = vsel %vm42, %v92, 0.0
    %v118 = vadd.f32 %v116, %v117
    %v119 = vsel %vm42, %v93, 0.0
    %v120 = vadd.f32 %v118, %v119
    %v121 = vsel %vm42, %v94, 0.0
    %v122 = vadd.f32 %v120, %v121
    %v123 = vsel %vm42, %v95, 0.0
    %v124 = vadd.f32 %v122, %v123
    %v125 = vsel %vm42, %v96, 0.0
    %v126 = vadd.f32 %v124, %v125
    %v127 = vsel %vm42, %v97, 0.0
    %v128 = vadd.f32 %v126, %v127
    %v129 = vrot.slane %v128, 4
    %v130 = vadd.f32 %v128, %v129
    %v131 = vrot.slane %v130, 2
    %v132 = vadd.f32 %v130, %v131
    %v133 = vrot.slane %v132, 1
    %v134 = vadd.f32 %v132, %v133
    %135 = vst.msk [vmem:[%s2] sm:$0x1] %vm80, %v134
    // Predicated region
    $region10: #{se_preact_bottleneck.4} parent=1 // pred_check
      _
    $region11: #{se_preact_bottleneck.4} parent=1 // pred_check_branch
      %137 = sbr.rel (0) target = $region13
    $region12: #{se_preact_bottleneck.4} parent=1 // pred_region
      _
    $region13: #{se_preact_bottleneck.4} parent=1 // pred_fallthru
      _
    // Predicated region
    $region14: #{se_preact_bottleneck.4} parent=1 // pred_check
      _
    $region15: #{se_preact_bottleneck.4} parent=1 // pred_check_branch
      %139 = sbr.rel (0) target = $region17
    $region16: #{se_preact_bottleneck.4} parent=1 // pred_region
      _
    $region17: #{se_preact_bottleneck.4} parent=1 // pred_fallthru
      _
    // Predicated region
    $region18: #{se_preact_bottleneck.4} parent=1 // pred_check
      _
    $region19: #{se_preact_bottleneck.4} parent=1 // pred_check_branch
      %141 = sbr.rel (0) target = $region21
    $region20: #{se_preact_bottleneck.4} parent=1 // pred_region
      _
    $region21: #{se_preact_bottleneck.4} parent=1 // pred_fallthru
      _
    // Predicated region
    $region22: #{se_preact_bottleneck.4} parent=1 // pred_check
      _
    $region23: #{se_preact_bottleneck.4} parent=1 // pred_check_branch
      %143 = sbr.rel (0) target = $region25
    $region24: #{se_preact_bottleneck.4} parent=1 // pred_region
      _
    $region25: #{se_preact_bottleneck.4} parent=1 // pred_fallthru
      _
    %144 = vsyncpa [#allocation3], 1

// kernel: se_preact_bottleneck.5
$region0: #{se_preact_bottleneck.5}
  #allocation0 [shape = 'u32[]', space=smem, size = 0x4, offset = 0x4, fixed_abs, tag = 'smem constant byte address 0x4 - core index']
  #allocation1 [shape = 'u32[72,128]{1,0:T(1,128)}', space=vmem, size = 0x9000, scoped, tag = 'internal scratch']
  %s0 = inlined_call_operand.hbm [shape: f32[128,16], index: 0, kind: input, shape index: {}]
  %s1 = inlined_call_operand.vmem [shape: f32[1,16], index: 1, kind: input, shape index: {}]
  %s2 = inlined_call_operand.vmem [shape: f32[1,16], index: 2, kind: input, shape index: {}]
  %s3 = inlined_call_operand.hbm [shape: f32[16,16], index: 3, kind: input, shape index: {}]
  %s4 = inlined_call_operand.vmem [shape: f32[128,16], index: 4, kind: output, shape index: {0}]
  %s5 = inlined_call_operand.vmem [shape: f32[1,1,16], index: 5, kind: output, shape index: {1}]
  %s6 = inlined_call_operand.vmem [shape: f32[1,1,16], index: 6, kind: output, shape index: {2}]
  %7 = xla_tuple %s4, %s5, %s6
  %s8 = sld [smem:[#allocation0]]
  $region50: #{se_preact_bottleneck.5} parent=0
    _
  %s10 = ssub.s32 1, %s8
  %s11 = scalar_select 0, %s10, %s8
  $region1: #{se_preact_bottleneck.5} parent=0
    #allocation2 [shape = 'u8[65536]{0}', space=vmem, size = 0x10000, scoped, tag = 'input window, operand 0, single buffered']
    #allocation3 [shape = 's32[1]{0}', space=sflag, size = 0x4, scoped, tag = 'scoped memory for se_preact_bottleneck.5']
    #allocation4 [shape = 'u8[8192]{0}', space=vmem, size = 0x2000, scoped, tag = 'input window, operand 3, single buffered']
    #allocation5 [shape = 's32[1]{0}', space=sflag, size = 0x4, scoped, tag = 'scoped memory for se_preact_bottleneck.5']
    %12 = vsyncpa [#allocation3], 0
    %13 = vsyncpa [#allocation5], 0
    // Predicated region
    $region2: #{se_preact_bottleneck.5} parent=1 // pred_check
      _
    $region3: #{se_preact_bottleneck.5} parent=1 // pred_check_branch
      %15 = sbr.rel (0) target = $region5
    $region4: #{se_preact_bottleneck.5} parent=1 // pred_region
      %17 = vsyncadd [#allocation3], 0
      %s18 = sshll.u32 %s0, 4
      %s19 = int_to_ptr.hbm [resolvable:$true] %s18
      %s20 = sshll.u32 [#allocation2], 4
      %s21 = int_to_ptr.vmem [resolvable:$true] %s20
      %26 = dma.hbm_to_vmem [thread:$0]  %s19, 2048, %s21, [#allocation3], 128, 128, 8
    $region5: #{se_preact_bottleneck.5} parent=1 // pred_fallthru
      _
    // Predicated region
    $region6: #{se_preact_bottleneck.5} parent=1 // pred_check
      _
    $region7: #{se_preact_bottleneck.5} parent=1 // pred_check_branch
      %28 = sbr.rel (0) target = $region9
    $region8: #{se_preact_bottleneck.5} parent=1 // pred_region
      _
    $region9: #{se_preact_bottleneck.5} parent=1 // pred_fallthru
      _
    // Predicated region
    $region10: #{se_preact_bottleneck.5} parent=1 // pred_check
      _
    $region11: #{se_preact_bottleneck.5} parent=1 // pred_check_branch
      %30 = sbr.rel (0) target = $region13
    $region12: #{se_preact_bottleneck.5} parent=1 // pred_region
      _
    $region13: #{se_preact_bottleneck.5} parent=1 // pred_fallthru
      _
    // Predicated region
    $region14: #{se_preact_bottleneck.5} parent=1 // pred_check
      _
    $region15: #{se_preact_bottleneck.5} parent=1 // pred_check_branch
      %32 = sbr.rel (0) target = $region17
    $region16: #{se_preact_bottleneck.5} parent=1 // pred_region
      %34 = vsyncadd [#allocation5], 0
      %s35 = sshll.u32 %s3, 4
      %s36 = int_to_ptr.hbm [resolvable:$true] %s35
      %s37 = sshll.u32 [#allocation4], 4
      %s38 = int_to_ptr.vmem [resolvable:$true] %s37
      %43 = dma.hbm_to_vmem [thread:$0]  %s36, 256, %s38, [#allocation5], 128, 128, 8
    $region17: #{se_preact_bottleneck.5} parent=1 // pred_fallthru
      _
    // Predicated region
    $region18: #{se_preact_bottleneck.5} parent=1 // pred_check
      _
    $region19: #{se_preact_bottleneck.5} parent=1 // pred_check_branch
      %45 = sbr.rel (0) target = $region21
    $region20: #{se_preact_bottleneck.5} parent=1 // pred_region
      %47 = dma.done [#allocation3], 2048
    $region21: #{se_preact_bottleneck.5} parent=1 // pred_fallthru
      _
    // Predicated region
    $region22: #{se_preact_bottleneck.5} parent=1 // pred_check
      _
    $region23: #{se_preact_bottleneck.5} parent=1 // pred_check_branch
      %49 = sbr.rel (0) target = $region25
    $region24: #{se_preact_bottleneck.5} parent=1 // pred_region
      %51 = dma.done [#allocation5], 256
    $region25: #{se_preact_bottleneck.5} parent=1 // pred_fallthru
      _
    %v52 = vld [vmem:[#allocation2] sm:$0xff]
    %v53 = vld [vmem:[#allocation2 + $0x8] sm:$0xff]
    %v54 = vld [vmem:[#allocation2 + $0x10] sm:$0xff]
    %v55 = vld [vmem:[#allocation2 + $0x18] sm:$0xff]
    %v56 = vld [vmem:[#allocation2 + $0x20] sm:$0xff]
    %v57 = vld [vmem:[#allocation2 + $0x28] sm:$0xff]
    %v58 = vld [vmem:[#allocation2 + $0x30] sm:$0xff]
    %v59 = vld [vmem:[#allocation2 + $0x38] sm:$0xff]
    %v60 = vld [vmem:[#allocation2 + $0x40] sm:$0xff]
    %v61 = vld [vmem:[#allocation2 + $0x48] sm:$0xff]
    %v62 = vld [vmem:[#allocation2 + $0x50] sm:$0xff]
    %v63 = vld [vmem:[#allocation2 + $0x58] sm:$0xff]
    %v64 = vld [vmem:[#allocation2 + $0x60] sm:$0xff]
    %v65 = vld [vmem:[#allocation2 + $0x68] sm:$0xff]
    %v66 = vld [vmem:[#allocation2 + $0x70] sm:$0xff]
    %v67 = vld [vmem:[#allocation2 + $0x78] sm:$0xff]
    %v68 = vld [vmem:[%s1] sm:$0x1]
    %v70 = vperm.slane %v68, 0
    %v72 = vmul.f32 %v52, %v70
    %v73 = vmul.f32 %v53, %v70
    %v74 = vmul.f32 %v54, %v70
    %v75 = vmul.f32 %v55, %v70
    %v76 = vmul.f32 %v56, %v70
    %v77 = vmul.f32 %v57, %v70
    %v78 = vmul.f32 %v58, %v70
    %v79 = vmul.f32 %v59, %v70
    %v80 = vmul.f32 %v60, %v70
    %v81 = vmul.f32 %v61, %v70
    %v82 = vmul.f32 %v62, %v70
    %v83 = vmul.f32 %v63, %v70
    %v84 = vmul.f32 %v64, %v70
    %v85 = vmul.f32 %v65, %v70
    %v86 = vmul.f32 %v66, %v70
    %v87 = vmul.f32 %v67, %v70
    %v88 = vld [vmem:[%s2] sm:$0x1]
    %v90 = vperm.slane %v88, 0
    %v92 = vadd.f32 %v72, %v90
    %v93 = vadd.f32 %v73, %v90
    %v94 = vadd.f32 %v74, %v90
    %v95 = vadd.f32 %v75, %v90
    %v96 = vadd.f32 %v76, %v90
    %v97 = vadd.f32 %v77, %v90
    %v98 = vadd.f32 %v78, %v90
    %v99 = vadd.f32 %v79, %v90
    %v100 = vadd.f32 %v80, %v90
    %v101 = vadd.f32 %v81, %v90
    %v102 = vadd.f32 %v82, %v90
    %v103 = vadd.f32 %v83, %v90
    %v104 = vadd.f32 %v84, %v90
    %v105 = vadd.f32 %v85, %v90
    %v106 = vadd.f32 %v86, %v90
    %v107 = vadd.f32 %v87, %v90
    %v108 = vmax.f32 %v92, 0.0
    %v109 = vmax.f32 %v93, 0.0
    %v110 = vmax.f32 %v94, 0.0
    %v111 = vmax.f32 %v95, 0.0
    %v112 = vmax.f32 %v96, 0.0
    %v113 = vmax.f32 %v97, 0.0
    %v114 = vmax.f32 %v98, 0.0
    %v115 = vmax.f32 %v99, 0.0
    %v116 = vmax.f32 %v100, 0.0
    %v117 = vmax.f32 %v101, 0.0
    %v118 = vmax.f32 %v102, 0.0
    %v119 = vmax.f32 %v103, 0.0
    %v120 = vmax.f32 %v104, 0.0
    %v121 = vmax.f32 %v105, 0.0
    %v122 = vmax.f32 %v106, 0.0
    %v123 = vmax.f32 %v107, 0.0
    %v124 = vld [vmem:[#allocation4] sm:$0xff]
    %v125 = vld [vmem:[#allocation4 + $0x8] sm:$0xff]
    %vm126 = vcmask 130048
    %v128 = vsel %vm126, %v108, 0
    %v131 = vsel %vm126, %v109, 0
    %v134 = vsel %vm126, %v110, 0
    %v137 = vsel %vm126, %v111, 0
    %v140 = vsel %vm126, %v112, 0
    %v143 = vsel %vm126, %v113, 0
    %v146 = vsel %vm126, %v114, 0
    %v149 = vsel %vm126, %v115, 0
    %v152 = vsel %vm126, %v116, 0
    %v155 = vsel %vm126, %v117, 0
    %v158 = vsel %vm126, %v118, 0
    %v161 = vsel %vm126, %v119, 0
    %v164 = vsel %vm126, %v120, 0
    %v167 = vsel %vm126, %v121, 0
    %v170 = vsel %vm126, %v122, 0
    %v173 = vsel %vm126, %v123, 0
    %175 = vmatpush.msra.mxu0 0.0
    %176 = vmatpush.msra.mxu0 0.0
    %177 = vmatpush.msra.mxu0 0.0
    %178 = vmatpush.msra.mxu0 0.0
    %179 = vmatpush.msra.mxu0 0.0
    %180 = vmatpush.msra.mxu0 0.0
    %181 = vmatpush.msra.mxu0 0.0
    %182 = vmatpush.msra.mxu0 0.0
    %183 = vmatpush.msra.mxu0 0.0
    %184 = vmatpush.msra.mxu0 0.0
    %185 = vmatpush.msra.mxu0 0.0
    %186 = vmatpush.msra.mxu0 0.0
    %187 = vmatpush.msra.mxu0 0.0
    %188 = vmatpush.msra.mxu0 0.0
    %189 = vmatpush.msra.mxu0 %v125
    %190 = vmatpush.msra.mxu0 %v124
    %191 = vmatmul.f32.gmra.mxu0 %v128
    %v192 = vpop.f32.mrf.mxu0
    %v193 = vadd.f32 0.0, %v192
    %194 = vmatmul.f32.gmra.mxu0 %v131
    %v195 = vpop.f32.mrf.mxu0
    %v196 = vadd.f32 0.0, %v195
    %197 = vmatmul.f32.gmra.mxu0 %v134
    %v198 = vpop.f32.mrf.mxu0
    %v199 = vadd.f32 0.0, %v198
    %200 = vmatmul.f32.gmra.mxu0 %v137
    %v201 = vpop.f32.mrf.mxu0
    %v202 = vadd.f32 0.0, %v201
    %203 = vmatmul.f32.gmra.mxu0 %v140
    %v204 = vpop.f32.mrf.mxu0
    %v205 = vadd.f32 0.0, %v204
    %206 = vmatmul.f32.gmra.mxu0 %v143
    %v207 = vpop.f32.mrf.mxu0
    %v208 = vadd.f32 0.0, %v207
    %209 = vmatmul.f32.gmra.mxu0 %v146
    %v210 = vpop.f32.mrf.mxu0
    %v211 = vadd.f32 0.0, %v210
    %212 = vmatmul.f32.gmra.mxu0 %v149
    %v213 = vpop.f32.mrf.mxu0
    %v214 = vadd.f32 0.0, %v213
    %215 = vmatmul.f32.gmra.mxu0 %v152
    %v216 = vpop.f32.mrf.mxu0
    %v217 = vadd.f32 0.0, %v216
    %218 = vmatmul.f32.gmra.mxu0 %v155
    %v219 = vpop.f32.mrf.mxu0
    %v220 = vadd.f32 0.0, %v219
    %221 = vmatmul.f32.gmra.mxu0 %v158
    %v222 = vpop.f32.mrf.mxu0
    %v223 = vadd.f32 0.0, %v222
    %224 = vmatmul.f32.gmra.mxu0 %v161
    %v225 = vpop.f32.mrf.mxu0
    %v226 = vadd.f32 0.0, %v225
    %227 = vmatmul.f32.gmra.mxu0 %v164
    %v228 = vpop.f32.mrf.mxu0
    %v229 = vadd.f32 0.0, %v228
    %230 = vmatmul.f32.gmra.mxu0 %v167
    %v231 = vpop.f32.mrf.mxu0
    %v232 = vadd.f32 0.0, %v231
    %233 = vmatmul.f32.gmra.mxu0 %v170
    %v234 = vpop.f32.mrf.mxu0
    %v235 = vadd.f32 0.0, %v234
    %236 = vmatmul.f32.gmra.mxu0 %v173
    %v237 = vpop.f32.mrf.mxu0
    %v238 = vadd.f32 0.0, %v237
    %239 = vdwg.mxu0
    %240 = vst.msk [vmem:[%s4] sm:$0xff] %vm126, %v193
    %241 = vst.msk [vmem:[%s4 + $0x8] sm:$0xff] %vm126, %v196
    %242 = vst.msk [vmem:[%s4 + $0x10] sm:$0xff] %vm126, %v199
    %243 = vst.msk [vmem:[%s4 + $0x18] sm:$0xff] %vm126, %v202
    %244 = vst.msk [vmem:[%s4 + $0x20] sm:$0xff] %vm126, %v205
    %245 = vst.msk [vmem:[%s4 + $0x28] sm:$0xff] %vm126, %v208
    %246 = vst.msk [vmem:[%s4 + $0x30] sm:$0xff] %vm126, %v211
    %247 = vst.msk [vmem:[%s4 + $0x38] sm:$0xff] %vm126, %v214
    %248 = vst.msk [vmem:[%s4 + $0x40] sm:$0xff] %vm126, %v217
    %249 = vst.msk [vmem:[%s4 + $0x48] sm:$0xff] %vm126, %v220
    %250 = vst.msk [vmem:[%s4 + $0x50] sm:$0xff] %vm126, %v223
    %251 = vst.msk [vmem:[%s4 + $0x58] sm:$0xff] %vm126, %v226
    %252 = vst.msk [vmem:[%s4 + $0x60] sm:$0xff] %vm126, %v229
    %253 = vst.msk [vmem:[%s4 + $0x68] sm:$0xff] %vm126, %v232
    %254 = vst.msk [vmem:[%s4 + $0x70] sm:$0xff] %vm126, %v235
    %255 = vst.msk [vmem:[%s4 + $0x78] sm:$0xff] %vm126, %v238
    %v256 = vsel %vm126, %v193, 0.0
    %v257 = vsel %vm126, %v196, 0.0
    %v258 = vadd.f32 %v256, %v257
    %v259 = vsel %vm126, %v199, 0.0
    %v260 = vadd.f32 %v258, %v259
    %v261 = vsel %vm126, %v202, 0.0
    %v262 = vadd.f32 %v260, %v261
    %v263 = vsel %vm126, %v205, 0.0
    %v264 = vadd.f32 %v262, %v263
    %v265 = vsel %vm126, %v208, 0.0
    %v266 = vadd.f32 %v264, %v265
    %v267 = vsel %vm126, %v211, 0.0
    %v268 = vadd.f32 %v266, %v267
    %v269 = vsel %vm126, %v214, 0.0
    %v270 = vadd.f32 %v268, %v269
    %v271 = vsel %vm126, %v217, 0.0
    %v272 = vadd.f32 %v270, %v271
    %v273 = vsel %vm126, %v220, 0.0
    %v274 = vadd.f32 %v272, %v273
    %v275 = vsel %vm126, %v223, 0.0
    %v276 = vadd.f32 %v274, %v275
    %v277 = vsel %vm126, %v226, 0.0
    %v278 = vadd.f32 %v276, %v277
    %v279 = vsel %vm126, %v229, 0.0
    %v280 = vadd.f32 %v278, %v279
    %v281 = vsel %vm126, %v232, 0.0
    %v282 = vadd.f32 %v280, %v281
    %v283 = vsel %vm126, %v235, 0.0
    %v284 = vadd.f32 %v282, %v283
    %v285 = vsel %vm126, %v238, 0.0
    %v286 = vadd.f32 %v284, %v285
    %v287 = vrot.slane %v286, 4
    %v288 = vadd.f32 %v286, %v287
    %v289 = vrot.slane %v288, 2
    %v290 = vadd.f32 %v288, %v289
    %v291 = vrot.slane %v290, 1
    %v292 = vadd.f32 %v290, %v291
    %vm293 = vcmask 122880
    %294 = vst.msk [vmem:[%s5] sm:$0x1] %vm293, %v292
    %v295 = vmul.f32 %v193, %v193
    %v296 = vmul.f32 %v196, %v196
    %v297 = vmul.f32 %v199, %v199
    %v298 = vmul.f32 %v202, %v202
    %v299 = vmul.f32 %v205, %v205
    %v300 = vmul.f32 %v208, %v208
    %v301 = vmul.f32 %v211, %v211
    %v302 = vmul.f32 %v214, %v214
    %v303 = vmul.f32 %v217, %v217
    %v304 = vmul.f32 %v220, %v220
    %v305 = vmul.f32 %v223, %v223
    %v306 = vmul.f32 %v226, %v226
    %v307 = vmul.f32 %v229, %v229
    %v308 = vmul.f32 %v232, %v232
    %v309 = vmul.f32 %v235, %v235
    %v310 = vmul.f32 %v238, %v238
    %v311 = vsel %vm126, %v295, 0.0
    %v312 = vsel %vm126, %v296, 0.0
    %v313 = vadd.f32 %v311, %v312
    %v314 = vsel %vm126, %v297, 0.0
    %v315 = vadd.f32 %v313, %v314
    %v316 = vsel %vm126, %v298, 0.0
    %v317 = vadd.f32 %v315, %v316
    %v318 = vsel %vm126, %v299, 0.0
    %v319 = vadd.f32 %v317, %v318
    %v320 = vsel %vm126, %v300, 0.0
    %v321 = vadd.f32 %v319, %v320
    %v322 = vsel %vm126, %v301, 0.0
    %v323 = vadd.f32 %v321, %v322
    %v324 = vsel %vm126, %v302, 0.0
    %v325 = vadd.f32 %v323, %v324
    %v326 = vsel %vm126, %v303, 0.0
    %v327 = vadd.f32 %v325, %v326
    %v328 = vsel %vm126, %v304, 0.0
    %v329 = vadd.f32 %v327, %v328
    %v330 = vsel %vm126, %v305, 0.0
    %v331 = vadd.f32 %v329, %v330
    %v332 = vsel %vm126, %v306, 0.0
    %v333 = vadd.f32 %v331, %v332
    %v334 = vsel %vm126, %v307, 0.0
    %v335 = vadd.f32 %v333, %v334
    %v336 = vsel %vm126, %v308, 0.0
    %v337 = vadd.f32 %v335, %v336
    %v338 = vsel %vm126, %v309, 0.0
    %v339 = vadd.f32 %v337, %v338
    %v340 = vsel %vm126, %v310, 0.0
    %v341 = vadd.f32 %v339, %v340
    %v342 = vrot.slane %v341, 4
    %v343 = vadd.f32 %v341, %v342
    %v344 = vrot.slane %v343, 2
    %v345 = vadd.f32 %v343, %v344
    %v346 = vrot.slane %v345, 1
    %v347 = vadd.f32 %v345, %v346
    %348 = vst.msk [vmem:[%s6] sm:$0x1] %vm293, %v347
    // Predicated region
    $region26: #{se_preact_bottleneck.5} parent=1 // pred_check
      _
    $region27: #{se_preact_bottleneck.5} parent=1 // pred_check_branch
      %350 = sbr.rel (0) target = $region29
    $region28: #{se_preact_bottleneck.5} parent=1 // pred_region
      _
    $region29: #{se_preact_bottleneck.5} parent=1 // pred_fallthru
      _
    // Predicated region
    $region30: #{se_preact_bottleneck.5} parent=1 // pred_check
      _
    $region31: #{se_preact_bottleneck.5} parent=1 // pred_check_branch
      %352 = sbr.rel (0) target = $region33
    $region32: #{se_preact_bottleneck.5} parent=1 // pred_region
      _
    $region33: #{se_preact_bottleneck.5} parent=1 // pred_fallthru
      _
    // Predicated region
    $region34: #{se_preact_bottleneck.5} parent=1 // pred_check
      _
    $region35: #{se_preact_bottleneck.5} parent=1 // pred_check_branch
      %354 = sbr.rel (0) target = $region37
    $region36: #{se_preact_bottleneck.5} parent=1 // pred_region
      _
    $region37: #{se_preact_bottleneck.5} parent=1 // pred_fallthru
      _
    // Predicated region
    $region38: #{se_preact_bottleneck.5} parent=1 // pred_check
      _
    $region39: #{se_preact_bottleneck.5} parent=1 // pred_check_branch
      %356 = sbr.rel (0) target = $region41
    $region40: #{se_preact_bottleneck.5} parent=1 // pred_region
      _
    $region41: #{se_preact_bottleneck.5} parent=1 // pred_fallthru
      _
    // Predicated region
    $region42: #{se_preact_bottleneck.5} parent=1 // pred_check
      _
    $region43: #{se_preact_bottleneck.5} parent=1 // pred_check_branch
      %358 = sbr.rel (0) target = $region45
    $region44: #{se_preact_bottleneck.5} parent=1 // pred_region
      _
    $region45: #{se_preact_bottleneck.5} parent=1 // pred_fallthru
      _
    // Predicated region
    $region46: #{se_preact_bottleneck.5} parent=1 // pred_check
      _
    $region47: #{se_preact_bottleneck.5} parent=1 // pred_check_branch
      %360 = sbr.rel (0) target = $region49
    $region48: #{se_preact_bottleneck.5} parent=1 // pred_region
      _
    $region49: #{se_preact_bottleneck.5} parent=1 // pred_fallthru
      _
    %361 = vsyncpa [#allocation3], 1
    %362 = vsyncpa [#allocation5], 1

// kernel: se_preact_bottleneck.7
$region0: #{se_preact_bottleneck.7}
  #allocation0 [shape = 'u32[]', space=smem, size = 0x4, offset = 0x4, fixed_abs, tag = 'smem constant byte address 0x4 - core index']
  #allocation1 [shape = 'u32[72,128]{1,0:T(1,128)}', space=vmem, size = 0x9000, scoped, tag = 'internal scratch']
  %s0 = inlined_call_operand.vmem [shape: f32[128,16], index: 0, kind: input, shape index: {}]
  %s1 = inlined_call_operand.vmem [shape: f32[128,16], index: 1, kind: input, shape index: {}]
  %s2 = inlined_call_operand.vmem [shape: f32[1,16], index: 2, kind: input, shape index: {}]
  %s3 = inlined_call_operand.vmem [shape: f32[1,16], index: 3, kind: input, shape index: {}]
  %s4 = inlined_call_operand.vmem [shape: f32[16,64], index: 4, kind: input, shape index: {}]
  %s5 = inlined_call_operand.vmem [shape: f32[1,16], index: 5, kind: input, shape index: {}]
  %s6 = inlined_call_operand.vmem [shape: f32[1,16], index: 6, kind: input, shape index: {}]
  %s7 = inlined_call_operand.vmem [shape: f32[16,64], index: 7, kind: input, shape index: {}]
  %s8 = inlined_call_operand.vmem [shape: f32[64,4], index: 8, kind: input, shape index: {}]
  %s9 = inlined_call_operand.vmem [shape: f32[1,4], index: 9, kind: input, shape index: {}]
  %s10 = inlined_call_operand.vmem [shape: f32[4,64], index: 10, kind: input, shape index: {}]
  %s11 = inlined_call_operand.vmem [shape: f32[1,64], index: 11, kind: input, shape index: {}]
  %s12 = inlined_call_operand.hbm [shape: f32[128,64], index: 12, kind: output, shape index: {}]
  %s13 = sld [smem:[#allocation0]]
  $region58: #{se_preact_bottleneck.7} parent=0
    _
  %s15 = ssub.s32 1, %s13
  %s16 = scalar_select 0, %s15, %s13
  $region1: #{se_preact_bottleneck.7} parent=0
    #allocation2 [shape = 'u8[65536]{0}', space=vmem, size = 0x10000, scoped, tag = 'output window, operand 0, single buffered']
    #allocation3 [shape = 's32[1]{0}', space=sflag, size = 0x4, scoped, tag = 'scoped memory for se_preact_bottleneck.7']
    %17 = vsyncpa [#allocation3], 0
    // Predicated region
    $region2: #{se_preact_bottleneck.7} parent=1 // pred_check
      _
    $region3: #{se_preact_bottleneck.7} parent=1 // pred_check_branch
      %19 = sbr.rel (0) target = $region5
    $region4: #{se_preact_bottleneck.7} parent=1 // pred_region
      _
    $region5: #{se_preact_bottleneck.7} parent=1 // pred_fallthru
      _
    // Predicated region
    $region6: #{se_preact_bottleneck.7} parent=1 // pred_check
      _
    $region7: #{se_preact_bottleneck.7} parent=1 // pred_check_branch
      %21 = sbr.rel (0) target = $region9
    $region8: #{se_preact_bottleneck.7} parent=1 // pred_region
      _
    $region9: #{se_preact_bottleneck.7} parent=1 // pred_fallthru
      _
    // Predicated region
    $region10: #{se_preact_bottleneck.7} parent=1 // pred_check
      _
    $region11: #{se_preact_bottleneck.7} parent=1 // pred_check_branch
      %23 = sbr.rel (0) target = $region13
    $region12: #{se_preact_bottleneck.7} parent=1 // pred_region
      _
    $region13: #{se_preact_bottleneck.7} parent=1 // pred_fallthru
      _
    // Predicated region
    $region14: #{se_preact_bottleneck.7} parent=1 // pred_check
      _
    $region15: #{se_preact_bottleneck.7} parent=1 // pred_check_branch
      %25 = sbr.rel (0) target = $region17
    $region16: #{se_preact_bottleneck.7} parent=1 // pred_region
      _
    $region17: #{se_preact_bottleneck.7} parent=1 // pred_fallthru
      _
    // Predicated region
    $region18: #{se_preact_bottleneck.7} parent=1 // pred_check
      _
    $region19: #{se_preact_bottleneck.7} parent=1 // pred_check_branch
      %27 = sbr.rel (0) target = $region21
    $region20: #{se_preact_bottleneck.7} parent=1 // pred_region
      _
    $region21: #{se_preact_bottleneck.7} parent=1 // pred_fallthru
      _
    // Predicated region
    $region22: #{se_preact_bottleneck.7} parent=1 // pred_check
      _
    $region23: #{se_preact_bottleneck.7} parent=1 // pred_check_branch
      %29 = sbr.rel (0) target = $region25
    $region24: #{se_preact_bottleneck.7} parent=1 // pred_region
      _
    $region25: #{se_preact_bottleneck.7} parent=1 // pred_fallthru
      _
    // Predicated region
    $region26: #{se_preact_bottleneck.7} parent=1 // pred_check
      _
    $region27: #{se_preact_bottleneck.7} parent=1 // pred_check_branch
      %31 = sbr.rel (0) target = $region29
    $region28: #{se_preact_bottleneck.7} parent=1 // pred_region
      _
    $region29: #{se_preact_bottleneck.7} parent=1 // pred_fallthru
      _
    // Predicated region
    $region30: #{se_preact_bottleneck.7} parent=1 // pred_check
      _
    $region31: #{se_preact_bottleneck.7} parent=1 // pred_check_branch
      %33 = sbr.rel (0) target = $region33
    $region32: #{se_preact_bottleneck.7} parent=1 // pred_region
      _
    $region33: #{se_preact_bottleneck.7} parent=1 // pred_fallthru
      _
    // Predicated region
    $region34: #{se_preact_bottleneck.7} parent=1 // pred_check
      _
    $region35: #{se_preact_bottleneck.7} parent=1 // pred_check_branch
      %35 = sbr.rel (0) target = $region37
    $region36: #{se_preact_bottleneck.7} parent=1 // pred_region
      _
    $region37: #{se_preact_bottleneck.7} parent=1 // pred_fallthru
      _
    // Predicated region
    $region38: #{se_preact_bottleneck.7} parent=1 // pred_check
      _
    $region39: #{se_preact_bottleneck.7} parent=1 // pred_check_branch
      %37 = sbr.rel (0) target = $region41
    $region40: #{se_preact_bottleneck.7} parent=1 // pred_region
      _
    $region41: #{se_preact_bottleneck.7} parent=1 // pred_fallthru
      _
    // Predicated region
    $region42: #{se_preact_bottleneck.7} parent=1 // pred_check
      _
    $region43: #{se_preact_bottleneck.7} parent=1 // pred_check_branch
      %39 = sbr.rel (0) target = $region45
    $region44: #{se_preact_bottleneck.7} parent=1 // pred_region
      _
    $region45: #{se_preact_bottleneck.7} parent=1 // pred_fallthru
      _
    // Predicated region
    $region46: #{se_preact_bottleneck.7} parent=1 // pred_check
      _
    $region47: #{se_preact_bottleneck.7} parent=1 // pred_check_branch
      %41 = sbr.rel (0) target = $region49
    $region48: #{se_preact_bottleneck.7} parent=1 // pred_region
      _
    $region49: #{se_preact_bottleneck.7} parent=1 // pred_fallthru
      _
    %v42 = vld [vmem:[%s1] sm:$0xff]
    %v43 = vld [vmem:[%s1 + $0x8] sm:$0xff]
    %v44 = vld [vmem:[%s1 + $0x10] sm:$0xff]
    %v45 = vld [vmem:[%s1 + $0x18] sm:$0xff]
    %v46 = vld [vmem:[%s1 + $0x20] sm:$0xff]
    %v47 = vld [vmem:[%s1 + $0x28] sm:$0xff]
    %v48 = vld [vmem:[%s1 + $0x30] sm:$0xff]
    %v49 = vld [vmem:[%s1 + $0x38] sm:$0xff]
    %v50 = vld [vmem:[%s1 + $0x40] sm:$0xff]
    %v51 = vld [vmem:[%s1 + $0x48] sm:$0xff]
    %v52 = vld [vmem:[%s1 + $0x50] sm:$0xff]
    %v53 = vld [vmem:[%s1 + $0x58] sm:$0xff]
    %v54 = vld [vmem:[%s1 + $0x60] sm:$0xff]
    %v55 = vld [vmem:[%s1 + $0x68] sm:$0xff]
    %v56 = vld [vmem:[%s1 + $0x70] sm:$0xff]
    %v57 = vld [vmem:[%s1 + $0x78] sm:$0xff]
    %v58 = vld [vmem:[%s2] sm:$0x1]
    %v60 = vperm.slane %v58, 0
    %v62 = vmul.f32 %v42, %v60
    %v63 = vmul.f32 %v43, %v60
    %v64 = vmul.f32 %v44, %v60
    %v65 = vmul.f32 %v45, %v60
    %v66 = vmul.f32 %v46, %v60
    %v67 = vmul.f32 %v47, %v60
    %v68 = vmul.f32 %v48, %v60
    %v69 = vmul.f32 %v49, %v60
    %v70 = vmul.f32 %v50, %v60
    %v71 = vmul.f32 %v51, %v60
    %v72 = vmul.f32 %v52, %v60
    %v73 = vmul.f32 %v53, %v60
    %v74 = vmul.f32 %v54, %v60
    %v75 = vmul.f32 %v55, %v60
    %v76 = vmul.f32 %v56, %v60
    %v77 = vmul.f32 %v57, %v60
    %v78 = vld [vmem:[%s3] sm:$0x1]
    %v80 = vperm.slane %v78, 0
    %v82 = vadd.f32 %v62, %v80
    %v83 = vadd.f32 %v63, %v80
    %v84 = vadd.f32 %v64, %v80
    %v85 = vadd.f32 %v65, %v80
    %v86 = vadd.f32 %v66, %v80
    %v87 = vadd.f32 %v67, %v80
    %v88 = vadd.f32 %v68, %v80
    %v89 = vadd.f32 %v69, %v80
    %v90 = vadd.f32 %v70, %v80
    %v91 = vadd.f32 %v71, %v80
    %v92 = vadd.f32 %v72, %v80
    %v93 = vadd.f32 %v73, %v80
    %v94 = vadd.f32 %v74, %v80
    %v95 = vadd.f32 %v75, %v80
    %v96 = vadd.f32 %v76, %v80
    %v97 = vadd.f32 %v77, %v80
    %v98 = vmax.f32 %v82, 0.0
    %v99 = vmax.f32 %v83, 0.0
    %v100 = vmax.f32 %v84, 0.0
    %v101 = vmax.f32 %v85, 0.0
    %v102 = vmax.f32 %v86, 0.0
    %v103 = vmax.f32 %v87, 0.0
    %v104 = vmax.f32 %v88, 0.0
    %v105 = vmax.f32 %v89, 0.0
    %v106 = vmax.f32 %v90, 0.0
    %v107 = vmax.f32 %v91, 0.0
    %v108 = vmax.f32 %v92, 0.0
    %v109 = vmax.f32 %v93, 0.0
    %v110 = vmax.f32 %v94, 0.0
    %v111 = vmax.f32 %v95, 0.0
    %v112 = vmax.f32 %v96, 0.0
    %v113 = vmax.f32 %v97, 0.0
    %v114 = vld [vmem:[%s4] sm:$0xff]
    %v115 = vld [vmem:[%s4 + $0x8] sm:$0xff]
    %vm116 = vcmask 130048
    %v118 = vsel %vm116, %v98, 0
    %v121 = vsel %vm116, %v99, 0
    %v124 = vsel %vm116, %v100, 0
    %v127 = vsel %vm116, %v101, 0
    %v130 = vsel %vm116, %v102, 0
    %v133 = vsel %vm116, %v103, 0
    %v136 = vsel %vm116, %v104, 0
    %v139 = vsel %vm116, %v105, 0
    %v142 = vsel %vm116, %v106, 0
    %v145 = vsel %vm116, %v107, 0
    %v148 = vsel %vm116, %v108, 0
    %v151 = vsel %vm116, %v109, 0
    %v154 = vsel %vm116, %v110, 0
    %v157 = vsel %vm116, %v111, 0
    %v160 = vsel %vm116, %v112, 0
    %v163 = vsel %vm116, %v113, 0
    %165 = vmatpush.msra.mxu0 0.0
    %166 = vmatpush.msra.mxu0 0.0
    %167 = vmatpush.msra.mxu0 0.0
    %168 = vmatpush.msra.mxu0 0.0
    %169 = vmatpush.msra.mxu0 0.0
    %170 = vmatpush.msra.mxu0 0.0
    %171 = vmatpush.msra.mxu0 0.0
    %172 = vmatpush.msra.mxu0 0.0
    %173 = vmatpush.msra.mxu0 0.0
    %174 = vmatpush.msra.mxu0 0.0
    %175 = vmatpush.msra.mxu0 0.0
    %176 = vmatpush.msra.mxu0 0.0
    %177 = vmatpush.msra.mxu0 0.0
    %178 = vmatpush.msra.mxu0 0.0
    %179 = vmatpush.msra.mxu0 %v115
    %180 = vmatpush.msra.mxu0 %v114
    %181 = vmatmul.f32.gmra.mxu0 %v118
    %v182 = vpop.f32.mrf.mxu0
    %v183 = vadd.f32 0.0, %v182
    %184 = vmatmul.f32.gmra.mxu0 %v121
    %v185 = vpop.f32.mrf.mxu0
    %v186 = vadd.f32 0.0, %v185
    %187 = vmatmul.f32.gmra.mxu0 %v124
    %v188 = vpop.f32.mrf.mxu0
    %v189 = vadd.f32 0.0, %v188
    %190 = vmatmul.f32.gmra.mxu0 %v127
    %v191 = vpop.f32.mrf.mxu0
    %v192 = vadd.f32 0.0, %v191
    %193 = vmatmul.f32.gmra.mxu0 %v130
    %v194 = vpop.f32.mrf.mxu0
    %v195 = vadd.f32 0.0, %v194
    %196 = vmatmul.f32.gmra.mxu0 %v133
    %v197 = vpop.f32.mrf.mxu0
    %v198 = vadd.f32 0.0, %v197
    %199 = vmatmul.f32.gmra.mxu0 %v136
    %v200 = vpop.f32.mrf.mxu0
    %v201 = vadd.f32 0.0, %v200
    %202 = vmatmul.f32.gmra.mxu0 %v139
    %v203 = vpop.f32.mrf.mxu0
    %v204 = vadd.f32 0.0, %v203
    %205 = vmatmul.f32.gmra.mxu0 %v142
    %v206 = vpop.f32.mrf.mxu0
    %v207 = vadd.f32 0.0, %v206
    %208 = vmatmul.f32.gmra.mxu0 %v145
    %v209 = vpop.f32.mrf.mxu0
    %v210 = vadd.f32 0.0, %v209
    %211 = vmatmul.f32.gmra.mxu0 %v148
    %v212 = vpop.f32.mrf.mxu0
    %v213 = vadd.f32 0.0, %v212
    %214 = vmatmul.f32.gmra.mxu0 %v151
    %v215 = vpop.f32.mrf.mxu0
    %v216 = vadd.f32 0.0, %v215
    %217 = vmatmul.f32.gmra.mxu0 %v154
    %v218 = vpop.f32.mrf.mxu0
    %v219 = vadd.f32 0.0, %v218
    %220 = vmatmul.f32.gmra.mxu0 %v157
    %v221 = vpop.f32.mrf.mxu0
    %v222 = vadd.f32 0.0, %v221
    %223 = vmatmul.f32.gmra.mxu0 %v160
    %v224 = vpop.f32.mrf.mxu0
    %v225 = vadd.f32 0.0, %v224
    %226 = vmatmul.f32.gmra.mxu0 %v163
    %v227 = vpop.f32.mrf.mxu0
    %v228 = vadd.f32 0.0, %v227
    %229 = vdwg.mxu0
    %vm230 = vcmask 523264
    %v231 = vsel %vm230, %v183, 0.0
    %v232 = vsel %vm230, %v186, 0.0
    %v233 = vadd.f32 %v231, %v232
    %v234 = vsel %vm230, %v189, 0.0
    %v235 = vadd.f32 %v233, %v234
    %v236 = vsel %vm230, %v192, 0.0
    %v237 = vadd.f32 %v235, %v236
    %v238 = vsel %vm230, %v195, 0.0
    %v239 = vadd.f32 %v237, %v238
    %v240 = vsel %vm230, %v198, 0.0
    %v241 = vadd.f32 %v239, %v240
    %v242 = vsel %vm230, %v201, 0.0
    %v243 = vadd.f32 %v241, %v242
    %v244 = vsel %vm230, %v204, 0.0
    %v245 = vadd.f32 %v243, %v244
    %v246 = vrot.slane %v245, 4
    %v247 = vadd.f32 %v245, %v246
    %v248 = vrot.slane %v247, 2
    %v249 = vadd.f32 %v247, %v248
    %v250 = vrot.slane %v249, 1
    %v251 = vadd.f32 %v249, %v250
    %v252 = vsel %vm230, %v207, 0.0
    %v253 = vsel %vm230, %v210, 0.0
    %v254 = vadd.f32 %v252, %v253
    %v255 = vsel %vm230, %v213, 0.0
    %v256 = vadd.f32 %v254, %v255
    %v257 = vsel %vm230, %v216, 0.0
    %v258 = vadd.f32 %v256, %v257
    %v259 = vsel %vm230, %v219, 0.0
    %v260 = vadd.f32 %v258, %v259
    %v261 = vsel %vm230, %v222, 0.0
    %v262 = vadd.f32 %v260, %v261
    %v263 = vsel %vm230, %v225, 0.0
    %v264 = vadd.f32 %v262, %v263
    %v265 = vsel %vm230, %v228, 0.0
    %v266 = vadd.f32 %v264, %v265
    %v267 = vrot.slane %v266, 4
    %v268 = vadd.f32 %v266, %v267
    %v269 = vrot.slane %v268, 2
    %v270 = vadd.f32 %v268, %v269
    %v271 = vrot.slane %v270, 1
    %v272 = vadd.f32 %v270, %v271
    %v273 = vrcp.pop 64.0
    %v274 = vmul.f32 64.0, %v273
    %v275 = vsub.f32 1.0, %v274
    %v276 = vmul.f32 %v273, %v275
    %v277 = vadd.f32 %v273, %v276
    %vm278 = vweird.f32 %v273
    %v279 = vsel %vm278, %v273, %v277
    %v280 = vmul.f32 %v251, %v279
    %v281 = vmul.f32 %v272, %v279
    %v282 = vld [vmem:[%s8] sm:$0xff]
    %v283 = vld [vmem:[%s8 + $0x8] sm:$0xff]
    %v284 = vld [vmem:[%s8 + $0x10] sm:$0xff]
    %v285 = vld [vmem:[%s8 + $0x18] sm:$0xff]
    %v286 = vld [vmem:[%s8 + $0x20] sm:$0xff]
    %v287 = vld [vmem:[%s8 + $0x28] sm:$0xff]
    %v288 = vld [vmem:[%s8 + $0x30] sm:$0xff]
    %v289 = vld [vmem:[%s8 + $0x38] sm:$0xff]
    %v290 = vld [vmem:[%s9] sm:$0x1]
    %v292 = vperm.slane %v290, 0
    %vm296 = vcmask 1041409
    %v297 = vsel %vm296, %v281, %v280
    %v298 = vsel %vm230, %v297, 0
    %300 = vmatpush.msra.mxu0 0.0
    %301 = vmatpush.msra.mxu0 0.0
    %302 = vmatpush.msra.mxu0 0.0
    %303 = vmatpush.msra.mxu0 0.0
    %304 = vmatpush.msra.mxu0 0.0
    %305 = vmatpush.msra.mxu0 0.0
    %306 = vmatpush.msra.mxu0 0.0
    %307 = vmatpush.msra.mxu0 0.0
    %308 = vmatpush.msra.mxu0 %v289
    %309 = vmatpush.msra.mxu0 %v288
    %310 = vmatpush.msra.mxu0 %v287
    %311 = vmatpush.msra.mxu0 %v286
    %312 = vmatpush.msra.mxu0 %v285
    %313 = vmatpush.msra.mxu0 %v284
    %314 = vmatpush.msra.mxu0 %v283
    %315 = vmatpush.msra.mxu0 %v282
    %316 = vmatmul.f32.gmra.mxu0 %v298
    %v317 = vpop.f32.mrf.mxu0
    %v318 = vadd.f32 %v292, %v317
    %319 = vdwg.mxu0
    %v320 = vmax.f32 %v318, 0.0
    %v321 = vld [vmem:[%s10] sm:$0xf]
    %v322 = vld [vmem:[%s11] sm:$0x1]
    %v324 = vperm.slane %v322, 0
    %vm326 = vcmask 31744
    %v328 = vsel %vm326, %v320, 0
    %vm330 = vcmask 1043456
    %v332 = vsel %vm330, %v321, 0
    %334 = vmatpush.msra.mxu0 0.0
    %335 = vmatpush.msra.mxu0 0.0
    %336 = vmatpush.msra.mxu0 0.0
    %337 = vmatpush.msra.mxu0 0.0
    %338 = vmatpush.msra.mxu0 0.0
    %339 = vmatpush.msra.mxu0 0.0
    %340 = vmatpush.msra.mxu0 0.0
    %341 = vmatpush.msra.mxu0 0.0
    %342 = vmatpush.msra.mxu0 0.0
    %343 = vmatpush.msra.mxu0 0.0
    %344 = vmatpush.msra.mxu0 0.0
    %345 = vmatpush.msra.mxu0 0.0
    %346 = vmatpush.msra.mxu0 0.0
    %347 = vmatpush.msra.mxu0 0.0
    %348 = vmatpush.msra.mxu0 0.0
    %349 = vmatpush.msra.mxu0 %v332
    %350 = vmatmul.f32.gmra.mxu0 %v328
    %v351 = vpop.f32.mrf.mxu0
    %v352 = vadd.f32 %v324, %v351
    %353 = vdwg.mxu0
    %v354 = vxor.u32 %v352, 2147483648
    %v355 = vmul.f32 %v354, 1.442695
    %v356 = vpow.pop %v355
    %v357 = vadd.f32 %v356, 1.0
    %v358 = vrcp.pop %v357
    %v359 = vmul.f32 %v357, %v358
    %v360 = vsub.f32 1.0, %v359
    %v361 = vmul.f32 %v358, %v360
    %v362 = vadd.f32 %v358, %v361
    %vm363 = vweird.f32 %v357
    %vm364 = vweird.f32 %v358
    %vm365 = vmor %vm363, %vm364
    %v366 = vsel %vm365, %v358, %v362
    %v367 = vand.u32 2147483647, %v357
    %vm368 = vcmp.eq.f32.partialorder %v367, 8.507059e+37
    %v369 = vand.u32 %v357, 2147483648
    %v370 = vor.u32 1.1754944e-38, %v369
    %v371 = vsel %vm368, %v370, %v366
    %v372 = vmul.f32 1.0, %v371
    %v374 = vrot.slane %v372, 1
    %v375 = vperm.slane %v372, 0
    %v376 = vperm.slane %v374, 0
    %v379 = vmul.f32 %v183, %v375
    %v380 = vmul.f32 %v186, %v375
    %v381 = vmul.f32 %v189, %v375
    %v382 = vmul.f32 %v192, %v375
    %v383 = vmul.f32 %v195, %v375
    %v384 = vmul.f32 %v198, %v375
    %v385 = vmul.f32 %v201, %v375
    %v386 = vmul.f32 %v204, %v375
    %v387 = vmul.f32 %v207, %v376
    %v388 = vmul.f32 %v210, %v376
    %v389 = vmul.f32 %v213, %v376
    %v390 = vmul.f32 %v216, %v376
    %v391 = vmul.f32 %v219, %v376
    %v392 = vmul.f32 %v222, %v376
    %v393 = vmul.f32 %v225, %v376
    %v394 = vmul.f32 %v228, %v376
    %v395 = vld [vmem:[%s0] sm:$0xff]
    %v396 = vld [vmem:[%s0 + $0x8] sm:$0xff]
    %v397 = vld [vmem:[%s0 + $0x10] sm:$0xff]
    %v398 = vld [vmem:[%s0 + $0x18] sm:$0xff]
    %v399 = vld [vmem:[%s0 + $0x20] sm:$0xff]
    %v400 = vld [vmem:[%s0 + $0x28] sm:$0xff]
    %v401 = vld [vmem:[%s0 + $0x30] sm:$0xff]
    %v402 = vld [vmem:[%s0 + $0x38] sm:$0xff]
    %v403 = vld [vmem:[%s0 + $0x40] sm:$0xff]
    %v404 = vld [vmem:[%s0 + $0x48] sm:$0xff]
    %v405 = vld [vmem:[%s0 + $0x50] sm:$0xff]
    %v406 = vld [vmem:[%s0 + $0x58] sm:$0xff]
    %v407 = vld [vmem:[%s0 + $0x60] sm:$0xff]
    %v408 = vld [vmem:[%s0 + $0x68] sm:$0xff]
    %v409 = vld [vmem:[%s0 + $0x70] sm:$0xff]
    %v410 = vld [vmem:[%s0 + $0x78] sm:$0xff]
    %v411 = vld [vmem:[%s5] sm:$0x1]
    %v413 = vperm.slane %v411, 0
    %v415 = vmul.f32 %v395, %v413
    %v416 = vmul.f32 %v396, %v413
    %v417 = vmul.f32 %v397, %v413
    %v418 = vmul.f32 %v398, %v413
    %v419 = vmul.f32 %v399, %v413
    %v420 = vmul.f32 %v400, %v413
    %v421 = vmul.f32 %v401, %v413
    %v422 = vmul.f32 %v402, %v413
    %v423 = vmul.f32 %v403, %v413
    %v424 = vmul.f32 %v404, %v413
    %v425 = vmul.f32 %v405, %v413
    %v426 = vmul.f32 %v406, %v413
    %v427 = vmul.f32 %v407, %v413
    %v428 = vmul.f32 %v408, %v413
    %v429 = vmul.f32 %v409, %v413
    %v430 = vmul.f32 %v410, %v413
    %v431 = vld [vmem:[%s6] sm:$0x1]
    %v433 = vperm.slane %v431, 0
    %v435 = vadd.f32 %v415, %v433
    %v436 = vadd.f32 %v416, %v433
    %v437 = vadd.f32 %v417, %v433
    %v438 = vadd.f32 %v418, %v433
    %v439 = vadd.f32 %v419, %v433
    %v440 = vadd.f32 %v420, %v433
    %v441 = vadd.f32 %v421, %v433
    %v442 = vadd.f32 %v422, %v433
    %v443 = vadd.f32 %v423, %v433
    %v444 = vadd.f32 %v424, %v433
    %v445 = vadd.f32 %v425, %v433
    %v446 = vadd.f32 %v426, %v433
    %v447 = vadd.f32 %v427, %v433
    %v448 = vadd.f32 %v428, %v433
    %v449 = vadd.f32 %v429, %v433
    %v450 = vadd.f32 %v430, %v433
    %v451 = vmax.f32 %v435, 0.0
    %v452 = vmax.f32 %v436, 0.0
    %v453 = vmax.f32 %v437, 0.0
    %v454 = vmax.f32 %v438, 0.0
    %v455 = vmax.f32 %v439, 0.0
    %v456 = vmax.f32 %v440, 0.0
    %v457 = vmax.f32 %v441, 0.0
    %v458 = vmax.f32 %v442, 0.0
    %v459 = vmax.f32 %v443, 0.0
    %v460 = vmax.f32 %v444, 0.0
    %v461 = vmax.f32 %v445, 0.0
    %v462 = vmax.f32 %v446, 0.0
    %v463 = vmax.f32 %v447, 0.0
    %v464 = vmax.f32 %v448, 0.0
    %v465 = vmax.f32 %v449, 0.0
    %v466 = vmax.f32 %v450, 0.0
    %v467 = vld [vmem:[%s7] sm:$0xff]
    %v468 = vld [vmem:[%s7 + $0x8] sm:$0xff]
    %v470 = vsel %vm116, %v451, 0
    %v473 = vsel %vm116, %v452, 0
    %v476 = vsel %vm116, %v453, 0
    %v479 = vsel %vm116, %v454, 0
    %v482 = vsel %vm116, %v455, 0
    %v485 = vsel %vm116, %v456, 0
    %v488 = vsel %vm116, %v457, 0
    %v491 = vsel %vm116, %v458, 0
    %v494 = vsel %vm116, %v459, 0
    %v497 = vsel %vm116, %v460, 0
    %v500 = vsel %vm116, %v461, 0
    %v503 = vsel %vm116, %v462, 0
    %v506 = vsel %vm116, %v463, 0
    %v509 = vsel %vm116, %v464, 0
    %v512 = vsel %vm116, %v465, 0
    %v515 = vsel %vm116, %v466, 0
    %517 = vmatpush.msra.mxu0 0.0
    %518 = vmatpush.msra.mxu0 0.0
    %519 = vmatpush.msra.mxu0 0.0
    %520 = vmatpush.msra.mxu0 0.0
    %521 = vmatpush.msra.mxu0 0.0
    %522 = vmatpush.msra.mxu0 0.0
    %523 = vmatpush.msra.mxu0 0.0
    %524 = vmatpush.msra.mxu0 0.0
    %525 = vmatpush.msra.mxu0 0.0
    %526 = vmatpush.msra.mxu0 0.0
    %527 = vmatpush.msra.mxu0 0.0
    %528 = vmatpush.msra.mxu0 0.0
    %529 = vmatpush.msra.mxu0 0.0
    %530 = vmatpush.msra.mxu0 0.0
    %531 = vmatpush.msra.mxu0 %v468
    %532 = vmatpush.msra.mxu0 %v467
    %533 = vmatmul.f32.gmra.mxu0 %v470
    %v534 = vpop.f32.mrf.mxu0
    %v535 = vadd.f32 0.0, %v534
    %536 = vmatmul.f32.gmra.mxu0 %v473
    %v537 = vpop.f32.mrf.mxu0
    %v538 = vadd.f32 0.0, %v537
    %539 = vmatmul.f32.gmra.mxu0 %v476
    %v540 = vpop.f32.mrf.mxu0
    %v541 = vadd.f32 0.0, %v540
    %542 = vmatmul.f32.gmra.mxu0 %v479
    %v543 = vpop.f32.mrf.mxu0
    %v544 = vadd.f32 0.0, %v543
    %545 = vmatmul.f32.gmra.mxu0 %v482
    %v546 = vpop.f32.mrf.mxu0
    %v547 = vadd.f32 0.0, %v546
    %548 = vmatmul.f32.gmra.mxu0 %v485
    %v549 = vpop.f32.mrf.mxu0
    %v550 = vadd.f32 0.0, %v549
    %551 = vmatmul.f32.gmra.mxu0 %v488
    %v552 = vpop.f32.mrf.mxu0
    %v553 = vadd.f32 0.0, %v552
    %554 = vmatmul.f32.gmra.mxu0 %v491
    %v555 = vpop.f32.mrf.mxu0
    %v556 = vadd.f32 0.0, %v555
    %557 = vmatmul.f32.gmra.mxu0 %v494
    %v558 = vpop.f32.mrf.mxu0
    %v559 = vadd.f32 0.0, %v558
    %560 = vmatmul.f32.gmra.mxu0 %v497
    %v561 = vpop.f32.mrf.mxu0
    %v562 = vadd.f32 0.0, %v561
    %563 = vmatmul.f32.gmra.mxu0 %v500
    %v564 = vpop.f32.mrf.mxu0
    %v565 = vadd.f32 0.0, %v564
    %566 = vmatmul.f32.gmra.mxu0 %v503
    %v567 = vpop.f32.mrf.mxu0
    %v568 = vadd.f32 0.0, %v567
    %569 = vmatmul.f32.gmra.mxu0 %v506
    %v570 = vpop.f32.mrf.mxu0
    %v571 = vadd.f32 0.0, %v570
    %572 = vmatmul.f32.gmra.mxu0 %v509
    %v573 = vpop.f32.mrf.mxu0
    %v574 = vadd.f32 0.0, %v573
    %575 = vmatmul.f32.gmra.mxu0 %v512
    %v576 = vpop.f32.mrf.mxu0
    %v577 = vadd.f32 0.0, %v576
    %578 = vmatmul.f32.gmra.mxu0 %v515
    %v579 = vpop.f32.mrf.mxu0
    %v580 = vadd.f32 0.0, %v579
    %581 = vdwg.mxu0
    %v582 = vadd.f32 %v379, %v535
    %v583 = vadd.f32 %v380, %v538
    %v584 = vadd.f32 %v381, %v541
    %v585 = vadd.f32 %v382, %v544
    %v586 = vadd.f32 %v383, %v547
    %v587 = vadd.f32 %v384, %v550
    %v588 = vadd.f32 %v385, %v553
    %v589 = vadd.f32 %v386, %v556
    %v590 = vadd.f32 %v387, %v559
    %v591 = vadd.f32 %v388, %v562
    %v592 = vadd.f32 %v389, %v565
    %v593 = vadd.f32 %v390, %v568
    %v594 = vadd.f32 %v391, %v571
    %v595 = vadd.f32 %v392, %v574
    %v596 = vadd.f32 %v393, %v577
    %v597 = vadd.f32 %v394, %v580
    %598 = vst.msk [vmem:[#allocation2] sm:$0xff] %vm230, %v582
    %599 = vst.msk [vmem:[#allocation2 + $0x8] sm:$0xff] %vm230, %v583
    %600 = vst.msk [vmem:[#allocation2 + $0x10] sm:$0xff] %vm230, %v584
    %601 = vst.msk [vmem:[#allocation2 + $0x18] sm:$0xff] %vm230, %v585
    %602 = vst.msk [vmem:[#allocation2 + $0x20] sm:$0xff] %vm230, %v586
    %603 = vst.msk [vmem:[#allocation2 + $0x28] sm:$0xff] %vm230, %v587
    %604 = vst.msk [vmem:[#allocation2 + $0x30] sm:$0xff] %vm230, %v588
    %605 = vst.msk [vmem:[#allocation2 + $0x38] sm:$0xff] %vm230, %v589
    %606 = vst.msk [vmem:[#allocation2 + $0x40] sm:$0xff] %vm230, %v590
    %607 = vst.msk [vmem:[#allocation2 + $0x48] sm:$0xff] %vm230, %v591
    %608 = vst.msk [vmem:[#allocation2 + $0x50] sm:$0xff] %vm230, %v592
    %609 = vst.msk [vmem:[#allocation2 + $0x58] sm:$0xff] %vm230, %v593
    %610 = vst.msk [vmem:[#allocation2 + $0x60] sm:$0xff] %vm230, %v594
    %611 = vst.msk [vmem:[#allocation2 + $0x68] sm:$0xff] %vm230, %v595
    %612 = vst.msk [vmem:[#allocation2 + $0x70] sm:$0xff] %vm230, %v596
    %613 = vst.msk [vmem:[#allocation2 + $0x78] sm:$0xff] %vm230, %v597
    // Predicated region
    $region50: #{se_preact_bottleneck.7} parent=1 // pred_check
      _
    $region51: #{se_preact_bottleneck.7} parent=1 // pred_check_branch
      %615 = sbr.rel (0) target = $region53
    $region52: #{se_preact_bottleneck.7} parent=1 // pred_region
      %617 = vsyncadd [#allocation3], 0
      %s618 = sshll.u32 [#allocation2], 4
      %s619 = int_to_ptr.vmem [resolvable:$true] %s618
      %s620 = sshll.u32 %s12, 4
      %s621 = int_to_ptr.hbm [resolvable:$true] %s620
      %626 = dma.vmem_to_hbm [thread:$0]  %s619, 2048, %s621, [#allocation3], 128, 128, 8
    $region53: #{se_preact_bottleneck.7} parent=1 // pred_fallthru
      _
    // Predicated region
    $region54: #{se_preact_bottleneck.7} parent=1 // pred_check
      _
    $region55: #{se_preact_bottleneck.7} parent=1 // pred_check_branch
      %628 = sbr.rel (0) target = $region57
    $region56: #{se_preact_bottleneck.7} parent=1 // pred_region
      %630 = dma.done [#allocation3], 2048
    $region57: #{se_preact_bottleneck.7} parent=1 // pred_fallthru
      _
    %631 = vsyncpa [#allocation3], 1

// kernel: se_preact_bottleneck.6
$region0: #{se_preact_bottleneck.6}
  #allocation0 [shape = 'u32[]', space=smem, size = 0x4, offset = 0x4, fixed_abs, tag = 'smem constant byte address 0x4 - core index']
  #allocation1 [shape = 'u32[72,128]{1,0:T(1,128)}', space=vmem, size = 0x9000, scoped, tag = 'internal scratch']
  #allocation2 [shape = 'f32[2,10,10,16]{3,2,1,0:T(8,128)}', space=vmem, size = 0x28000, scoped, tag = 'scratch operand']
  %s0 = inlined_call_operand.vmem [shape: f32[128,16], index: 0, kind: input, shape index: {}]
  %s1 = inlined_call_operand.vmem [shape: f32[1,16], index: 1, kind: input, shape index: {}]
  %s2 = inlined_call_operand.vmem [shape: f32[1,16], index: 2, kind: input, shape index: {}]
  %s3 = inlined_call_operand.hbm [shape: f32[9,16,16], index: 3, kind: input, shape index: {}]
  %s4 = inlined_call_operand.vmem [shape: f32[128,16], index: 4, kind: output, shape index: {0}]
  %s5 = inlined_call_operand.vmem [shape: f32[1,1,16], index: 5, kind: output, shape index: {1}]
  %s6 = inlined_call_operand.vmem [shape: f32[1,1,16], index: 6, kind: output, shape index: {2}]
  %7 = xla_tuple %s4, %s5, %s6
  %s8 = sld [smem:[#allocation0]]
  $region46: #{se_preact_bottleneck.6} parent=0
    _
  %s10 = ssub.s32 1, %s8
  %s11 = scalar_select 0, %s10, %s8
  $region1: #{se_preact_bottleneck.6} parent=0
    #allocation3 [shape = 'u8[73728]{0}', space=vmem, size = 0x12000, scoped, tag = 'input window, operand 3, single buffered']
    #allocation4 [shape = 's32[1]{0}', space=sflag, size = 0x4, scoped, tag = 'scoped memory for se_preact_bottleneck.6']
    %12 = vsyncpa [#allocation4], 0
    // Predicated region
    $region2: #{se_preact_bottleneck.6} parent=1 // pred_check
      _
    $region3: #{se_preact_bottleneck.6} parent=1 // pred_check_branch
      %14 = sbr.rel (0) target = $region5
    $region4: #{se_preact_bottleneck.6} parent=1 // pred_region
      _
    $region5: #{se_preact_bottleneck.6} parent=1 // pred_fallthru
      _
    // Predicated region
    $region6: #{se_preact_bottleneck.6} parent=1 // pred_check
      _
    $region7: #{se_preact_bottleneck.6} parent=1 // pred_check_branch
      %16 = sbr.rel (0) target = $region9
    $region8: #{se_preact_bottleneck.6} parent=1 // pred_region
      _
    $region9: #{se_preact_bottleneck.6} parent=1 // pred_fallthru
      _
    // Predicated region
    $region10: #{se_preact_bottleneck.6} parent=1 // pred_check
      _
    $region11: #{se_preact_bottleneck.6} parent=1 // pred_check_branch
      %18 = sbr.rel (0) target = $region13
    $region12: #{se_preact_bottleneck.6} parent=1 // pred_region
      _
    $region13: #{se_preact_bottleneck.6} parent=1 // pred_fallthru
      _
    // Predicated region
    $region14: #{se_preact_bottleneck.6} parent=1 // pred_check
      _
    $region15: #{se_preact_bottleneck.6} parent=1 // pred_check_branch
      %20 = sbr.rel (0) target = $region17
    $region16: #{se_preact_bottleneck.6} parent=1 // pred_region
      %22 = vsyncadd [#allocation4], 0
      %s23 = sshll.u32 %s3, 4
      %s24 = int_to_ptr.hbm [resolvable:$true] %s23
      %s25 = sshll.u32 [#allocation3], 4
      %s26 = int_to_ptr.vmem [resolvable:$true] %s25
      %31 = dma.hbm_to_vmem [thread:$0]  %s24, 2304, %s26, [#allocation4], 128, 128, 8
    $region17: #{se_preact_bottleneck.6} parent=1 // pred_fallthru
      _
    // Predicated region
    $region18: #{se_preact_bottleneck.6} parent=1 // pred_check
      _
    $region19: #{se_preact_bottleneck.6} parent=1 // pred_check_branch
      %33 = sbr.rel (0) target = $region21
    $region20: #{se_preact_bottleneck.6} parent=1 // pred_region
      %35 = dma.done [#allocation4], 2304
    $region21: #{se_preact_bottleneck.6} parent=1 // pred_fallthru
      _
    %vm36 = vcmask 130048
    %37 = vst.msk [vmem:[#allocation2] sm:$0xff] %vm36, 0.0
    %vm38 = vcmask 123904
    %39 = vst.msk [vmem:[#allocation2 + $0x8] sm:$0x3] %vm38, 0.0
    %40 = vst.msk [vmem:[#allocation2 + $0xa0] sm:$0xff] %vm36, 0.0
    %41 = vst.msk [vmem:[#allocation2 + $0xa8] sm:$0x3] %vm38, 0.0
    %s42 = scalar_lea.vmem [#allocation2], 144
    %43 = vst.msk [vmem:[%s42] sm:$0xff] %vm36, 0.0
    %44 = vst.msk [vmem:[%s42 + $0x8] sm:$0x3] %vm38, 0.0
    %45 = vst.msk [vmem:[%s42 + $0xa0] sm:$0xff] %vm36, 0.0
    %46 = vst.msk [vmem:[%s42 + $0xa8] sm:$0x3] %vm38, 0.0
    %s47 = scalar_lea.vmem [#allocation2], 16
    %vm48 = vcmask 122880
    %49 = vst.msk [vmem:[%s47] sm:$0x1] %vm48, 0.0
    %50 = vst.msk [vmem:[%s47 + $0x10] sm:$0x1] %vm48, 0.0
    %51 = vst.msk [vmem:[%s47 + $0x20] sm:$0x1] %vm48, 0.0
    %52 = vst.msk [vmem:[%s47 + $0x30] sm:$0x1] %vm48, 0.0
    %53 = vst.msk [vmem:[%s47 + $0x40] sm:$0x1] %vm48, 0.0
    %54 = vst.msk [vmem:[%s47 + $0x50] sm:$0x1] %vm48, 0.0
    %55 = vst.msk [vmem:[%s47 + $0x60] sm:$0x1] %vm48, 0.0
    %56 = vst.msk [vmem:[%s47 + $0x70] sm:$0x1] %vm48, 0.0
    %57 = vst.msk [vmem:[%s47 + $0xa0] sm:$0x1] %vm48, 0.0
    %58 = vst.msk [vmem:[%s47 + $0xb0] sm:$0x1] %vm48, 0.0
    %59 = vst.msk [vmem:[%s47 + $0xc0] sm:$0x1] %vm48, 0.0
    %60 = vst.msk [vmem:[%s47 + $0xd0] sm:$0x1] %vm48, 0.0
    %61 = vst.msk [vmem:[%s47 + $0xe0] sm:$0x1] %vm48, 0.0
    %62 = vst.msk [vmem:[%s47 + $0xf0] sm:$0x1] %vm48, 0.0
    %63 = vst.msk [vmem:[%s47 + $0x100] sm:$0x1] %vm48, 0.0
    %64 = vst.msk [vmem:[%s47 + $0x110] sm:$0x1] %vm48, 0.0
    %65 = vst.msk [vmem:[%s47 + $0x9] sm:$0x1] %vm48, 0.0
    %66 = vst.msk [vmem:[%s47 + $0x19] sm:$0x1] %vm48, 0.0
    %67 = vst.msk [vmem:[%s47 + $0x29] sm:$0x1] %vm48, 0.0
    %68 = vst.msk [vmem:[%s47 + $0x39] sm:$0x1] %vm48, 0.0
    %69 = vst.msk [vmem:[%s47 + $0x49] sm:$0x1] %vm48, 0.0
    %70 = vst.msk [vmem:[%s47 + $0x59] sm:$0x1] %vm48, 0.0
    %71 = vst.msk [vmem:[%s47 + $0x69] sm:$0x1] %vm48, 0.0
    %72 = vst.msk [vmem:[%s47 + $0x79] sm:$0x1] %vm48, 0.0
    %73 = vst.msk [vmem:[%s47 + $0xa9] sm:$0x1] %vm48, 0.0
    %74 = vst.msk [vmem:[%s47 + $0xb9] sm:$0x1] %vm48, 0.0
    %75 = vst.msk [vmem:[%s47 + $0xc9] sm:$0x1] %vm48, 0.0
    %76 = vst.msk [vmem:[%s47 + $0xd9] sm:$0x1] %vm48, 0.0
    %77 = vst.msk [vmem:[%s47 + $0xe9] sm:$0x1] %vm48, 0.0
    %78 = vst.msk [vmem:[%s47 + $0xf9] sm:$0x1] %vm48, 0.0
    %79 = vst.msk [vmem:[%s47 + $0x109] sm:$0x1] %vm48, 0.0
    %80 = vst.msk [vmem:[%s47 + $0x119] sm:$0x1] %vm48, 0.0
    %v81 = vld [vmem:[%s0] sm:$0xff]
    %v82 = vld [vmem:[%s0 + $0x8] sm:$0xff]
    %v83 = vld [vmem:[%s0 + $0x10] sm:$0xff]
    %v84 = vld [vmem:[%s0 + $0x18] sm:$0xff]
    %v85 = vld [vmem:[%s0 + $0x20] sm:$0xff]
    %v86 = vld [vmem:[%s0 + $0x28] sm:$0xff]
    %v87 = vld [vmem:[%s0 + $0x30] sm:$0xff]
    %v88 = vld [vmem:[%s0 + $0x38] sm:$0xff]
    %v89 = vld [vmem:[%s0 + $0x40] sm:$0xff]
    %v90 = vld [vmem:[%s0 + $0x48] sm:$0xff]
    %v91 = vld [vmem:[%s0 + $0x50] sm:$0xff]
    %v92 = vld [vmem:[%s0 + $0x58] sm:$0xff]
    %v93 = vld [vmem:[%s0 + $0x60] sm:$0xff]
    %v94 = vld [vmem:[%s0 + $0x68] sm:$0xff]
    %v95 = vld [vmem:[%s0 + $0x70] sm:$0xff]
    %v96 = vld [vmem:[%s0 + $0x78] sm:$0xff]
    %v97 = vld [vmem:[%s1] sm:$0x1]
    %v99 = vperm.slane %v97, 0
    %v101 = vmul.f32 %v81, %v99
    %v102 = vmul.f32 %v82, %v99
    %v103 = vmul.f32 %v83, %v99
    %v104 = vmul.f32 %v84, %v99
    %v105 = vmul.f32 %v85, %v99
    %v106 = vmul.f32 %v86, %v99
    %v107 = vmul.f32 %v87, %v99
    %v108 = vmul.f32 %v88, %v99
    %v109 = vmul.f32 %v89, %v99
    %v110 = vmul.f32 %v90, %v99
    %v111 = vmul.f32 %v91, %v99
    %v112 = vmul.f32 %v92, %v99
    %v113 = vmul.f32 %v93, %v99
    %v114 = vmul.f32 %v94, %v99
    %v115 = vmul.f32 %v95, %v99
    %v116 = vmul.f32 %v96, %v99
    %v117 = vld [vmem:[%s2] sm:$0x1]
    %v119 = vperm.slane %v117, 0
    %v121 = vadd.f32 %v101, %v119
    %v122 = vadd.f32 %v102, %v119
    %v123 = vadd.f32 %v103, %v119
    %v124 = vadd.f32 %v104, %v119
    %v125 = vadd.f32 %v105, %v119
    %v126 = vadd.f32 %v106, %v119
    %v127 = vadd.f32 %v107, %v119
    %v128 = vadd.f32 %v108, %v119
    %v129 = vadd.f32 %v109, %v119
    %v130 = vadd.f32 %v110, %v119
    %v131 = vadd.f32 %v111, %v119
    %v132 = vadd.f32 %v112, %v119
    %v133 = vadd.f32 %v113, %v119
    %v134 = vadd.f32 %v114, %v119
    %v135 = vadd.f32 %v115, %v119
    %v136 = vadd.f32 %v116, %v119
    %v137 = vmax.f32 %v121, 0.0
    %v138 = vmax.f32 %v122, 0.0
    %v139 = vmax.f32 %v123, 0.0
    %v140 = vmax.f32 %v124, 0.0
    %v141 = vmax.f32 %v125, 0.0
    %v142 = vmax.f32 %v126, 0.0
    %v143 = vmax.f32 %v127, 0.0
    %v144 = vmax.f32 %v128, 0.0
    %v145 = vmax.f32 %v129, 0.0
    %v146 = vmax.f32 %v130, 0.0
    %v147 = vmax.f32 %v131, 0.0
    %v148 = vmax.f32 %v132, 0.0
    %v149 = vmax.f32 %v133, 0.0
    %v150 = vmax.f32 %v134, 0.0
    %v151 = vmax.f32 %v135, 0.0
    %v152 = vmax.f32 %v136, 0.0
    %153 = vst.msk [vmem:[%s47 + $0x1] sm:$0xff] %vm36, %v137
    %154 = vst.msk [vmem:[%s47 + $0x11] sm:$0xff] %vm36, %v138
    %155 = vst.msk [vmem:[%s47 + $0x21] sm:$0xff] %vm36, %v139
    %156 = vst.msk [vmem:[%s47 + $0x31] sm:$0xff] %vm36, %v140
    %157 = vst.msk [vmem:[%s47 + $0x41] sm:$0xff] %vm36, %v141
    %158 = vst.msk [vmem:[%s47 + $0x51] sm:$0xff] %vm36, %v142
    %159 = vst.msk [vmem:[%s47 + $0x61] sm:$0xff] %vm36, %v143
    %160 = vst.msk [vmem:[%s47 + $0x71] sm:$0xff] %vm36, %v144
    %161 = vst.msk [vmem:[%s47 + $0xa1] sm:$0xff] %vm36, %v145
    %162 = vst.msk [vmem:[%s47 + $0xb1] sm:$0xff] %vm36, %v146
    %163 = vst.msk [vmem:[%s47 + $0xc1] sm:$0xff] %vm36, %v147
    %164 = vst.msk [vmem:[%s47 + $0xd1] sm:$0xff] %vm36, %v148
    %165 = vst.msk [vmem:[%s47 + $0xe1] sm:$0xff] %vm36, %v149
    %166 = vst.msk [vmem:[%s47 + $0xf1] sm:$0xff] %vm36, %v150
    %167 = vst.msk [vmem:[%s47 + $0x101] sm:$0xff] %vm36, %v151
    %168 = vst.msk [vmem:[%s47 + $0x111] sm:$0xff] %vm36, %v152
    %v169 = vld [vmem:[#allocation2] sm:$0xff]
    %v170 = vld [vmem:[#allocation2 + $0x10] sm:$0xff]
    %v171 = vld [vmem:[#allocation2 + $0x20] sm:$0xff]
    %v172 = vld [vmem:[#allocation2 + $0x30] sm:$0xff]
    %v173 = vld [vmem:[#allocation2 + $0x40] sm:$0xff]
    %v174 = vld [vmem:[#allocation2 + $0x50] sm:$0xff]
    %v175 = vld [vmem:[#allocation2 + $0x60] sm:$0xff]
    %v176 = vld [vmem:[#allocation2 + $0x70] sm:$0xff]
    %v177 = vld [vmem:[#allocation2 + $0xa0] sm:$0xff]
    %v178 = vld [vmem:[#allocation2 + $0xb0] sm:$0xff]
    %v179 = vld [vmem:[#allocation2 + $0xc0] sm:$0xff]
    %v180 = vld [vmem:[#allocation2 + $0xd0] sm:$0xff]
    %v181 = vld [vmem:[#allocation2 + $0xe0] sm:$0xff]
    %v182 = vld [vmem:[#allocation2 + $0xf0] sm:$0xff]
    %v183 = vld [vmem:[#allocation2 + $0x100] sm:$0xff]
    %v184 = vld [vmem:[#allocation2 + $0x110] sm:$0xff]
    %v185 = vld [vmem:[#allocation3] sm:$0xff]
    %v186 = vld [vmem:[#allocation3 + $0x8] sm:$0xff]
    %v187 = vld [vmem:[#allocation2 + $0x1] sm:$0xff]
    %v188 = vld [vmem:[#allocation2 + $0x11] sm:$0xff]
    %v189 = vld [vmem:[#allocation2 + $0x21] sm:$0xff]
    %v190 = vld [vmem:[#allocation2 + $0x31] sm:$0xff]
    %v191 = vld [vmem:[#allocation2 + $0x41] sm:$0xff]
    %v192 = vld [vmem:[#allocation2 + $0x51] sm:$0xff]
    %v193 = vld [vmem:[#allocation2 + $0x61] sm:$0xff]
    %v194 = vld [vmem:[#allocation2 + $0x71] sm:$0xff]
    %v195 = vld [vmem:[#allocation2 + $0xa1] sm:$0xff]
    %v196 = vld [vmem:[#allocation2 + $0xb1] sm:$0xff]
    %v197 = vld [vmem:[#allocation2 + $0xc1] sm:$0xff]
    %v198 = vld [vmem:[#allocation2 + $0xd1] sm:$0xff]
    %v199 = vld [vmem:[#allocation2 + $0xe1] sm:$0xff]
    %v200 = vld [vmem:[#allocation2 + $0xf1] sm:$0xff]
    %v201 = vld [vmem:[#allocation2 + $0x101] sm:$0xff]
    %v202 = vld [vmem:[#allocation2 + $0x111] sm:$0xff]
    %s203 = scalar_lea.vmem [#allocation3], 16
    %v204 = vld [vmem:[%s203] sm:$0xff]
    %v205 = vld [vmem:[%s203 + $0x8] sm:$0xff]
    %v207 = vsel %vm36, %v187, 0
    %v210 = vsel %vm36, %v188, 0
    %v213 = vsel %vm36, %v189, 0
    %v216 = vsel %vm36, %v190, 0
    %v219 = vsel %vm36, %v191, 0
    %v222 = vsel %vm36, %v192, 0
    %v225 = vsel %vm36, %v193, 0
    %v228 = vsel %vm36, %v194, 0
    %v231 = vsel %vm36, %v195, 0
    %v234 = vsel %vm36, %v196, 0
    %v237 = vsel %vm36, %v197, 0
    %v240 = vsel %vm36, %v198, 0
    %v243 = vsel %vm36, %v199, 0
    %v246 = vsel %vm36, %v200, 0
    %v249 = vsel %vm36, %v201, 0
    %v252 = vsel %vm36, %v202, 0
    %254 = vmatpush.msra.mxu0 0.0
    %255 = vmatpush.msra.mxu0 0.0
    %256 = vmatpush.msra.mxu0 0.0
    %257 = vmatpush.msra.mxu0 0.0
    %258 = vmatpush.msra.mxu0 0.0
    %259 = vmatpush.msra.mxu0 0.0
    %260 = vmatpush.msra.mxu0 0.0
    %261 = vmatpush.msra.mxu0 0.0
    %262 = vmatpush.msra.mxu0 0.0
    %263 = vmatpush.msra.mxu0 0.0
    %264 = vmatpush.msra.mxu0 0.0
    %265 = vmatpush.msra.mxu0 0.0
    %266 = vmatpush.msra.mxu0 0.0
    %267 = vmatpush.msra.mxu0 0.0
    %268 = vmatpush.msra.mxu0 %v205
    %269 = vmatpush.msra.mxu0 %v204
    %270 = vmatmul.f32.gmra.mxu0 %v207
    %v271 = vpop.f32.mrf.mxu0
    %v272 = vadd.f32 0.0, %v271
    %273 = vmatmul.f32.gmra.mxu0 %v210
    %v274 = vpop.f32.mrf.mxu0
    %v275 = vadd.f32 0.0, %v274
    %276 = vmatmul.f32.gmra.mxu0 %v213
    %v277 = vpop.f32.mrf.mxu0
    %v278 = vadd.f32 0.0, %v277
    %279 = vmatmul.f32.gmra.mxu0 %v216
    %v280 = vpop.f32.mrf.mxu0
    %v281 = vadd.f32 0.0, %v280
    %282 = vmatmul.f32.gmra.mxu0 %v219
    %v283 = vpop.f32.mrf.mxu0
    %v284 = vadd.f32 0.0, %v283
    %285 = vmatmul.f32.gmra.mxu0 %v222
    %v286 = vpop.f32.mrf.mxu0
    %v287 = vadd.f32 0.0, %v286
    %288 = vmatmul.f32.gmra.mxu0 %v225
    %v289 = vpop.f32.mrf.mxu0
    %v290 = vadd.f32 0.0, %v289
    %291 = vmatmul.f32.gmra.mxu0 %v228
    %v292 = vpop.f32.mrf.mxu0
    %v293 = vadd.f32 0.0, %v292
    %294 = vmatmul.f32.gmra.mxu0 %v231
    %v295 = vpop.f32.mrf.mxu0
    %v296 = vadd.f32 0.0, %v295
    %297 = vmatmul.f32.gmra.mxu0 %v234
    %v298 = vpop.f32.mrf.mxu0
    %v299 = vadd.f32 0.0, %v298
    %300 = vmatmul.f32.gmra.mxu0 %v237
    %v301 = vpop.f32.mrf.mxu0
    %v302 = vadd.f32 0.0, %v301
    %303 = vmatmul.f32.gmra.mxu0 %v240
    %v304 = vpop.f32.mrf.mxu0
    %v305 = vadd.f32 0.0, %v304
    %306 = vmatmul.f32.gmra.mxu0 %v243
    %v307 = vpop.f32.mrf.mxu0
    %v308 = vadd.f32 0.0, %v307
    %309 = vmatmul.f32.gmra.mxu0 %v246
    %v310 = vpop.f32.mrf.mxu0
    %v311 = vadd.f32 0.0, %v310
    %312 = vmatmul.f32.gmra.mxu0 %v249
    %v313 = vpop.f32.mrf.mxu0
    %v314 = vadd.f32 0.0, %v313
    %315 = vmatmul.f32.gmra.mxu0 %v252
    %v316 = vpop.f32.mrf.mxu0
    %v317 = vadd.f32 0.0, %v316
    %318 = vdwg.mxu0
    %v320 = vsel %vm36, %v169, 0
    %v323 = vsel %vm36, %v170, 0
    %v326 = vsel %vm36, %v171, 0
    %v329 = vsel %vm36, %v172, 0
    %v332 = vsel %vm36, %v173, 0
    %v335 = vsel %vm36, %v174, 0
    %v338 = vsel %vm36, %v175, 0
    %v341 = vsel %vm36, %v176, 0
    %v344 = vsel %vm36, %v177, 0
    %v347 = vsel %vm36, %v178, 0
    %v350 = vsel %vm36, %v179, 0
    %v353 = vsel %vm36, %v180, 0
    %v356 = vsel %vm36, %v181, 0
    %v359 = vsel %vm36, %v182, 0
    %v362 = vsel %vm36, %v183, 0
    %v365 = vsel %vm36, %v184, 0
    %367 = vmatpush.msra.mxu0 0.0
    %368 = vmatpush.msra.mxu0 0.0
    %369 = vmatpush.msra.mxu0 0.0
    %370 = vmatpush.msra.mxu0 0.0
    %371 = vmatpush.msra.mxu0 0.0
    %372 = vmatpush.msra.mxu0 0.0
    %373 = vmatpush.msra.mxu0 0.0
    %374 = vmatpush.msra.mxu0 0.0
    %375 = vmatpush.msra.mxu0 0.0
    %376 = vmatpush.msra.mxu0 0.0
    %377 = vmatpush.msra.mxu0 0.0
    %378 = vmatpush.msra.mxu0 0.0
    %379 = vmatpush.msra.mxu0 0.0
    %380 = vmatpush.msra.mxu0 0.0
    %381 = vmatpush.msra.mxu0 %v186
    %382 = vmatpush.msra.mxu0 %v185
    %383 = vmatmul.f32.gmra.mxu0 %v320
    %v384 = vpop.f32.mrf.mxu0
    %v385 = vadd.f32 %v272, %v384
    %386 = vmatmul.f32.gmra.mxu0 %v323
    %v387 = vpop.f32.mrf.mxu0
    %v388 = vadd.f32 %v275, %v387
    %389 = vmatmul.f32.gmra.mxu0 %v326
    %v390 = vpop.f32.mrf.mxu0
    %v391 = vadd.f32 %v278, %v390
    %392 = vmatmul.f32.gmra.mxu0 %v329
    %v393 = vpop.f32.mrf.mxu0
    %v394 = vadd.f32 %v281, %v393
    %395 = vmatmul.f32.gmra.mxu0 %v332
    %v396 = vpop.f32.mrf.mxu0
    %v397 = vadd.f32 %v284, %v396
    %398 = vmatmul.f32.gmra.mxu0 %v335
    %v399 = vpop.f32.mrf.mxu0
    %v400 = vadd.f32 %v287, %v399
    %401 = vmatmul.f32.gmra.mxu0 %v338
    %v402 = vpop.f32.mrf.mxu0
    %v403 = vadd.f32 %v290, %v402
    %404 = vmatmul.f32.gmra.mxu0 %v341
    %v405 = vpop.f32.mrf.mxu0
    %v406 = vadd.f32 %v293, %v405
    %407 = vmatmul.f32.gmra.mxu0 %v344
    %v408 = vpop.f32.mrf.mxu0
    %v409 = vadd.f32 %v296, %v408
    %410 = vmatmul.f32.gmra.mxu0 %v347
    %v411 = vpop.f32.mrf.mxu0
    %v412 = vadd.f32 %v299, %v411
    %413 = vmatmul.f32.gmra.mxu0 %v350
    %v414 = vpop.f32.mrf.mxu0
    %v415 = vadd.f32 %v302, %v414
    %416 = vmatmul.f32.gmra.mxu0 %v353
    %v417 = vpop.f32.mrf.mxu0
    %v418 = vadd.f32 %v305, %v417
    %419 = vmatmul.f32.gmra.mxu0 %v356
    %v420 = vpop.f32.mrf.mxu0
    %v421 = vadd.f32 %v308, %v420
    %422 = vmatmul.f32.gmra.mxu0 %v359
    %v423 = vpop.f32.mrf.mxu0
    %v424 = vadd.f32 %v311, %v423
    %425 = vmatmul.f32.gmra.mxu0 %v362
    %v426 = vpop.f32.mrf.mxu0
    %v427 = vadd.f32 %v314, %v426
    %428 = vmatmul.f32.gmra.mxu0 %v365
    %v429 = vpop.f32.mrf.mxu0
    %v430 = vadd.f32 %v317, %v429
    %431 = vdwg.mxu0
    %v432 = vld [vmem:[#allocation2 + $0x2] sm:$0xff]
    %v433 = vld [vmem:[#allocation2 + $0x12] sm:$0xff]
    %v434 = vld [vmem:[#allocation2 + $0x22] sm:$0xff]
    %v435 = vld [vmem:[#allocation2 + $0x32] sm:$0xff]
    %v436 = vld [vmem:[#allocation2 + $0x42] sm:$0xff]
    %v437 = vld [vmem:[#allocation2 + $0x52] sm:$0xff]
    %v438 = vld [vmem:[#allocation2 + $0x62] sm:$0xff]
    %v439 = vld [vmem:[#allocation2 + $0x72] sm:$0xff]
    %v440 = vld [vmem:[#allocation2 + $0xa2] sm:$0xff]
    %v441 = vld [vmem:[#allocation2 + $0xb2] sm:$0xff]
    %v442 = vld [vmem:[#allocation2 + $0xc2] sm:$0xff]
    %v443 = vld [vmem:[#allocation2 + $0xd2] sm:$0xff]
    %v444 = vld [vmem:[#allocation2 + $0xe2] sm:$0xff]
    %v445 = vld [vmem:[#allocation2 + $0xf2] sm:$0xff]
    %v446 = vld [vmem:[#allocation2 + $0x102] sm:$0xff]
    %v447 = vld [vmem:[#allocation2 + $0x112] sm:$0xff]
    %s448 = scalar_lea.vmem [#allocation3], 32
    %v449 = vld [vmem:[%s448] sm:$0xff]
    %v450 = vld [vmem:[%s448 + $0x8] sm:$0xff]
    %v452 = vsel %vm36, %v432, 0
    %v455 = vsel %vm36, %v433, 0
    %v458 = vsel %vm36, %v434, 0
    %v461 = vsel %vm36, %v435, 0
    %v464 = vsel %vm36, %v436, 0
    %v467 = vsel %vm36, %v437, 0
    %v470 = vsel %vm36, %v438, 0
    %v473 = vsel %vm36, %v439, 0
    %v476 = vsel %vm36, %v440, 0
    %v479 = vsel %vm36, %v441, 0
    %v482 = vsel %vm36, %v442, 0
    %v485 = vsel %vm36, %v443, 0
    %v488 = vsel %vm36, %v444, 0
    %v491 = vsel %vm36, %v445, 0
    %v494 = vsel %vm36, %v446, 0
    %v497 = vsel %vm36, %v447, 0
    %499 = vmatpush.msra.mxu0 0.0
    %500 = vmatpush.msra.mxu0 0.0
    %501 = vmatpush.msra.mxu0 0.0
    %502 = vmatpush.msra.mxu0 0.0
    %503 = vmatpush.msra.mxu0 0.0
    %504 = vmatpush.msra.mxu0 0.0
    %505 = vmatpush.msra.mxu0 0.0
    %506 = vmatpush.msra.mxu0 0.0
    %507 = vmatpush.msra.mxu0 0.0
    %508 = vmatpush.msra.mxu0 0.0
    %509 = vmatpush.msra.mxu0 0.0
    %510 = vmatpush.msra.mxu0 0.0
    %511 = vmatpush.msra.mxu0 0.0
    %512 = vmatpush.msra.mxu0 0.0
    %513 = vmatpush.msra.mxu0 %v450
    %514 = vmatpush.msra.mxu0 %v449
    %515 = vmatmul.f32.gmra.mxu0 %v452
    %v516 = vpop.f32.mrf.mxu0
    %v517 = vadd.f32 0.0, %v516
    %518 = vmatmul.f32.gmra.mxu0 %v455
    %v519 = vpop.f32.mrf.mxu0
    %v520 = vadd.f32 0.0, %v519
    %521 = vmatmul.f32.gmra.mxu0 %v458
    %v522 = vpop.f32.mrf.mxu0
    %v523 = vadd.f32 0.0, %v522
    %524 = vmatmul.f32.gmra.mxu0 %v461
    %v525 = vpop.f32.mrf.mxu0
    %v526 = vadd.f32 0.0, %v525
    %527 = vmatmul.f32.gmra.mxu0 %v464
    %v528 = vpop.f32.mrf.mxu0
    %v529 = vadd.f32 0.0, %v528
    %530 = vmatmul.f32.gmra.mxu0 %v467
    %v531 = vpop.f32.mrf.mxu0
    %v532 = vadd.f32 0.0, %v531
    %533 = vmatmul.f32.gmra.mxu0 %v470
    %v534 = vpop.f32.mrf.mxu0
    %v535 = vadd.f32 0.0, %v534
    %536 = vmatmul.f32.gmra.mxu0 %v473
    %v537 = vpop.f32.mrf.mxu0
    %v538 = vadd.f32 0.0, %v537
    %539 = vmatmul.f32.gmra.mxu0 %v476
    %v540 = vpop.f32.mrf.mxu0
    %v541 = vadd.f32 0.0, %v540
    %542 = vmatmul.f32.gmra.mxu0 %v479
    %v543 = vpop.f32.mrf.mxu0
    %v544 = vadd.f32 0.0, %v543
    %545 = vmatmul.f32.gmra.mxu0 %v482
    %v546 = vpop.f32.mrf.mxu0
    %v547 = vadd.f32 0.0, %v546
    %548 = vmatmul.f32.gmra.mxu0 %v485
    %v549 = vpop.f32.mrf.mxu0
    %v550 = vadd.f32 0.0, %v549
    %551 = vmatmul.f32.gmra.mxu0 %v488
    %v552 = vpop.f32.mrf.mxu0
    %v553 = vadd.f32 0.0, %v552
    %554 = vmatmul.f32.gmra.mxu0 %v491
    %v555 = vpop.f32.mrf.mxu0
    %v556 = vadd.f32 0.0, %v555
    %557 = vmatmul.f32.gmra.mxu0 %v494
    %v558 = vpop.f32.mrf.mxu0
    %v559 = vadd.f32 0.0, %v558
    %560 = vmatmul.f32.gmra.mxu0 %v497
    %v561 = vpop.f32.mrf.mxu0
    %v562 = vadd.f32 0.0, %v561
    %563 = vdwg.mxu0
    %v564 = vadd.f32 %v385, %v517
    %v565 = vadd.f32 %v388, %v520
    %v566 = vadd.f32 %v391, %v523
    %v567 = vadd.f32 %v394, %v526
    %v568 = vadd.f32 %v397, %v529
    %v569 = vadd.f32 %v400, %v532
    %v570 = vadd.f32 %v403, %v535
    %v571 = vadd.f32 %v406, %v538
    %v572 = vadd.f32 %v409, %v541
    %v573 = vadd.f32 %v412, %v544
    %v574 = vadd.f32 %v415, %v547
    %v575 = vadd.f32 %v418, %v550
    %v576 = vadd.f32 %v421, %v553
    %v577 = vadd.f32 %v424, %v556
    %v578 = vadd.f32 %v427, %v559
    %v579 = vadd.f32 %v430, %v562
    %v580 = vld [vmem:[%s47] sm:$0xff]
    %v581 = vld [vmem:[%s47 + $0x10] sm:$0xff]
    %v582 = vld [vmem:[%s47 + $0x20] sm:$0xff]
    %v583 = vld [vmem:[%s47 + $0x30] sm:$0xff]
    %v584 = vld [vmem:[%s47 + $0x40] sm:$0xff]
    %v585 = vld [vmem:[%s47 + $0x50] sm:$0xff]
    %v586 = vld [vmem:[%s47 + $0x60] sm:$0xff]
    %v587 = vld [vmem:[%s47 + $0x70] sm:$0xff]
    %v588 = vld [vmem:[%s47 + $0xa0] sm:$0xff]
    %v589 = vld [vmem:[%s47 + $0xb0] sm:$0xff]
    %v590 = vld [vmem:[%s47 + $0xc0] sm:$0xff]
    %v591 = vld [vmem:[%s47 + $0xd0] sm:$0xff]
    %v592 = vld [vmem:[%s47 + $0xe0] sm:$0xff]
    %v593 = vld [vmem:[%s47 + $0xf0] sm:$0xff]
    %v594 = vld [vmem:[%s47 + $0x100] sm:$0xff]
    %v595 = vld [vmem:[%s47 + $0x110] sm:$0xff]
    %s596 = scalar_lea.vmem [#allocation3], 48
    %v597 = vld [vmem:[%s596] sm:$0xff]
    %v598 = vld [vmem:[%s596 + $0x8] sm:$0xff]
    %v600 = vsel %vm36, %v580, 0
    %v603 = vsel %vm36, %v581, 0
    %v606 = vsel %vm36, %v582, 0
    %v609 = vsel %vm36, %v583, 0
    %v612 = vsel %vm36, %v584, 0
    %v615 = vsel %vm36, %v585, 0
    %v618 = vsel %vm36, %v586, 0
    %v621 = vsel %vm36, %v587, 0
    %v624 = vsel %vm36, %v588, 0
    %v627 = vsel %vm36, %v589, 0
    %v630 = vsel %vm36, %v590, 0
    %v633 = vsel %vm36, %v591, 0
    %v636 = vsel %vm36, %v592, 0
    %v639 = vsel %vm36, %v593, 0
    %v642 = vsel %vm36, %v594, 0
    %v645 = vsel %vm36, %v595, 0
    %647 = vmatpush.msra.mxu0 0.0
    %648 = vmatpush.msra.mxu0 0.0
    %649 = vmatpush.msra.mxu0 0.0
    %650 = vmatpush.msra.mxu0 0.0
    %651 = vmatpush.msra.mxu0 0.0
    %652 = vmatpush.msra.mxu0 0.0
    %653 = vmatpush.msra.mxu0 0.0
    %654 = vmatpush.msra.mxu0 0.0
    %655 = vmatpush.msra.mxu0 0.0
    %656 = vmatpush.msra.mxu0 0.0
    %657 = vmatpush.msra.mxu0 0.0
    %658 = vmatpush.msra.mxu0 0.0
    %659 = vmatpush.msra.mxu0 0.0
    %660 = vmatpush.msra.mxu0 0.0
    %661 = vmatpush.msra.mxu0 %v598
    %662 = vmatpush.msra.mxu0 %v597
    %663 = vmatmul.f32.gmra.mxu0 %v600
    %v664 = vpop.f32.mrf.mxu0
    %v665 = vadd.f32 0.0, %v664
    %666 = vmatmul.f32.gmra.mxu0 %v603
    %v667 = vpop.f32.mrf.mxu0
    %v668 = vadd.f32 0.0, %v667
    %669 = vmatmul.f32.gmra.mxu0 %v606
    %v670 = vpop.f32.mrf.mxu0
    %v671 = vadd.f32 0.0, %v670
    %672 = vmatmul.f32.gmra.mxu0 %v609
    %v673 = vpop.f32.mrf.mxu0
    %v674 = vadd.f32 0.0, %v673
    %675 = vmatmul.f32.gmra.mxu0 %v612
    %v676 = vpop.f32.mrf.mxu0
    %v677 = vadd.f32 0.0, %v676
    %678 = vmatmul.f32.gmra.mxu0 %v615
    %v679 = vpop.f32.mrf.mxu0
    %v680 = vadd.f32 0.0, %v679
    %681 = vmatmul.f32.gmra.mxu0 %v618
    %v682 = vpop.f32.mrf.mxu0
    %v683 = vadd.f32 0.0, %v682
    %684 = vmatmul.f32.gmra.mxu0 %v621
    %v685 = vpop.f32.mrf.mxu0
    %v686 = vadd.f32 0.0, %v685
    %687 = vmatmul.f32.gmra.mxu0 %v624
    %v688 = vpop.f32.mrf.mxu0
    %v689 = vadd.f32 0.0, %v688
    %690 = vmatmul.f32.gmra.mxu0 %v627
    %v691 = vpop.f32.mrf.mxu0
    %v692 = vadd.f32 0.0, %v691
    %693 = vmatmul.f32.gmra.mxu0 %v630
    %v694 = vpop.f32.mrf.mxu0
    %v695 = vadd.f32 0.0, %v694
    %696 = vmatmul.f32.gmra.mxu0 %v633
    %v697 = vpop.f32.mrf.mxu0
    %v698 = vadd.f32 0.0, %v697
    %699 = vmatmul.f32.gmra.mxu0 %v636
    %v700 = vpop.f32.mrf.mxu0
    %v701 = vadd.f32 0.0, %v700
    %702 = vmatmul.f32.gmra.mxu0 %v639
    %v703 = vpop.f32.mrf.mxu0
    %v704 = vadd.f32 0.0, %v703
    %705 = vmatmul.f32.gmra.mxu0 %v642
    %v706 = vpop.f32.mrf.mxu0
    %v707 = vadd.f32 0.0, %v706
    %708 = vmatmul.f32.gmra.mxu0 %v645
    %v709 = vpop.f32.mrf.mxu0
    %v710 = vadd.f32 0.0, %v709
    %711 = vdwg.mxu0
    %v712 = vadd.f32 %v564, %v665
    %v713 = vadd.f32 %v565, %v668
    %v714 = vadd.f32 %v566, %v671
    %v715 = vadd.f32 %v567, %v674
    %v716 = vadd.f32 %v568, %v677
    %v717 = vadd.f32 %v569, %v680
    %v718 = vadd.f32 %v570, %v683
    %v719 = vadd.f32 %v571, %v686
    %v720 = vadd.f32 %v572, %v689
    %v721 = vadd.f32 %v573, %v692
    %v722 = vadd.f32 %v574, %v695
    %v723 = vadd.f32 %v575, %v698
    %v724 = vadd.f32 %v576, %v701
    %v725 = vadd.f32 %v577, %v704
    %v726 = vadd.f32 %v578, %v707
    %v727 = vadd.f32 %v579, %v710
    %v728 = vld [vmem:[%s47 + $0x1] sm:$0xff]
    %v729 = vld [vmem:[%s47 + $0x11] sm:$0xff]
    %v730 = vld [vmem:[%s47 + $0x21] sm:$0xff]
    %v731 = vld [vmem:[%s47 + $0x31] sm:$0xff]
    %v732 = vld [vmem:[%s47 + $0x41] sm:$0xff]
    %v733 = vld [vmem:[%s47 + $0x51] sm:$0xff]
    %v734 = vld [vmem:[%s47 + $0x61] sm:$0xff]
    %v735 = vld [vmem:[%s47 + $0x71] sm:$0xff]
    %v736 = vld [vmem:[%s47 + $0xa1] sm:$0xff]
    %v737 = vld [vmem:[%s47 + $0xb1] sm:$0xff]
    %v738 = vld [vmem:[%s47 + $0xc1] sm:$0xff]
    %v739 = vld [vmem:[%s47 + $0xd1] sm:$0xff]
    %v740 = vld [vmem:[%s47 + $0xe1] sm:$0xff]
    %v741 = vld [vmem:[%s47 + $0xf1] sm:$0xff]
    %v742 = vld [vmem:[%s47 + $0x101] sm:$0xff]
    %v743 = vld [vmem:[%s47 + $0x111] sm:$0xff]
    %s744 = scalar_lea.vmem [#allocation3], 64
    %v745 = vld [vmem:[%s744] sm:$0xff]
    %v746 = vld [vmem:[%s744 + $0x8] sm:$0xff]
    %v748 = vsel %vm36, %v728, 0
    %v751 = vsel %vm36, %v729, 0
    %v754 = vsel %vm36, %v730, 0
    %v757 = vsel %vm36, %v731, 0
    %v760 = vsel %vm36, %v732, 0
    %v763 = vsel %vm36, %v733, 0
    %v766 = vsel %vm36, %v734, 0
    %v769 = vsel %vm36, %v735, 0
    %v772 = vsel %vm36, %v736, 0
    %v775 = vsel %vm36, %v737, 0
    %v778 = vsel %vm36, %v738, 0
    %v781 = vsel %vm36, %v739, 0
    %v784 = vsel %vm36, %v740, 0
    %v787 = vsel %vm36, %v741, 0
    %v790 = vsel %vm36, %v742, 0
    %v793 = vsel %vm36, %v743, 0
    %795 = vmatpush.msra.mxu0 0.0
    %796 = vmatpush.msra.mxu0 0.0
    %797 = vmatpush.msra.mxu0 0.0
    %798 = vmatpush.msra.mxu0 0.0
    %799 = vmatpush.msra.mxu0 0.0
    %800 = vmatpush.msra.mxu0 0.0
    %801 = vmatpush.msra.mxu0 0.0
    %802 = vmatpush.msra.mxu0 0.0
    %803 = vmatpush.msra.mxu0 0.0
    %804 = vmatpush.msra.mxu0 0.0
    %805 = vmatpush.msra.mxu0 0.0
    %806 = vmatpush.msra.mxu0 0.0
    %807 = vmatpush.msra.mxu0 0.0
    %808 = vmatpush.msra.mxu0 0.0
    %809 = vmatpush.msra.mxu0 %v746
    %810 = vmatpush.msra.mxu0 %v745
    %811 = vmatmul.f32.gmra.mxu0 %v748
    %v812 = vpop.f32.mrf.mxu0
    %v813 = vadd.f32 0.0, %v812
    %814 = vmatmul.f32.gmra.mxu0 %v751
    %v815 = vpop.f32.mrf.mxu0
    %v816 = vadd.f32 0.0, %v815
    %817 = vmatmul.f32.gmra.mxu0 %v754
    %v818 = vpop.f32.mrf.mxu0
    %v819 = vadd.f32 0.0, %v818
    %820 = vmatmul.f32.gmra.mxu0 %v757
    %v821 = vpop.f32.mrf.mxu0
    %v822 = vadd.f32 0.0, %v821
    %823 = vmatmul.f32.gmra.mxu0 %v760
    %v824 = vpop.f32.mrf.mxu0
    %v825 = vadd.f32 0.0, %v824
    %826 = vmatmul.f32.gmra.mxu0 %v763
    %v827 = vpop.f32.mrf.mxu0
    %v828 = vadd.f32 0.0, %v827
    %829 = vmatmul.f32.gmra.mxu0 %v766
    %v830 = vpop.f32.mrf.mxu0
    %v831 = vadd.f32 0.0, %v830
    %832 = vmatmul.f32.gmra.mxu0 %v769
    %v833 = vpop.f32.mrf.mxu0
    %v834 = vadd.f32 0.0, %v833
    %835 = vmatmul.f32.gmra.mxu0 %v772
    %v836 = vpop.f32.mrf.mxu0
    %v837 = vadd.f32 0.0, %v836
    %838 = vmatmul.f32.gmra.mxu0 %v775
    %v839 = vpop.f32.mrf.mxu0
    %v840 = vadd.f32 0.0, %v839
    %841 = vmatmul.f32.gmra.mxu0 %v778
    %v842 = vpop.f32.mrf.mxu0
    %v843 = vadd.f32 0.0, %v842
    %844 = vmatmul.f32.gmra.mxu0 %v781
    %v845 = vpop.f32.mrf.mxu0
    %v846 = vadd.f32 0.0, %v845
    %847 = vmatmul.f32.gmra.mxu0 %v784
    %v848 = vpop.f32.mrf.mxu0
    %v849 = vadd.f32 0.0, %v848
    %850 = vmatmul.f32.gmra.mxu0 %v787
    %v851 = vpop.f32.mrf.mxu0
    %v852 = vadd.f32 0.0, %v851
    %853 = vmatmul.f32.gmra.mxu0 %v790
    %v854 = vpop.f32.mrf.mxu0
    %v855 = vadd.f32 0.0, %v854
    %856 = vmatmul.f32.gmra.mxu0 %v793
    %v857 = vpop.f32.mrf.mxu0
    %v858 = vadd.f32 0.0, %v857
    %859 = vdwg.mxu0
    %v860 = vadd.f32 %v712, %v813
    %v861 = vadd.f32 %v713, %v816
    %v862 = vadd.f32 %v714, %v819
    %v863 = vadd.f32 %v715, %v822
    %v864 = vadd.f32 %v716, %v825
    %v865 = vadd.f32 %v717, %v828
    %v866 = vadd.f32 %v718, %v831
    %v867 = vadd.f32 %v719, %v834
    %v868 = vadd.f32 %v720, %v837
    %v869 = vadd.f32 %v721, %v840
    %v870 = vadd.f32 %v722, %v843
    %v871 = vadd.f32 %v723, %v846
    %v872 = vadd.f32 %v724, %v849
    %v873 = vadd.f32 %v725, %v852
    %v874 = vadd.f32 %v726, %v855
    %v875 = vadd.f32 %v727, %v858
    %v876 = vld [vmem:[%s47 + $0x2] sm:$0xff]
    %v877 = vld [vmem:[%s47 + $0x12] sm:$0xff]
    %v878 = vld [vmem:[%s47 + $0x22] sm:$0xff]
    %v879 = vld [vmem:[%s47 + $0x32] sm:$0xff]
    %v880 = vld [vmem:[%s47 + $0x42] sm:$0xff]
    %v881 = vld [vmem:[%s47 + $0x52] sm:$0xff]
    %v882 = vld [vmem:[%s47 + $0x62] sm:$0xff]
    %v883 = vld [vmem:[%s47 + $0x72] sm:$0xff]
    %v884 = vld [vmem:[%s47 + $0xa2] sm:$0xff]
    %v885 = vld [vmem:[%s47 + $0xb2] sm:$0xff]
    %v886 = vld [vmem:[%s47 + $0xc2] sm:$0xff]
    %v887 = vld [vmem:[%s47 + $0xd2] sm:$0xff]
    %v888 = vld [vmem:[%s47 + $0xe2] sm:$0xff]
    %v889 = vld [vmem:[%s47 + $0xf2] sm:$0xff]
    %v890 = vld [vmem:[%s47 + $0x102] sm:$0xff]
    %v891 = vld [vmem:[%s47 + $0x112] sm:$0xff]
    %s892 = scalar_lea.vmem [#allocation3], 80
    %v893 = vld [vmem:[%s892] sm:$0xff]
    %v894 = vld [vmem:[%s892 + $0x8] sm:$0xff]
    %v896 = vsel %vm36, %v876, 0
    %v899 = vsel %vm36, %v877, 0
    %v902 = vsel %vm36, %v878, 0
    %v905 = vsel %vm36, %v879, 0
    %v908 = vsel %vm36, %v880, 0
    %v911 = vsel %vm36, %v881, 0
    %v914 = vsel %vm36, %v882, 0
    %v917 = vsel %vm36, %v883, 0
    %v920 = vsel %vm36, %v884, 0
    %v923 = vsel %vm36, %v885, 0
    %v926 = vsel %vm36, %v886, 0
    %v929 = vsel %vm36, %v887, 0
    %v932 = vsel %vm36, %v888, 0
    %v935 = vsel %vm36, %v889, 0
    %v938 = vsel %vm36, %v890, 0
    %v941 = vsel %vm36, %v891, 0
    %943 = vmatpush.msra.mxu0 0.0
    %944 = vmatpush.msra.mxu0 0.0
    %945 = vmatpush.msra.mxu0 0.0
    %946 = vmatpush.msra.mxu0 0.0
    %947 = vmatpush.msra.mxu0 0.0
    %948 = vmatpush.msra.mxu0 0.0
    %949 = vmatpush.msra.mxu0 0.0
    %950 = vmatpush.msra.mxu0 0.0
    %951 = vmatpush.msra.mxu0 0.0
    %952 = vmatpush.msra.mxu0 0.0
    %953 = vmatpush.msra.mxu0 0.0
    %954 = vmatpush.msra.mxu0 0.0
    %955 = vmatpush.msra.mxu0 0.0
    %956 = vmatpush.msra.mxu0 0.0
    %957 = vmatpush.msra.mxu0 %v894
    %958 = vmatpush.msra.mxu0 %v893
    %959 = vmatmul.f32.gmra.mxu0 %v896
    %v960 = vpop.f32.mrf.mxu0
    %v961 = vadd.f32 0.0, %v960
    %962 = vmatmul.f32.gmra.mxu0 %v899
    %v963 = vpop.f32.mrf.mxu0
    %v964 = vadd.f32 0.0, %v963
    %965 = vmatmul.f32.gmra.mxu0 %v902
    %v966 = vpop.f32.mrf.mxu0
    %v967 = vadd.f32 0.0, %v966
    %968 = vmatmul.f32.gmra.mxu0 %v905
    %v969 = vpop.f32.mrf.mxu0
    %v970 = vadd.f32 0.0, %v969
    %971 = vmatmul.f32.gmra.mxu0 %v908
    %v972 = vpop.f32.mrf.mxu0
    %v973 = vadd.f32 0.0, %v972
    %974 = vmatmul.f32.gmra.mxu0 %v911
    %v975 = vpop.f32.mrf.mxu0
    %v976 = vadd.f32 0.0, %v975
    %977 = vmatmul.f32.gmra.mxu0 %v914
    %v978 = vpop.f32.mrf.mxu0
    %v979 = vadd.f32 0.0, %v978
    %980 = vmatmul.f32.gmra.mxu0 %v917
    %v981 = vpop.f32.mrf.mxu0
    %v982 = vadd.f32 0.0, %v981
    %983 = vmatmul.f32.gmra.mxu0 %v920
    %v984 = vpop.f32.mrf.mxu0
    %v985 = vadd.f32 0.0, %v984
    %986 = vmatmul.f32.gmra.mxu0 %v923
    %v987 = vpop.f32.mrf.mxu0
    %v988 = vadd.f32 0.0, %v987
    %989 = vmatmul.f32.gmra.mxu0 %v926
    %v990 = vpop.f32.mrf.mxu0
    %v991 = vadd.f32 0.0, %v990
    %992 = vmatmul.f32.gmra.mxu0 %v929
    %v993 = vpop.f32.mrf.mxu0
    %v994 = vadd.f32 0.0, %v993
    %995 = vmatmul.f32.gmra.mxu0 %v932
    %v996 = vpop.f32.mrf.mxu0
    %v997 = vadd.f32 0.0, %v996
    %998 = vmatmul.f32.gmra.mxu0 %v935
    %v999 = vpop.f32.mrf.mxu0
    %v1000 = vadd.f32 0.0, %v999
    %1001 = vmatmul.f32.gmra.mxu0 %v938
    %v1002 = vpop.f32.mrf.mxu0
    %v1003 = vadd.f32 0.0, %v1002
    %1004 = vmatmul.f32.gmra.mxu0 %v941
    %v1005 = vpop.f32.mrf.mxu0
    %v1006 = vadd.f32 0.0, %v1005
    %1007 = vdwg.mxu0
    %v1008 = vadd.f32 %v860, %v961
    %v1009 = vadd.f32 %v861, %v964
    %v1010 = vadd.f32 %v862, %v967
    %v1011 = vadd.f32 %v863, %v970
    %v1012 = vadd.f32 %v864, %v973
    %v1013 = vadd.f32 %v865, %v976
    %v1014 = vadd.f32 %v866, %v979
    %v1015 = vadd.f32 %v867, %v982
    %v1016 = vadd.f32 %v868, %v985
    %v1017 = vadd.f32 %v869, %v988
    %v1018 = vadd.f32 %v870, %v991
    %v1019 = vadd.f32 %v871, %v994
    %v1020 = vadd.f32 %v872, %v997
    %v1021 = vadd.f32 %v873, %v1000
    %v1022 = vadd.f32 %v874, %v1003
    %v1023 = vadd.f32 %v875, %v1006
    %s1024 = scalar_lea.vmem [#allocation2], 32
    %v1025 = vld [vmem:[%s1024] sm:$0xff]
    %v1026 = vld [vmem:[%s1024 + $0x10] sm:$0xff]
    %v1027 = vld [vmem:[%s1024 + $0x20] sm:$0xff]
    %v1028 = vld [vmem:[%s1024 + $0x30] sm:$0xff]
    %v1029 = vld [vmem:[%s1024 + $0x40] sm:$0xff]
    %v1030 = vld [vmem:[%s1024 + $0x50] sm:$0xff]
    %v1031 = vld [vmem:[%s1024 + $0x60] sm:$0xff]
    %v1032 = vld [vmem:[%s1024 + $0x70] sm:$0xff]
    %v1033 = vld [vmem:[%s1024 + $0xa0] sm:$0xff]
    %v1034 = vld [vmem:[%s1024 + $0xb0] sm:$0xff]
    %v1035 = vld [vmem:[%s1024 + $0xc0] sm:$0xff]
    %v1036 = vld [vmem:[%s1024 + $0xd0] sm:$0xff]
    %v1037 = vld [vmem:[%s1024 + $0xe0] sm:$0xff]
    %v1038 = vld [vmem:[%s1024 + $0xf0] sm:$0xff]
    %v1039 = vld [vmem:[%s1024 + $0x100] sm:$0xff]
    %v1040 = vld [vmem:[%s1024 + $0x110] sm:$0xff]
    %s1041 = scalar_lea.vmem [#allocation3], 96
    %v1042 = vld [vmem:[%s1041] sm:$0xff]
    %v1043 = vld [vmem:[%s1041 + $0x8] sm:$0xff]
    %v1045 = vsel %vm36, %v1025, 0
    %v1048 = vsel %vm36, %v1026, 0
    %v1051 = vsel %vm36, %v1027, 0
    %v1054 = vsel %vm36, %v1028, 0
    %v1057 = vsel %vm36, %v1029, 0
    %v1060 = vsel %vm36, %v1030, 0
    %v1063 = vsel %vm36, %v1031, 0
    %v1066 = vsel %vm36, %v1032, 0
    %v1069 = vsel %vm36, %v1033, 0
    %v1072 = vsel %vm36, %v1034, 0
    %v1075 = vsel %vm36, %v1035, 0
    %v1078 = vsel %vm36, %v1036, 0
    %v1081 = vsel %vm36, %v1037, 0
    %v1084 = vsel %vm36, %v1038, 0
    %v1087 = vsel %vm36, %v1039, 0
    %v1090 = vsel %vm36, %v1040, 0
    %1092 = vmatpush.msra.mxu0 0.0
    %1093 = vmatpush.msra.mxu0 0.0
    %1094 = vmatpush.msra.mxu0 0.0
    %1095 = vmatpush.msra.mxu0 0.0
    %1096 = vmatpush.msra.mxu0 0.0
    %1097 = vmatpush.msra.mxu0 0.0
    %1098 = vmatpush.msra.mxu0 0.0
    %1099 = vmatpush.msra.mxu0 0.0
    %1100 = vmatpush.msra.mxu0 0.0
    %1101 = vmatpush.msra.mxu0 0.0
    %1102 = vmatpush.msra.mxu0 0.0
    %1103 = vmatpush.msra.mxu0 0.0
    %1104 = vmatpush.msra.mxu0 0.0
    %1105 = vmatpush.msra.mxu0 0.0
    %1106 = vmatpush.msra.mxu0 %v1043
    %1107 = vmatpush.msra.mxu0 %v1042
    %1108 = vmatmul.f32.gmra.mxu0 %v1045
    %v1109 = vpop.f32.mrf.mxu0
    %v1110 = vadd.f32 0.0, %v1109
    %1111 = vmatmul.f32.gmra.mxu0 %v1048
    %v1112 = vpop.f32.mrf.mxu0
    %v1113 = vadd.f32 0.0, %v1112
    %1114 = vmatmul.f32.gmra.mxu0 %v1051
    %v1115 = vpop.f32.mrf.mxu0
    %v1116 = vadd.f32 0.0, %v1115
    %1117 = vmatmul.f32.gmra.mxu0 %v1054
    %v1118 = vpop.f32.mrf.mxu0
    %v1119 = vadd.f32 0.0, %v1118
    %1120 = vmatmul.f32.gmra.mxu0 %v1057
    %v1121 = vpop.f32.mrf.mxu0
    %v1122 = vadd.f32 0.0, %v1121
    %1123 = vmatmul.f32.gmra.mxu0 %v1060
    %v1124 = vpop.f32.mrf.mxu0
    %v1125 = vadd.f32 0.0, %v1124
    %1126 = vmatmul.f32.gmra.mxu0 %v1063
    %v1127 = vpop.f32.mrf.mxu0
    %v1128 = vadd.f32 0.0, %v1127
    %1129 = vmatmul.f32.gmra.mxu0 %v1066
    %v1130 = vpop.f32.mrf.mxu0
    %v1131 = vadd.f32 0.0, %v1130
    %1132 = vmatmul.f32.gmra.mxu0 %v1069
    %v1133 = vpop.f32.mrf.mxu0
    %v1134 = vadd.f32 0.0, %v1133
    %1135 = vmatmul.f32.gmra.mxu0 %v1072
    %v1136 = vpop.f32.mrf.mxu0
    %v1137 = vadd.f32 0.0, %v1136
    %1138 = vmatmul.f32.gmra.mxu0 %v1075
    %v1139 = vpop.f32.mrf.mxu0
    %v1140 = vadd.f32 0.0, %v1139
    %1141 = vmatmul.f32.gmra.mxu0 %v1078
    %v1142 = vpop.f32.mrf.mxu0
    %v1143 = vadd.f32 0.0, %v1142
    %1144 = vmatmul.f32.gmra.mxu0 %v1081
    %v1145 = vpop.f32.mrf.mxu0
    %v1146 = vadd.f32 0.0, %v1145
    %1147 = vmatmul.f32.gmra.mxu0 %v1084
    %v1148 = vpop.f32.mrf.mxu0
    %v1149 = vadd.f32 0.0, %v1148
    %1150 = vmatmul.f32.gmra.mxu0 %v1087
    %v1151 = vpop.f32.mrf.mxu0
    %v1152 = vadd.f32 0.0, %v1151
    %1153 = vmatmul.f32.gmra.mxu0 %v1090
    %v1154 = vpop.f32.mrf.mxu0
    %v1155 = vadd.f32 0.0, %v1154
    %1156 = vdwg.mxu0
    %v1157 = vadd.f32 %v1008, %v1110
    %v1158 = vadd.f32 %v1009, %v1113
    %v1159 = vadd.f32 %v1010, %v1116
    %v1160 = vadd.f32 %v1011, %v1119
    %v1161 = vadd.f32 %v1012, %v1122
    %v1162 = vadd.f32 %v1013, %v1125
    %v1163 = vadd.f32 %v1014, %v1128
    %v1164 = vadd.f32 %v1015, %v1131
    %v1165 = vadd.f32 %v1016, %v1134
    %v1166 = vadd.f32 %v1017, %v1137
    %v1167 = vadd.f32 %v1018, %v1140
    %v1168 = vadd.f32 %v1019, %v1143
    %v1169 = vadd.f32 %v1020, %v1146
    %v1170 = vadd.f32 %v1021, %v1149
    %v1171 = vadd.f32 %v1022, %v1152
    %v1172 = vadd.f32 %v1023, %v1155
    %v1173 = vld [vmem:[%s1024 + $0x1] sm:$0xff]
    %v1174 = vld [vmem:[%s1024 + $0x11] sm:$0xff]
    %v1175 = vld [vmem:[%s1024 + $0x21] sm:$0xff]
    %v1176 = vld [vmem:[%s1024 + $0x31] sm:$0xff]
    %v1177 = vld [vmem:[%s1024 + $0x41] sm:$0xff]
    %v1178 = vld [vmem:[%s1024 + $0x51] sm:$0xff]
    %v1179 = vld [vmem:[%s1024 + $0x61] sm:$0xff]
    %v1180 = vld [vmem:[%s1024 + $0x71] sm:$0xff]
    %v1181 = vld [vmem:[%s1024 + $0xa1] sm:$0xff]
    %v1182 = vld [vmem:[%s1024 + $0xb1] sm:$0xff]
    %v1183 = vld [vmem:[%s1024 + $0xc1] sm:$0xff]
    %v1184 = vld [vmem:[%s1024 + $0xd1] sm:$0xff]
    %v1185 = vld [vmem:[%s1024 + $0xe1] sm:$0xff]
    %v1186 = vld [vmem:[%s1024 + $0xf1] sm:$0xff]
    %v1187 = vld [vmem:[%s1024 + $0x101] sm:$0xff]
    %v1188 = vld [vmem:[%s1024 + $0x111] sm:$0xff]
    %s1189 = scalar_lea.vmem [#allocation3], 112
    %v1190 = vld [vmem:[%s1189] sm:$0xff]
    %v1191 = vld [vmem:[%s1189 + $0x8] sm:$0xff]
    %v1193 = vsel %vm36, %v1173, 0
    %v1196 = vsel %vm36, %v1174, 0
    %v1199 = vsel %vm36, %v1175, 0
    %v1202 = vsel %vm36, %v1176, 0
    %v1205 = vsel %vm36, %v1177, 0
    %v1208 = vsel %vm36, %v1178, 0
    %v1211 = vsel %vm36, %v1179, 0
    %v1214 = vsel %vm36, %v1180, 0
    %v1217 = vsel %vm36, %v1181, 0
    %v1220 = vsel %vm36, %v1182, 0
    %v1223 = vsel %vm36, %v1183, 0
    %v1226 = vsel %vm36, %v1184, 0
    %v1229 = vsel %vm36, %v1185, 0
    %v1232 = vsel %vm36, %v1186, 0
    %v1235 = vsel %vm36, %v1187, 0
    %v1238 = vsel %vm36, %v1188, 0
    %1240 = vmatpush.msra.mxu0 0.0
    %1241 = vmatpush.msra.mxu0 0.0
    %1242 = vmatpush.msra.mxu0 0.0
    %1243 = vmatpush.msra.mxu0 0.0
    %1244 = vmatpush.msra.mxu0 0.0
    %1245 = vmatpush.msra.mxu0 0.0
    %1246 = vmatpush.msra.mxu0 0.0
    %1247 = vmatpush.msra.mxu0 0.0
    %1248 = vmatpush.msra.mxu0 0.0
    %1249 = vmatpush.msra.mxu0 0.0
    %1250 = vmatpush.msra.mxu0 0.0
    %1251 = vmatpush.msra.mxu0 0.0
    %1252 = vmatpush.msra.mxu0 0.0
    %1253 = vmatpush.msra.mxu0 0.0
    %1254 = vmatpush.msra.mxu0 %v1191
    %1255 = vmatpush.msra.mxu0 %v1190
    %1256 = vmatmul.f32.gmra.mxu0 %v1193
    %v1257 = vpop.f32.mrf.mxu0
    %v1258 = vadd.f32 0.0, %v1257
    %1259 = vmatmul.f32.gmra.mxu0 %v1196
    %v1260 = vpop.f32.mrf.mxu0
    %v1261 = vadd.f32 0.0, %v1260
    %1262 = vmatmul.f32.gmra.mxu0 %v1199
    %v1263 = vpop.f32.mrf.mxu0
    %v1264 = vadd.f32 0.0, %v1263
    %1265 = vmatmul.f32.gmra.mxu0 %v1202
    %v1266 = vpop.f32.mrf.mxu0
    %v1267 = vadd.f32 0.0, %v1266
    %1268 = vmatmul.f32.gmra.mxu0 %v1205
    %v1269 = vpop.f32.mrf.mxu0
    %v1270 = vadd.f32 0.0, %v1269
    %1271 = vmatmul.f32.gmra.mxu0 %v1208
    %v1272 = vpop.f32.mrf.mxu0
    %v1273 = vadd.f32 0.0, %v1272
    %1274 = vmatmul.f32.gmra.mxu0 %v1211
    %v1275 = vpop.f32.mrf.mxu0
    %v1276 = vadd.f32 0.0, %v1275
    %1277 = vmatmul.f32.gmra.mxu0 %v1214
    %v1278 = vpop.f32.mrf.mxu0
    %v1279 = vadd.f32 0.0, %v1278
    %1280 = vmatmul.f32.gmra.mxu0 %v1217
    %v1281 = vpop.f32.mrf.mxu0
    %v1282 = vadd.f32 0.0, %v1281
    %1283 = vmatmul.f32.gmra.mxu0 %v1220
    %v1284 = vpop.f32.mrf.mxu0
    %v1285 = vadd.f32 0.0, %v1284
    %1286 = vmatmul.f32.gmra.mxu0 %v1223
    %v1287 = vpop.f32.mrf.mxu0
    %v1288 = vadd.f32 0.0, %v1287
    %1289 = vmatmul.f32.gmra.mxu0 %v1226
    %v1290 = vpop.f32.mrf.mxu0
    %v1291 = vadd.f32 0.0, %v1290
    %1292 = vmatmul.f32.gmra.mxu0 %v1229
    %v1293 = vpop.f32.mrf.mxu0
    %v1294 = vadd.f32 0.0, %v1293
    %1295 = vmatmul.f32.gmra.mxu0 %v1232
    %v1296 = vpop.f32.mrf.mxu0
    %v1297 = vadd.f32 0.0, %v1296
    %1298 = vmatmul.f32.gmra.mxu0 %v1235
    %v1299 = vpop.f32.mrf.mxu0
    %v1300 = vadd.f32 0.0, %v1299
    %1301 = vmatmul.f32.gmra.mxu0 %v1238
    %v1302 = vpop.f32.mrf.mxu0
    %v1303 = vadd.f32 0.0, %v1302
    %1304 = vdwg.mxu0
    %v1305 = vadd.f32 %v1157, %v1258
    %v1306 = vadd.f32 %v1158, %v1261
    %v1307 = vadd.f32 %v1159, %v1264
    %v1308 = vadd.f32 %v1160, %v1267
    %v1309 = vadd.f32 %v1161, %v1270
    %v1310 = vadd.f32 %v1162, %v1273
    %v1311 = vadd.f32 %v1163, %v1276
    %v1312 = vadd.f32 %v1164, %v1279
    %v1313 = vadd.f32 %v1165, %v1282
    %v1314 = vadd.f32 %v1166, %v1285
    %v1315 = vadd.f32 %v1167, %v1288
    %v1316 = vadd.f32 %v1168, %v1291
    %v1317 = vadd.f32 %v1169, %v1294
    %v1318 = vadd.f32 %v1170, %v1297
    %v1319 = vadd.f32 %v1171, %v1300
    %v1320 = vadd.f32 %v1172, %v1303
    %v1321 = vld [vmem:[%s1024 + $0x2] sm:$0xff]
    %v1322 = vld [vmem:[%s1024 + $0x12] sm:$0xff]
    %v1323 = vld [vmem:[%s1024 + $0x22] sm:$0xff]
    %v1324 = vld [vmem:[%s1024 + $0x32] sm:$0xff]
    %v1325 = vld [vmem:[%s1024 + $0x42] sm:$0xff]
    %v1326 = vld [vmem:[%s1024 + $0x52] sm:$0xff]
    %v1327 = vld [vmem:[%s1024 + $0x62] sm:$0xff]
    %v1328 = vld [vmem:[%s1024 + $0x72] sm:$0xff]
    %v1329 = vld [vmem:[%s1024 + $0xa2] sm:$0xff]
    %v1330 = vld [vmem:[%s1024 + $0xb2] sm:$0xff]
    %v1331 = vld [vmem:[%s1024 + $0xc2] sm:$0xff]
    %v1332 = vld [vmem:[%s1024 + $0xd2] sm:$0xff]
    %v1333 = vld [vmem:[%s1024 + $0xe2] sm:$0xff]
    %v1334 = vld [vmem:[%s1024 + $0xf2] sm:$0xff]
    %v1335 = vld [vmem:[%s1024 + $0x102] sm:$0xff]
    %v1336 = vld [vmem:[%s1024 + $0x112] sm:$0xff]
    %s1337 = scalar_lea.vmem [#allocation3], 128
    %v1338 = vld [vmem:[%s1337] sm:$0xff]
    %v1339 = vld [vmem:[%s1337 + $0x8] sm:$0xff]
    %v1341 = vsel %vm36, %v1321, 0
    %v1344 = vsel %vm36, %v1322, 0
    %v1347 = vsel %vm36, %v1323, 0
    %v1350 = vsel %vm36, %v1324, 0
    %v1353 = vsel %vm36, %v1325, 0
    %v1356 = vsel %vm36, %v1326, 0
    %v1359 = vsel %vm36, %v1327, 0
    %v1362 = vsel %vm36, %v1328, 0
    %v1365 = vsel %vm36, %v1329, 0
    %v1368 = vsel %vm36, %v1330, 0
    %v1371 = vsel %vm36, %v1331, 0
    %v1374 = vsel %vm36, %v1332, 0
    %v1377 = vsel %vm36, %v1333, 0
    %v1380 = vsel %vm36, %v1334, 0
    %v1383 = vsel %vm36, %v1335, 0
    %v1386 = vsel %vm36, %v1336, 0
    %1388 = vmatpush.msra.mxu0 0.0
    %1389 = vmatpush.msra.mxu0 0.0
    %1390 = vmatpush.msra.mxu0 0.0
    %1391 = vmatpush.msra.mxu0 0.0
    %1392 = vmatpush.msra.mxu0 0.0
    %1393 = vmatpush.msra.mxu0 0.0
    %1394 = vmatpush.msra.mxu0 0.0
    %1395 = vmatpush.msra.mxu0 0.0
    %1396 = vmatpush.msra.mxu0 0.0
    %1397 = vmatpush.msra.mxu0 0.0
    %1398 = vmatpush.msra.mxu0 0.0
    %1399 = vmatpush.msra.mxu0 0.0
    %1400 = vmatpush.msra.mxu0 0.0
    %1401 = vmatpush.msra.mxu0 0.0
    %1402 = vmatpush.msra.mxu0 %v1339
    %1403 = vmatpush.msra.mxu0 %v1338
    %1404 = vmatmul.f32.gmra.mxu0 %v1341
    %v1405 = vpop.f32.mrf.mxu0
    %v1406 = vadd.f32 0.0, %v1405
    %1407 = vmatmul.f32.gmra.mxu0 %v1344
    %v1408 = vpop.f32.mrf.mxu0
    %v1409 = vadd.f32 0.0, %v1408
    %1410 = vmatmul.f32.gmra.mxu0 %v1347
    %v1411 = vpop.f32.mrf.mxu0
    %v1412 = vadd.f32 0.0, %v1411
    %1413 = vmatmul.f32.gmra.mxu0 %v1350
    %v1414 = vpop.f32.mrf.mxu0
    %v1415 = vadd.f32 0.0, %v1414
    %1416 = vmatmul.f32.gmra.mxu0 %v1353
    %v1417 = vpop.f32.mrf.mxu0
    %v1418 = vadd.f32 0.0, %v1417
    %1419 = vmatmul.f32.gmra.mxu0 %v1356
    %v1420 = vpop.f32.mrf.mxu0
    %v1421 = vadd.f32 0.0, %v1420
    %1422 = vmatmul.f32.gmra.mxu0 %v1359
    %v1423 = vpop.f32.mrf.mxu0
    %v1424 = vadd.f32 0.0, %v1423
    %1425 = vmatmul.f32.gmra.mxu0 %v1362
    %v1426 = vpop.f32.mrf.mxu0
    %v1427 = vadd.f32 0.0, %v1426
    %1428 = vmatmul.f32.gmra.mxu0 %v1365
    %v1429 = vpop.f32.mrf.mxu0
    %v1430 = vadd.f32 0.0, %v1429
    %1431 = vmatmul.f32.gmra.mxu0 %v1368
    %v1432 = vpop.f32.mrf.mxu0
    %v1433 = vadd.f32 0.0, %v1432
    %1434 = vmatmul.f32.gmra.mxu0 %v1371
    %v1435 = vpop.f32.mrf.mxu0
    %v1436 = vadd.f32 0.0, %v1435
    %1437 = vmatmul.f32.gmra.mxu0 %v1374
    %v1438 = vpop.f32.mrf.mxu0
    %v1439 = vadd.f32 0.0, %v1438
    %1440 = vmatmul.f32.gmra.mxu0 %v1377
    %v1441 = vpop.f32.mrf.mxu0
    %v1442 = vadd.f32 0.0, %v1441
    %1443 = vmatmul.f32.gmra.mxu0 %v1380
    %v1444 = vpop.f32.mrf.mxu0
    %v1445 = vadd.f32 0.0, %v1444
    %1446 = vmatmul.f32.gmra.mxu0 %v1383
    %v1447 = vpop.f32.mrf.mxu0
    %v1448 = vadd.f32 0.0, %v1447
    %1449 = vmatmul.f32.gmra.mxu0 %v1386
    %v1450 = vpop.f32.mrf.mxu0
    %v1451 = vadd.f32 0.0, %v1450
    %1452 = vdwg.mxu0
    %v1453 = vadd.f32 %v1305, %v1406
    %v1454 = vadd.f32 %v1306, %v1409
    %v1455 = vadd.f32 %v1307, %v1412
    %v1456 = vadd.f32 %v1308, %v1415
    %v1457 = vadd.f32 %v1309, %v1418
    %v1458 = vadd.f32 %v1310, %v1421
    %v1459 = vadd.f32 %v1311, %v1424
    %v1460 = vadd.f32 %v1312, %v1427
    %v1461 = vadd.f32 %v1313, %v1430
    %v1462 = vadd.f32 %v1314, %v1433
    %v1463 = vadd.f32 %v1315, %v1436
    %v1464 = vadd.f32 %v1316, %v1439
    %v1465 = vadd.f32 %v1317, %v1442
    %v1466 = vadd.f32 %v1318, %v1445
    %v1467 = vadd.f32 %v1319, %v1448
    %v1468 = vadd.f32 %v1320, %v1451
    %1469 = vst.msk [vmem:[%s4] sm:$0xff] %vm36, %v1453
    %1470 = vst.msk [vmem:[%s4 + $0x8] sm:$0xff] %vm36, %v1454
    %1471 = vst.msk [vmem:[%s4 + $0x10] sm:$0xff] %vm36, %v1455
    %1472 = vst.msk [vmem:[%s4 + $0x18] sm:$0xff] %vm36, %v1456
    %1473 = vst.msk [vmem:[%s4 + $0x20] sm:$0xff] %vm36, %v1457
    %1474 = vst.msk [vmem:[%s4 + $0x28] sm:$0xff] %vm36, %v1458
    %1475 = vst.msk [vmem:[%s4 + $0x30] sm:$0xff] %vm36, %v1459
    %1476 = vst.msk [vmem:[%s4 + $0x38] sm:$0xff] %vm36, %v1460
    %1477 = vst.msk [vmem:[%s4 + $0x40] sm:$0xff] %vm36, %v1461
    %1478 = vst.msk [vmem:[%s4 + $0x48] sm:$0xff] %vm36, %v1462
    %1479 = vst.msk [vmem:[%s4 + $0x50] sm:$0xff] %vm36, %v1463
    %1480 = vst.msk [vmem:[%s4 + $0x58] sm:$0xff] %vm36, %v1464
    %1481 = vst.msk [vmem:[%s4 + $0x60] sm:$0xff] %vm36, %v1465
    %1482 = vst.msk [vmem:[%s4 + $0x68] sm:$0xff] %vm36, %v1466
    %1483 = vst.msk [vmem:[%s4 + $0x70] sm:$0xff] %vm36, %v1467
    %1484 = vst.msk [vmem:[%s4 + $0x78] sm:$0xff] %vm36, %v1468
    %v1485 = vsel %vm36, %v1453, 0.0
    %v1486 = vsel %vm36, %v1454, 0.0
    %v1487 = vadd.f32 %v1485, %v1486
    %v1488 = vsel %vm36, %v1455, 0.0
    %v1489 = vadd.f32 %v1487, %v1488
    %v1490 = vsel %vm36, %v1456, 0.0
    %v1491 = vadd.f32 %v1489, %v1490
    %v1492 = vsel %vm36, %v1457, 0.0
    %v1493 = vadd.f32 %v1491, %v1492
    %v1494 = vsel %vm36, %v1458, 0.0
    %v1495 = vadd.f32 %v1493, %v1494
    %v1496 = vsel %vm36, %v1459, 0.0
    %v1497 = vadd.f32 %v1495, %v1496
    %v1498 = vsel %vm36, %v1460, 0.0
    %v1499 = vadd.f32 %v1497, %v1498
    %v1500 = vsel %vm36, %v1461, 0.0
    %v1501 = vadd.f32 %v1499, %v1500
    %v1502 = vsel %vm36, %v1462, 0.0
    %v1503 = vadd.f32 %v1501, %v1502
    %v1504 = vsel %vm36, %v1463, 0.0
    %v1505 = vadd.f32 %v1503, %v1504
    %v1506 = vsel %vm36, %v1464, 0.0
    %v1507 = vadd.f32 %v1505, %v1506
    %v1508 = vsel %vm36, %v1465, 0.0
    %v1509 = vadd.f32 %v1507, %v1508
    %v1510 = vsel %vm36, %v1466, 0.0
    %v1511 = vadd.f32 %v1509, %v1510
    %v1512 = vsel %vm36, %v1467, 0.0
    %v1513 = vadd.f32 %v1511, %v1512
    %v1514 = vsel %vm36, %v1468, 0.0
    %v1515 = vadd.f32 %v1513, %v1514
    %v1516 = vrot.slane %v1515, 4
    %v1517 = vadd.f32 %v1515, %v1516
    %v1518 = vrot.slane %v1517, 2
    %v1519 = vadd.f32 %v1517, %v1518
    %v1520 = vrot.slane %v1519, 1
    %v1521 = vadd.f32 %v1519, %v1520
    %1522 = vst.msk [vmem:[%s5] sm:$0x1] %vm48, %v1521
    %v1523 = vmul.f32 %v1453, %v1453
    %v1524 = vmul.f32 %v1454, %v1454
    %v1525 = vmul.f32 %v1455, %v1455
    %v1526 = vmul.f32 %v1456, %v1456
    %v1527 = vmul.f32 %v1457, %v1457
    %v1528 = vmul.f32 %v1458, %v1458
    %v1529 = vmul.f32 %v1459, %v1459
    %v1530 = vmul.f32 %v1460, %v1460
    %v1531 = vmul.f32 %v1461, %v1461
    %v1532 = vmul.f32 %v1462, %v1462
    %v1533 = vmul.f32 %v1463, %v1463
    %v1534 = vmul.f32 %v1464, %v1464
    %v1535 = vmul.f32 %v1465, %v1465
    %v1536 = vmul.f32 %v1466, %v1466
    %v1537 = vmul.f32 %v1467, %v1467
    %v1538 = vmul.f32 %v1468, %v1468
    %v1539 = vsel %vm36, %v1523, 0.0
    %v1540 = vsel %vm36, %v1524, 0.0
    %v1541 = vadd.f32 %v1539, %v1540
    %v1542 = vsel %vm36, %v1525, 0.0
    %v1543 = vadd.f32 %v1541, %v1542
    %v1544 = vsel %vm36, %v1526, 0.0
    %v1545 = vadd.f32 %v1543, %v1544
    %v1546 = vsel %vm36, %v1527, 0.0
    %v1547 = vadd.f32 %v1545, %v1546
    %v1548 = vsel %vm36, %v1528, 0.0
    %v1549 = vadd.f32 %v1547, %v1548
    %v1550 = vsel %vm36, %v1529, 0.0
    %v1551 = vadd.f32 %v1549, %v1550
    %v1552 = vsel %vm36, %v1530, 0.0
    %v1553 = vadd.f32 %v1551, %v1552
    %v1554 = vsel %vm36, %v1531, 0.0
    %v1555 = vadd.f32 %v1553, %v1554
    %v1556 = vsel %vm36, %v1532, 0.0
    %v1557 = vadd.f32 %v1555, %v1556
    %v1558 = vsel %vm36, %v1533, 0.0
    %v1559 = vadd.f32 %v1557, %v1558
    %v1560 = vsel %vm36, %v1534, 0.0
    %v1561 = vadd.f32 %v1559, %v1560
    %v1562 = vsel %vm36, %v1535, 0.0
    %v1563 = vadd.f32 %v1561, %v1562
    %v1564 = vsel %vm36, %v1536, 0.0
    %v1565 = vadd.f32 %v1563, %v1564
    %v1566 = vsel %vm36, %v1537, 0.0
    %v1567 = vadd.f32 %v1565, %v1566
    %v1568 = vsel %vm36, %v1538, 0.0
    %v1569 = vadd.f32 %v1567, %v1568
    %v1570 = vrot.slane %v1569, 4
    %v1571 = vadd.f32 %v1569, %v1570
    %v1572 = vrot.slane %v1571, 2
    %v1573 = vadd.f32 %v1571, %v1572
    %v1574 = vrot.slane %v1573, 1
    %v1575 = vadd.f32 %v1573, %v1574
    %1576 = vst.msk [vmem:[%s6] sm:$0x1] %vm48, %v1575
    // Predicated region
    $region22: #{se_preact_bottleneck.6} parent=1 // pred_check
      _
    $region23: #{se_preact_bottleneck.6} parent=1 // pred_check_branch
      %1578 = sbr.rel (0) target = $region25
    $region24: #{se_preact_bottleneck.6} parent=1 // pred_region
      _
    $region25: #{se_preact_bottleneck.6} parent=1 // pred_fallthru
      _
    // Predicated region
    $region26: #{se_preact_bottleneck.6} parent=1 // pred_check
      _
    $region27: #{se_preact_bottleneck.6} parent=1 // pred_check_branch
      %1580 = sbr.rel (0) target = $region29
    $region28: #{se_preact_bottleneck.6} parent=1 // pred_region
      _
    $region29: #{se_preact_bottleneck.6} parent=1 // pred_fallthru
      _
    // Predicated region
    $region30: #{se_preact_bottleneck.6} parent=1 // pred_check
      _
    $region31: #{se_preact_bottleneck.6} parent=1 // pred_check_branch
      %1582 = sbr.rel (0) target = $region33
    $region32: #{se_preact_bottleneck.6} parent=1 // pred_region
      _
    $region33: #{se_preact_bottleneck.6} parent=1 // pred_fallthru
      _
    // Predicated region
    $region34: #{se_preact_bottleneck.6} parent=1 // pred_check
      _
    $region35: #{se_preact_bottleneck.6} parent=1 // pred_check_branch
      %1584 = sbr.rel (0) target = $region37
    $region36: #{se_preact_bottleneck.6} parent=1 // pred_region
      _
    $region37: #{se_preact_bottleneck.6} parent=1 // pred_fallthru
      _
    // Predicated region
    $region38: #{se_preact_bottleneck.6} parent=1 // pred_check
      _
    $region39: #{se_preact_bottleneck.6} parent=1 // pred_check_branch
      %1586 = sbr.rel (0) target = $region41
    $region40: #{se_preact_bottleneck.6} parent=1 // pred_region
      _
    $region41: #{se_preact_bottleneck.6} parent=1 // pred_fallthru
      _
    // Predicated region
    $region42: #{se_preact_bottleneck.6} parent=1 // pred_check
      _
    $region43: #{se_preact_bottleneck.6} parent=1 // pred_check_branch
      %1588 = sbr.rel (0) target = $region45
    $region44: #{se_preact_bottleneck.6} parent=1 // pred_region
      _
    $region45: #{se_preact_bottleneck.6} parent=1 // pred_fallthru
      _
    %1589 = vsyncpa [#allocation4], 1

</llo_original>
